<compile_context>
chip_gen: v6e
topology: v6e:2x2x1
jax: 0.10.0
libtpu: 0.0.40
codegen_flags: <defaults>
</compile_context>

<pallas_src>
import jax
import jax.numpy as jnp
from jax.experimental import pallas as pl
from jax.experimental.pallas import tpu as pltpu

INPUT_SIZE = 10
HIDDEN = 64
NUM_LAYERS = 2
NUM_CLASSES = 10

D = 2 * HIDDEN      # 128 : [fwd | bwd] hidden width
G = 8 * HIDDEN      # 512 : 4 gates x 2 directions (gate-interleaved columns)


# ---------------------------------------------------------------------------
# Fused kernel: whole forward pass
# ---------------------------------------------------------------------------
def _fused_kernel(xtm_ref,
                  wih0_ref, b0_ref, whh0_ref,
                  wih1_ref, b1_ref, whh1_ref,
                  wattn_ref, wfc_ref, bfc_ref,
                  out_ref,
                  xproj_scr, xcomb_scr, s_scr, y_scr):
    B = out_ref.shape[0]
    T = xtm_ref.shape[0] // B
    H = HIDDEN

    # Lane masks (built once, reused across all unrolled loops).
    gate_lane = jax.lax.broadcasted_iota(jnp.int32, (B, G), 1)
    fwd_gate_mask = (gate_lane % (2 * H)) < H        # fwd lanes of every gate
    out_lane = jax.lax.broadcasted_iota(jnp.int32, (B, D), 1)
    fwd_half_mask = out_lane < H                     # fwd half of [h_f | h_b]

    def run_layer(in_flat, wih_ref, b_ref, whh_ref):
        # Hoisted input projection for BOTH directions in one matmul: the fwd
        # and bwd weights occupy disjoint (gate-interleaved) columns of wih.
        xproj_scr[...] = jnp.dot(in_flat, wih_ref[...],
                                 preferred_element_type=jnp.float32)

        # Pre-combine: at recurrence step t the fwd lanes need x[t]'s
        # projection and the bwd lanes need x[T-1-t]'s; the bias is added here
        # explicitly (time-invariant), so the recurrence does one VMEM read.
        bias = b_ref[...]
        for t in range(T):
            xcomb_scr[pl.ds(t * B, B), :] = jnp.where(
                fwd_gate_mask,
                xproj_scr[pl.ds(t * B, B), :],
                xproj_scr[pl.ds((T - 1 - t) * B, B), :]) + bias

        whh = whh_ref[...]                   # loop-invariant recurrent weights
        hc = jnp.zeros((B, D), jnp.float32)  # [h_fwd | h_bwd]
        cc = jnp.zeros((B, D), jnp.float32)  # [c_fwd | c_bwd]
        for t in range(T):                   # fully unrolled (T static)
            gates = xcomb_scr[pl.ds(t * B, B), :] + jnp.dot(
                hc, whh, preferred_element_type=jnp.float32)
            # gate columns are interleaved per gate -> 128-lane aligned slices
            i_g = jax.nn.sigmoid(gates[:, 0:D])
            f_g = jax.nn.sigmoid(gates[:, D:2 * D])
            g_g = jnp.tanh(gates[:, 2 * D:3 * D])
            o_g = jax.nn.sigmoid(gates[:, 3 * D:4 * D])
            cc = f_g * cc + i_g * g_g
            hc = o_g * jnp.tanh(cc)
            s_scr[pl.ds(t * B, B), :] = hc   # single 128-lane dense store

        # Re-time-order the backward half: the bwd state produced at loop step
        # T-1-t is the backward output for time t.  Both halves are already in
        # their final lane positions -> one per-lane select per step.
        for t in range(T):
            y_scr[pl.ds(t * B, B), :] = jnp.where(
                fwd_half_mask,
                s_scr[pl.ds(t * B, B), :],
                s_scr[pl.ds((T - 1 - t) * B, B), :])

    # LSTM layer 0 (input width 10) and layer 1 (input width 128)
    run_layer(xtm_ref[...], wih0_ref, b0_ref, whh0_ref)
    run_layer(y_scr[...], wih1_ref, b1_ref, whh1_ref)

    # ---- attention pooling over time + fc + class softmax (slab-wise) ----
    y = y_scr[...]                                               # (T*B, D)
    s_all = jnp.sum(y * wattn_ref[...], axis=-1, keepdims=True)  # (T*B, 1)
    z_all = jnp.dot(y, wfc_ref[...],
                    preferred_element_type=jnp.float32)          # (T*B, C)

    # Time softmax per batch row, fc folded into the weighted sum:
    #   ctx @ W_fc == sum_t softmax(s)_t * (y_t @ W_fc)
    m = s_all[0:B]
    for t in range(1, T):
        m = jnp.maximum(m, s_all[t * B:(t + 1) * B])
    denom = jnp.zeros((B, 1), jnp.float32)
    acc = jnp.zeros((B, NUM_CLASSES), jnp.float32)
    for t in range(T):
        e = jnp.exp(s_all[t * B:(t + 1) * B] - m)
        denom = denom + e
        acc = acc + e * z_all[t * B:(t + 1) * B]
    logits = acc / denom + bfc_ref[...]                          # (B, C)

    lm = jnp.max(logits, axis=-1, keepdims=True)
    le = jnp.exp(logits - lm)
    out_ref[...] = le / jnp.sum(le, axis=-1, keepdims=True)


def bilstm_predictor(packed, x):
    """x: (B, T, 10) batch-first, like nn.LSTM(batch_first=True). Returns (B, 10) probs."""
    B, T, I = x.shape
    # Wrapper-side layout plumbing: time-major flatten (free; 640 B at B=2).
    x_tm = jnp.swapaxes(x, 0, 1).reshape(T * B, I)
    l0, l1 = packed["layers"]
    args = (x_tm, *l0, *l1, packed["w_attn"], packed["w_fc"], packed["b_fc"])
    vmem = pl.BlockSpec(memory_space=pltpu.MemorySpace.VMEM)
    return pl.pallas_call(
        _fused_kernel,
        out_shape=jax.ShapeDtypeStruct((B, NUM_CLASSES), jnp.float32),
        in_specs=[vmem] * len(args),
        out_specs=vmem,
        scratch_shapes=[
            pltpu.VMEM((T * B, G), jnp.float32),  # fused fwd+bwd input projection
            pltpu.VMEM((T * B, G), jnp.float32),  # pre-combined per-step pre-activations
            pltpu.VMEM((T * B, D), jnp.float32),  # per-step [h_f|h_b] (loop order)
            pltpu.VMEM((T * B, D), jnp.float32),  # time-ordered bi-LSTM output
        ],
    )(*args)


# ---------------------------------------------------------------------------
# Parameters: raw (PyTorch-equivalent) + packing into the fused kernel layout
# ---------------------------------------------------------------------------
def init_raw_params(key):
    H = HIDDEN
    in_sizes = [INPUT_SIZE, D]
    k_lstm = 1.0 / (H ** 0.5)
    k_fc = 1.0 / (D ** 0.5)

    keys = list(jax.random.split(key, NUM_LAYERS * 2 * 4 + 3))
    ki = 0
    raw = {"lstm": []}
    for layer_idx in range(NUM_LAYERS):
        layer = []
        for _dirn in range(2):
            I = in_sizes[layer_idx]
            wih = jax.random.uniform(keys[ki], (I, 4 * H), jnp.float32, -k_lstm, k_lstm); ki += 1
            whh = jax.random.uniform(keys[ki], (H, 4 * H), jnp.float32, -k_lstm, k_lstm); ki += 1
            bih = jax.random.uniform(keys[ki], (4 * H,), jnp.float32, -k_lstm, k_lstm); ki += 1
            bhh = jax.random.uniform(keys[ki], (4 * H,), jnp.float32, -k_lstm, k_lstm); ki += 1
            layer.append((wih, whh, bih + bhh))        # (I,4H), (H,4H), (4H,)
        raw["lstm"].append(tuple(layer))

    raw["w_attn"] = jax.random.uniform(keys[ki], (1, D), jnp.float32, -k_fc, k_fc); ki += 1
    raw["w_fc"] = jax.random.uniform(keys[ki], (D, NUM_CLASSES), jnp.float32, -k_fc, k_fc); ki += 1
    raw["b_fc"] = jax.random.uniform(keys[ki], (1, NUM_CLASSES), jnp.float32, -k_fc, k_fc); ki += 1
    return raw


def pack_params(raw):
    """Pack per-direction weights into the gate-interleaved, direction-fused layout:
    columns [i_f i_b | f_f f_b | g_f g_b | o_f o_b] (64 each).  The fwd and bwd
    input weights occupy DISJOINT columns of one (I, 512) W_ih (single fused
    projection matmul); W_hh is block-diagonal over the [h_fwd | h_bwd] state."""
    H = HIDDEN
    layers = []
    for (fwd, bwd) in raw["lstm"]:
        wih_f, whh_f, b_f = fwd
        wih_b, whh_b, b_b = bwd
        I = wih_f.shape[0]
        wih_p = jnp.zeros((I, G), jnp.float32)
        whh_p = jnp.zeros((D, G), jnp.float32)
        b_p = jnp.zeros((G,), jnp.float32)
        for g in range(4):
            src = slice(g * H, (g + 1) * H)
            df = slice(g * 2 * H, g * 2 * H + H)        # fwd lanes of gate g
            db = slice(g * 2 * H + H, (g + 1) * 2 * H)  # bwd lanes of gate g
            wih_p = wih_p.at[:, df].set(wih_f[:, src])
            wih_p = wih_p.at[:, db].set(wih_b[:, src])
            whh_p = whh_p.at[0:H, df].set(whh_f[:, src])
            whh_p = whh_p.at[H:D, db].set(whh_b[:, src])
            b_p = b_p.at[df].set(b_f[src])
            b_p = b_p.at[db].set(b_b[src])
        layers.append((wih_p, b_p.reshape(1, G), whh_p))
    return {"layers": tuple(layers),
            "w_attn": raw["w_attn"], "w_fc": raw["w_fc"], "b_fc": raw["b_fc"]}


# ---------------------------------------------------------------------------
# Pure-JAX reference (mirrors the PyTorch module) for correctness checking
# ---------------------------------------------------------------------------
def reference_forward(raw, x):
    h = jnp.transpose(x, (1, 0, 2))                    # (T, B, I)
    T, B, _ = h.shape
    for (fwd, bwd) in raw["lstm"]:
        outs = []
        for dirn, (wih, whh, bias) in enumerate((fwd, bwd)):
            seq = h if dirn == 0 else h[::-1]

            def step(carry, x_t, wih=wih, whh=whh, bias=bias):
                hh, cc = carry
                gates = x_t @ wih + hh @ whh + bias
                i = jax.nn.sigmoid(gates[:, 0:HIDDEN])
                f = jax.nn.sigmoid(gates[:, HIDDEN:2 * HIDDEN])
                g = jnp.tanh(gates[:, 2 * HIDDEN:3 * HIDDEN])
                o = jax.nn.sigmoid(gates[:, 3 * HIDDEN:4 * HIDDEN])
                cc = f * cc + i * g
                hh = o * jnp.tanh(cc)
                return (hh, cc), hh

            init = (jnp.zeros((B, HIDDEN), jnp.float32),
                    jnp.zeros((B, HIDDEN), jnp.float32))
            _, ys = jax.lax.scan(step, init, seq)
            if dirn == 1:
                ys = ys[::-1]
            outs.append(ys)
        h = jnp.concatenate(outs, axis=-1)             # (T, B, 2H)
    hb = jnp.transpose(h, (1, 0, 2))                   # (B, T, 2H)
    scores = jnp.einsum('btd,d->bt', hb, raw["w_attn"][0])
    attn = jax.nn.softmax(scores, axis=1)
    ctx = jnp.einsum('bt,btd->bd', attn, hb)
    logits = ctx @ raw["w_fc"] + raw["b_fc"]
    return jax.nn.softmax(logits, axis=1)


if __name__ == "__main__":
    B, T = 2, 8
    x = jax.random.normal(jax.random.PRNGKey(0), (B, T, INPUT_SIZE), jnp.float32)
    raw = init_raw_params(jax.random.PRNGKey(1))
    packed = pack_params(raw)

    fwd_fn = jax.jit(bilstm_predictor)
    out = jax.block_until_ready(fwd_fn(packed, x))

    assert out.shape == (B, NUM_CLASSES), out.shape
    row_sums = jnp.sum(out, axis=1)
    assert bool(jnp.all(jnp.abs(row_sums - 1.0) < 1e-4)), row_sums

    ref = reference_forward(raw, x)
    assert bool(jnp.all(jnp.abs(out - ref) < 1e-4)), (out, ref)

    print("KERNEL_OK")
</pallas_src>

<mosaic_0001>
module attributes {stable_mosaic.version = 11 : i64} {
  func.func @_fused_kernel(%arg0: memref<16x10xf32, #tpu.memory_space<vmem>>, %arg1: memref<10x512xf32, #tpu.memory_space<vmem>>, %arg2: memref<1x512xf32, #tpu.memory_space<vmem>>, %arg3: memref<128x512xf32, #tpu.memory_space<vmem>>, %arg4: memref<128x512xf32, #tpu.memory_space<vmem>>, %arg5: memref<1x512xf32, #tpu.memory_space<vmem>>, %arg6: memref<128x512xf32, #tpu.memory_space<vmem>>, %arg7: memref<1x128xf32, #tpu.memory_space<vmem>>, %arg8: memref<128x10xf32, #tpu.memory_space<vmem>>, %arg9: memref<1x10xf32, #tpu.memory_space<vmem>>, %arg10: memref<2x10xf32, #tpu.memory_space<vmem>>, %arg11: memref<16x512xf32, #tpu.memory_space<vmem>>, %arg12: memref<16x512xf32, #tpu.memory_space<vmem>>, %arg13: memref<16x128xf32, #tpu.memory_space<vmem>>, %arg14: memref<16x128xf32, #tpu.memory_space<vmem>>) attributes {dimension_semantics = [], scalar_prefetch = 0 : i64, scratch_operands = 4 : i64, tpu.core_type = #tpu.core_type<tc>} {
    %0 = tpu.iota {dimensions = array<i32: 1>} : vector<2x512xi32>
    %c128_i32 = arith.constant 128 : i32
    %c0_i32 = arith.constant 0 : i32
    %1 = arith.cmpi eq, %c128_i32, %c0_i32 : i32
    %c1_i32 = arith.constant 1 : i32
    %2 = arith.select %1, %c1_i32, %c128_i32 : i32
    %3 = vector.broadcast %2 : i32 to vector<2x512xi32>
    %4 = arith.remsi %0, %3 : vector<2x512xi32>
    %c0_i32_0 = arith.constant 0 : i32
    %5 = vector.broadcast %c0_i32_0 : i32 to vector<2x512xi32>
    %6 = arith.cmpi ne, %4, %5 : vector<2x512xi32>
    %c0_i32_1 = arith.constant 0 : i32
    %7 = vector.broadcast %c0_i32_1 : i32 to vector<2x512xi32>
    %8 = arith.cmpi slt, %4, %7 : vector<2x512xi32>
    %c0_i32_2 = arith.constant 0 : i32
    %9 = arith.cmpi slt, %2, %c0_i32_2 : i32
    %10 = vector.broadcast %9 : i1 to vector<2x512xi1>
    %11 = vector.broadcast %10 : vector<2x512xi1> to vector<2x512xi1>
    %12 = arith.xori %8, %11 : vector<2x512xi1>
    %13 = arith.andi %12, %6 : vector<2x512xi1>
    %14 = vector.broadcast %2 : i32 to vector<2x512xi32>
    %15 = arith.addi %4, %14 : vector<2x512xi32>
    %16 = arith.select %13, %15, %4 : vector<2x512xi1>, vector<2x512xi32>
    %c64_i32 = arith.constant 64 : i32
    %17 = vector.broadcast %c64_i32 : i32 to vector<2x512xi32>
    %18 = arith.cmpi slt, %16, %17 : vector<2x512xi32>
    %19 = tpu.iota {dimensions = array<i32: 1>} : vector<2x128xi32>
    %c64_i32_3 = arith.constant 64 : i32
    %20 = vector.broadcast %c64_i32_3 : i32 to vector<2x128xi32>
    %21 = arith.cmpi slt, %19, %20 : vector<2x128xi32>
    %c0 = arith.constant 0 : index
    %c0_4 = arith.constant 0 : index
    %22 = vector.load %arg0[%c0, %c0_4] : memref<16x10xf32, #tpu.memory_space<vmem>>, vector<16x10xf32>
    %c0_5 = arith.constant 0 : index
    %c0_6 = arith.constant 0 : index
    %23 = vector.load %arg1[%c0_5, %c0_6] : memref<10x512xf32, #tpu.memory_space<vmem>>, vector<10x512xf32>
    %cst = arith.constant dense<0.000000e+00> : vector<16x512xf32>
    %24 = tpu.matmul %22, %23, %cst {dimension_numbers = #tpu.dot_dimension_numbers<[1], [0], [0], [1], [0, 0, 1, 1], [], []>} : vector<16x10xf32>, vector<10x512xf32>, vector<16x512xf32> -> vector<16x512xf32>
    %c0_7 = arith.constant 0 : index
    %c0_8 = arith.constant 0 : index
    %25 = vector.load %arg11[%c0_7, %c0_8] : memref<16x512xf32, #tpu.memory_space<vmem>>, vector<16x512xf32>
    tpu.vector_store %arg11[%c0_7, %c0_8], %24 {strides = array<i32>} : memref<16x512xf32, #tpu.memory_space<vmem>>, vector<16x512xf32>,
    %c0_9 = arith.constant 0 : index
    %c0_10 = arith.constant 0 : index
    %26 = vector.load %arg2[%c0_9, %c0_10] : memref<1x512xf32, #tpu.memory_space<vmem>>, vector<1x512xf32>
    %c0_11 = arith.constant 0 : index
    %c0_12 = arith.constant 0 : index
    %27 = vector.load %arg11[%c0_11, %c0_12] : memref<16x512xf32, #tpu.memory_space<vmem>>, vector<2x512xf32>
    %c14 = arith.constant 14 : index
    %c0_13 = arith.constant 0 : index
    %28 = vector.load %arg11[%c14, %c0_13] : memref<16x512xf32, #tpu.memory_space<vmem>>, vector<2x512xf32>
    %29 = arith.select %18, %27, %28 : vector<2x512xi1>, vector<2x512xf32>
    %30 = vector.broadcast %26 : vector<1x512xf32> to vector<2x512xf32>
    %31 = arith.addf %29, %30 : vector<2x512xf32>
    %c0_14 = arith.constant 0 : index
    %c0_15 = arith.constant 0 : index
    %32 = vector.load %arg12[%c0_14, %c0_15] : memref<16x512xf32, #tpu.memory_space<vmem>>, vector<2x512xf32>
    tpu.vector_store %arg12[%c0_14, %c0_15], %31 {strides = array<i32>} : memref<16x512xf32, #tpu.memory_space<vmem>>, vector<2x512xf32>,
    %c2 = arith.constant 2 : index
    %c0_16 = arith.constant 0 : index
    %33 = vector.load %arg11[%c2, %c0_16] : memref<16x512xf32, #tpu.memory_space<vmem>>, vector<2x512xf32>
    %c12 = arith.constant 12 : index
    %c0_17 = arith.constant 0 : index
    %34 = vector.load %arg11[%c12, %c0_17] : memref<16x512xf32, #tpu.memory_space<vmem>>, vector<2x512xf32>
    %35 = arith.select %18, %33, %34 : vector<2x512xi1>, vector<2x512xf32>
    %36 = vector.broadcast %26 : vector<1x512xf32> to vector<2x512xf32>
    %37 = arith.addf %35, %36 : vector<2x512xf32>
    %c2_18 = arith.constant 2 : index
    %c0_19 = arith.constant 0 : index
    %38 = vector.load %arg12[%c2_18, %c0_19] : memref<16x512xf32, #tpu.memory_space<vmem>>, vector<2x512xf32>
    tpu.vector_store %arg12[%c2_18, %c0_19], %37 {strides = array<i32>} : memref<16x512xf32, #tpu.memory_space<vmem>>, vector<2x512xf32>,
    %c4 = arith.constant 4 : index
    %c0_20 = arith.constant 0 : index
    %39 = vector.load %arg11[%c4, %c0_20] : memref<16x512xf32, #tpu.memory_space<vmem>>, vector<2x512xf32>
    %c10 = arith.constant 10 : index
    %c0_21 = arith.constant 0 : index
    %40 = vector.load %arg11[%c10, %c0_21] : memref<16x512xf32, #tpu.memory_space<vmem>>, vector<2x512xf32>
    %41 = arith.select %18, %39, %40 : vector<2x512xi1>, vector<2x512xf32>
    %42 = vector.broadcast %26 : vector<1x512xf32> to vector<2x512xf32>
    %43 = arith.addf %41, %42 : vector<2x512xf32>
    %c4_22 = arith.constant 4 : index
    %c0_23 = arith.constant 0 : index
    %44 = vector.load %arg12[%c4_22, %c0_23] : memref<16x512xf32, #tpu.memory_space<vmem>>, vector<2x512xf32>
    tpu.vector_store %arg12[%c4_22, %c0_23], %43 {strides = array<i32>} : memref<16x512xf32, #tpu.memory_space<vmem>>, vector<2x512xf32>,
    %c6 = arith.constant 6 : index
    %c0_24 = arith.constant 0 : index
    %45 = vector.load %arg11[%c6, %c0_24] : memref<16x512xf32, #tpu.memory_space<vmem>>, vector<2x512xf32>
    %c8 = arith.constant 8 : index
    %c0_25 = arith.constant 0 : index
    %46 = vector.load %arg11[%c8, %c0_25] : memref<16x512xf32, #tpu.memory_space<vmem>>, vector<2x512xf32>
    %47 = arith.select %18, %45, %46 : vector<2x512xi1>, vector<2x512xf32>
    %48 = vector.broadcast %26 : vector<1x512xf32> to vector<2x512xf32>
    %49 = arith.addf %47, %48 : vector<2x512xf32>
    %c6_26 = arith.constant 6 : index
    %c0_27 = arith.constant 0 : index
    %50 = vector.load %arg12[%c6_26, %c0_27] : memref<16x512xf32, #tpu.memory_space<vmem>>, vector<2x512xf32>
    tpu.vector_store %arg12[%c6_26, %c0_27], %49 {strides = array<i32>} : memref<16x512xf32, #tpu.memory_space<vmem>>, vector<2x512xf32>,
    %c8_28 = arith.constant 8 : index
    %c0_29 = arith.constant 0 : index
    %51 = vector.load %arg11[%c8_28, %c0_29] : memref<16x512xf32, #tpu.memory_space<vmem>>, vector<2x512xf32>
    %c6_30 = arith.constant 6 : index
    %c0_31 = arith.constant 0 : index
    %52 = vector.load %arg11[%c6_30, %c0_31] : memref<16x512xf32, #tpu.memory_space<vmem>>, vector<2x512xf32>
    %53 = arith.select %18, %51, %52 : vector<2x512xi1>, vector<2x512xf32>
    %54 = vector.broadcast %26 : vector<1x512xf32> to vector<2x512xf32>
    %55 = arith.addf %53, %54 : vector<2x512xf32>
    %c8_32 = arith.constant 8 : index
    %c0_33 = arith.constant 0 : index
    %56 = vector.load %arg12[%c8_32, %c0_33] : memref<16x512xf32, #tpu.memory_space<vmem>>, vector<2x512xf32>
    tpu.vector_store %arg12[%c8_32, %c0_33], %55 {strides = array<i32>} : memref<16x512xf32, #tpu.memory_space<vmem>>, vector<2x512xf32>,
    %c10_34 = arith.constant 10 : index
    %c0_35 = arith.constant 0 : index
    %57 = vector.load %arg11[%c10_34, %c0_35] : memref<16x512xf32, #tpu.memory_space<vmem>>, vector<2x512xf32>
    %c4_36 = arith.constant 4 : index
    %c0_37 = arith.constant 0 : index
    %58 = vector.load %arg11[%c4_36, %c0_37] : memref<16x512xf32, #tpu.memory_space<vmem>>, vector<2x512xf32>
    %59 = arith.select %18, %57, %58 : vector<2x512xi1>, vector<2x512xf32>
    %60 = vector.broadcast %26 : vector<1x512xf32> to vector<2x512xf32>
    %61 = arith.addf %59, %60 : vector<2x512xf32>
    %c10_38 = arith.constant 10 : index
    %c0_39 = arith.constant 0 : index
    %62 = vector.load %arg12[%c10_38, %c0_39] : memref<16x512xf32, #tpu.memory_space<vmem>>, vector<2x512xf32>
    tpu.vector_store %arg12[%c10_38, %c0_39], %61 {strides = array<i32>} : memref<16x512xf32, #tpu.memory_space<vmem>>, vector<2x512xf32>,
    %c12_40 = arith.constant 12 : index
    %c0_41 = arith.constant 0 : index
    %63 = vector.load %arg11[%c12_40, %c0_41] : memref<16x512xf32, #tpu.memory_space<vmem>>, vector<2x512xf32>
    %c2_42 = arith.constant 2 : index
    %c0_43 = arith.constant 0 : index
    %64 = vector.load %arg11[%c2_42, %c0_43] : memref<16x512xf32, #tpu.memory_space<vmem>>, vector<2x512xf32>
    %65 = arith.select %18, %63, %64 : vector<2x512xi1>, vector<2x512xf32>
    %66 = vector.broadcast %26 : vector<1x512xf32> to vector<2x512xf32>
    %67 = arith.addf %65, %66 : vector<2x512xf32>
    %c12_44 = arith.constant 12 : index
    %c0_45 = arith.constant 0 : index
    %68 = vector.load %arg12[%c12_44, %c0_45] : memref<16x512xf32, #tpu.memory_space<vmem>>, vector<2x512xf32>
    tpu.vector_store %arg12[%c12_44, %c0_45], %67 {strides = array<i32>} : memref<16x512xf32, #tpu.memory_space<vmem>>, vector<2x512xf32>,
    %c14_46 = arith.constant 14 : index
    %c0_47 = arith.constant 0 : index
    %69 = vector.load %arg11[%c14_46, %c0_47] : memref<16x512xf32, #tpu.memory_space<vmem>>, vector<2x512xf32>
    %c0_48 = arith.constant 0 : index
    %c0_49 = arith.constant 0 : index
    %70 = vector.load %arg11[%c0_48, %c0_49] : memref<16x512xf32, #tpu.memory_space<vmem>>, vector<2x512xf32>
    %71 = arith.select %18, %69, %70 : vector<2x512xi1>, vector<2x512xf32>
    %72 = vector.broadcast %26 : vector<1x512xf32> to vector<2x512xf32>
    %73 = arith.addf %71, %72 : vector<2x512xf32>
    %c14_50 = arith.constant 14 : index
    %c0_51 = arith.constant 0 : index
    %74 = vector.load %arg12[%c14_50, %c0_51] : memref<16x512xf32, #tpu.memory_space<vmem>>, vector<2x512xf32>
    tpu.vector_store %arg12[%c14_50, %c0_51], %73 {strides = array<i32>} : memref<16x512xf32, #tpu.memory_space<vmem>>, vector<2x512xf32>,
    %c0_52 = arith.constant 0 : index
    %c0_53 = arith.constant 0 : index
    %75 = vector.load %arg3[%c0_52, %c0_53] : memref<128x512xf32, #tpu.memory_space<vmem>>, vector<128x512xf32>
    %cst_54 = arith.constant 0.000000e+00 : f32
    %76 = vector.broadcast %cst_54 : f32 to vector<2x128xf32>
    %cst_55 = arith.constant 0.000000e+00 : f32
    %77 = vector.broadcast %cst_55 : f32 to vector<2x128xf32>
    %c0_56 = arith.constant 0 : index
    %c0_57 = arith.constant 0 : index
    %78 = vector.load %arg12[%c0_56, %c0_57] : memref<16x512xf32, #tpu.memory_space<vmem>>, vector<2x512xf32>
    %cst_58 = arith.constant dense<0.000000e+00> : vector<2x512xf32>
    %79 = tpu.matmul %76, %75, %cst_58 {dimension_numbers = #tpu.dot_dimension_numbers<[1], [0], [0], [1], [0, 0, 1, 1], [], []>} : vector<2x128xf32>, vector<128x512xf32>, vector<2x512xf32> -> vector<2x512xf32>
    %80 = arith.addf %78, %79 : vector<2x512xf32>
    %81 = vector.extract_strided_slice %80 {offsets = [0, 0], sizes = [2, 128], strides = [1, 1]} : vector<2x512xf32> to vector<2x128xf32>
    %82 = arith.negf %81 : vector<2x128xf32>
    %83 = math.exp %82 : vector<2x128xf32>
    %cst_59 = arith.constant 1.000000e+00 : f32
    %84 = vector.broadcast %cst_59 : f32 to vector<2x128xf32>
    %85 = arith.addf %84, %83 : vector<2x128xf32>
    %86 = arith.divf %84, %85 : vector<2x128xf32>
    %87 = vector.extract_strided_slice %80 {offsets = [0, 128], sizes = [2, 128], strides = [1, 1]} : vector<2x512xf32> to vector<2x128xf32>
    %88 = arith.negf %87 : vector<2x128xf32>
    %89 = math.exp %88 : vector<2x128xf32>
    %cst_60 = arith.constant 1.000000e+00 : f32
    %90 = vector.broadcast %cst_60 : f32 to vector<2x128xf32>
    %91 = arith.addf %90, %89 : vector<2x128xf32>
    %92 = arith.divf %90, %91 : vector<2x128xf32>
    %93 = vector.extract_strided_slice %80 {offsets = [0, 256], sizes = [2, 128], strides = [1, 1]} : vector<2x512xf32> to vector<2x128xf32>
    %94 = math.tanh %93 : vector<2x128xf32>
    %95 = vector.extract_strided_slice %80 {offsets = [0, 384], sizes = [2, 128], strides = [1, 1]} : vector<2x512xf32> to vector<2x128xf32>
    %96 = arith.negf %95 : vector<2x128xf32>
    %97 = math.exp %96 : vector<2x128xf32>
    %cst_61 = arith.constant 1.000000e+00 : f32
    %98 = vector.broadcast %cst_61 : f32 to vector<2x128xf32>
    %99 = arith.addf %98, %97 : vector<2x128xf32>
    %100 = arith.divf %98, %99 : vector<2x128xf32>
    %101 = arith.mulf %92, %77 : vector<2x128xf32>
    %102 = arith.mulf %86, %94 : vector<2x128xf32>
    %103 = arith.addf %101, %102 : vector<2x128xf32>
    %104 = math.tanh %103 : vector<2x128xf32>
    %105 = arith.mulf %100, %104 : vector<2x128xf32>
    %c0_62 = arith.constant 0 : index
    %c0_63 = arith.constant 0 : index
    %106 = vector.load %arg13[%c0_62, %c0_63] : memref<16x128xf32, #tpu.memory_space<vmem>>, vector<2x128xf32>
    tpu.vector_store %arg13[%c0_62, %c0_63], %105 {strides = array<i32>} : memref<16x128xf32, #tpu.memory_space<vmem>>, vector<2x128xf32>,
    %c2_64 = arith.constant 2 : index
    %c0_65 = arith.constant 0 : index
    %107 = vector.load %arg12[%c2_64, %c0_65] : memref<16x512xf32, #tpu.memory_space<vmem>>, vector<2x512xf32>
    %cst_66 = arith.constant dense<0.000000e+00> : vector<2x512xf32>
    %108 = tpu.matmul %105, %75, %cst_66 {dimension_numbers = #tpu.dot_dimension_numbers<[1], [0], [0], [1], [0, 0, 1, 1], [], []>} : vector<2x128xf32>, vector<128x512xf32>, vector<2x512xf32> -> vector<2x512xf32>
    %109 = arith.addf %107, %108 : vector<2x512xf32>
    %110 = vector.extract_strided_slice %109 {offsets = [0, 0], sizes = [2, 128], strides = [1, 1]} : vector<2x512xf32> to vector<2x128xf32>
    %111 = arith.negf %110 : vector<2x128xf32>
    %112 = math.exp %111 : vector<2x128xf32>
    %cst_67 = arith.constant 1.000000e+00 : f32
    %113 = vector.broadcast %cst_67 : f32 to vector<2x128xf32>
    %114 = arith.addf %113, %112 : vector<2x128xf32>
    %115 = arith.divf %113, %114 : vector<2x128xf32>
    %116 = vector.extract_strided_slice %109 {offsets = [0, 128], sizes = [2, 128], strides = [1, 1]} : vector<2x512xf32> to vector<2x128xf32>
    %117 = arith.negf %116 : vector<2x128xf32>
    %118 = math.exp %117 : vector<2x128xf32>
    %cst_68 = arith.constant 1.000000e+00 : f32
    %119 = vector.broadcast %cst_68 : f32 to vector<2x128xf32>
    %120 = arith.addf %119, %118 : vector<2x128xf32>
    %121 = arith.divf %119, %120 : vector<2x128xf32>
    %122 = vector.extract_strided_slice %109 {offsets = [0, 256], sizes = [2, 128], strides = [1, 1]} : vector<2x512xf32> to vector<2x128xf32>
    %123 = math.tanh %122 : vector<2x128xf32>
    %124 = vector.extract_strided_slice %109 {offsets = [0, 384], sizes = [2, 128], strides = [1, 1]} : vector<2x512xf32> to vector<2x128xf32>
    %125 = arith.negf %124 : vector<2x128xf32>
    %126 = math.exp %125 : vector<2x128xf32>
    %cst_69 = arith.constant 1.000000e+00 : f32
    %127 = vector.broadcast %cst_69 : f32 to vector<2x128xf32>
    %128 = arith.addf %127, %126 : vector<2x128xf32>
    %129 = arith.divf %127, %128 : vector<2x128xf32>
    %130 = arith.mulf %121, %103 : vector<2x128xf32>
    %131 = arith.mulf %115, %123 : vector<2x128xf32>
    %132 = arith.addf %130, %131 : vector<2x128xf32>
    %133 = math.tanh %132 : vector<2x128xf32>
    %134 = arith.mulf %129, %133 : vector<2x128xf32>
    %c2_70 = arith.constant 2 : index
    %c0_71 = arith.constant 0 : index
    %135 = vector.load %arg13[%c2_70, %c0_71] : memref<16x128xf32, #tpu.memory_space<vmem>>, vector<2x128xf32>
    tpu.vector_store %arg13[%c2_70, %c0_71], %134 {strides = array<i32>} : memref<16x128xf32, #tpu.memory_space<vmem>>, vector<2x128xf32>,
    %c4_72 = arith.constant 4 : index
    %c0_73 = arith.constant 0 : index
    %136 = vector.load %arg12[%c4_72, %c0_73] : memref<16x512xf32, #tpu.memory_space<vmem>>, vector<2x512xf32>
    %cst_74 = arith.constant dense<0.000000e+00> : vector<2x512xf32>
    %137 = tpu.matmul %134, %75, %cst_74 {dimension_numbers = #tpu.dot_dimension_numbers<[1], [0], [0], [1], [0, 0, 1, 1], [], []>} : vector<2x128xf32>, vector<128x512xf32>, vector<2x512xf32> -> vector<2x512xf32>
    %138 = arith.addf %136, %137 : vector<2x512xf32>
    %139 = vector.extract_strided_slice %138 {offsets = [0, 0], sizes = [2, 128], strides = [1, 1]} : vector<2x512xf32> to vector<2x128xf32>
    %140 = arith.negf %139 : vector<2x128xf32>
    %141 = math.exp %140 : vector<2x128xf32>
    %cst_75 = arith.constant 1.000000e+00 : f32
    %142 = vector.broadcast %cst_75 : f32 to vector<2x128xf32>
    %143 = arith.addf %142, %141 : vector<2x128xf32>
    %144 = arith.divf %142, %143 : vector<2x128xf32>
    %145 = vector.extract_strided_slice %138 {offsets = [0, 128], sizes = [2, 128], strides = [1, 1]} : vector<2x512xf32> to vector<2x128xf32>
    %146 = arith.negf %145 : vector<2x128xf32>
    %147 = math.exp %146 : vector<2x128xf32>
    %cst_76 = arith.constant 1.000000e+00 : f32
    %148 = vector.broadcast %cst_76 : f32 to vector<2x128xf32>
    %149 = arith.addf %148, %147 : vector<2x128xf32>
    %150 = arith.divf %148, %149 : vector<2x128xf32>
    %151 = vector.extract_strided_slice %138 {offsets = [0, 256], sizes = [2, 128], strides = [1, 1]} : vector<2x512xf32> to vector<2x128xf32>
    %152 = math.tanh %151 : vector<2x128xf32>
    %153 = vector.extract_strided_slice %138 {offsets = [0, 384], sizes = [2, 128], strides = [1, 1]} : vector<2x512xf32> to vector<2x128xf32>
    %154 = arith.negf %153 : vector<2x128xf32>
    %155 = math.exp %154 : vector<2x128xf32>
    %cst_77 = arith.constant 1.000000e+00 : f32
    %156 = vector.broadcast %cst_77 : f32 to vector<2x128xf32>
    %157 = arith.addf %156, %155 : vector<2x128xf32>
    %158 = arith.divf %156, %157 : vector<2x128xf32>
    %159 = arith.mulf %150, %132 : vector<2x128xf32>
    %160 = arith.mulf %144, %152 : vector<2x128xf32>
    %161 = arith.addf %159, %160 : vector<2x128xf32>
    %162 = math.tanh %161 : vector<2x128xf32>
    %163 = arith.mulf %158, %162 : vector<2x128xf32>
    %c4_78 = arith.constant 4 : index
    %c0_79 = arith.constant 0 : index
    %164 = vector.load %arg13[%c4_78, %c0_79] : memref<16x128xf32, #tpu.memory_space<vmem>>, vector<2x128xf32>
    tpu.vector_store %arg13[%c4_78, %c0_79], %163 {strides = array<i32>} : memref<16x128xf32, #tpu.memory_space<vmem>>, vector<2x128xf32>,
    %c6_80 = arith.constant 6 : index
    %c0_81 = arith.constant 0 : index
    %165 = vector.load %arg12[%c6_80, %c0_81] : memref<16x512xf32, #tpu.memory_space<vmem>>, vector<2x512xf32>
    %cst_82 = arith.constant dense<0.000000e+00> : vector<2x512xf32>
    %166 = tpu.matmul %163, %75, %cst_82 {dimension_numbers = #tpu.dot_dimension_numbers<[1], [0], [0], [1], [0, 0, 1, 1], [], []>} : vector<2x128xf32>, vector<128x512xf32>, vector<2x512xf32> -> vector<2x512xf32>
    %167 = arith.addf %165, %166 : vector<2x512xf32>
    %168 = vector.extract_strided_slice %167 {offsets = [0, 0], sizes = [2, 128], strides = [1, 1]} : vector<2x512xf32> to vector<2x128xf32>
    %169 = arith.negf %168 : vector<2x128xf32>
    %170 = math.exp %169 : vector<2x128xf32>
    %cst_83 = arith.constant 1.000000e+00 : f32
    %171 = vector.broadcast %cst_83 : f32 to vector<2x128xf32>
    %172 = arith.addf %171, %170 : vector<2x128xf32>
    %173 = arith.divf %171, %172 : vector<2x128xf32>
    %174 = vector.extract_strided_slice %167 {offsets = [0, 128], sizes = [2, 128], strides = [1, 1]} : vector<2x512xf32> to vector<2x128xf32>
    %175 = arith.negf %174 : vector<2x128xf32>
    %176 = math.exp %175 : vector<2x128xf32>
    %cst_84 = arith.constant 1.000000e+00 : f32
    %177 = vector.broadcast %cst_84 : f32 to vector<2x128xf32>
    %178 = arith.addf %177, %176 : vector<2x128xf32>
    %179 = arith.divf %177, %178 : vector<2x128xf32>
    %180 = vector.extract_strided_slice %167 {offsets = [0, 256], sizes = [2, 128], strides = [1, 1]} : vector<2x512xf32> to vector<2x128xf32>
    %181 = math.tanh %180 : vector<2x128xf32>
    %182 = vector.extract_strided_slice %167 {offsets = [0, 384], sizes = [2, 128], strides = [1, 1]} : vector<2x512xf32> to vector<2x128xf32>
    %183 = arith.negf %182 : vector<2x128xf32>
    %184 = math.exp %183 : vector<2x128xf32>
    %cst_85 = arith.constant 1.000000e+00 : f32
    %185 = vector.broadcast %cst_85 : f32 to vector<2x128xf32>
    %186 = arith.addf %185, %184 : vector<2x128xf32>
    %187 = arith.divf %185, %186 : vector<2x128xf32>
    %188 = arith.mulf %179, %161 : vector<2x128xf32>
    %189 = arith.mulf %173, %181 : vector<2x128xf32>
    %190 = arith.addf %188, %189 : vector<2x128xf32>
    %191 = math.tanh %190 : vector<2x128xf32>
    %192 = arith.mulf %187, %191 : vector<2x128xf32>
    %c6_86 = arith.constant 6 : index
    %c0_87 = arith.constant 0 : index
    %193 = vector.load %arg13[%c6_86, %c0_87] : memref<16x128xf32, #tpu.memory_space<vmem>>, vector<2x128xf32>
    tpu.vector_store %arg13[%c6_86, %c0_87], %192 {strides = array<i32>} : memref<16x128xf32, #tpu.memory_space<vmem>>, vector<2x128xf32>,
    %c8_88 = arith.constant 8 : index
    %c0_89 = arith.constant 0 : index
    %194 = vector.load %arg12[%c8_88, %c0_89] : memref<16x512xf32, #tpu.memory_space<vmem>>, vector<2x512xf32>
    %cst_90 = arith.constant dense<0.000000e+00> : vector<2x512xf32>
    %195 = tpu.matmul %192, %75, %cst_90 {dimension_numbers = #tpu.dot_dimension_numbers<[1], [0], [0], [1], [0, 0, 1, 1], [], []>} : vector<2x128xf32>, vector<128x512xf32>, vector<2x512xf32> -> vector<2x512xf32>
    %196 = arith.addf %194, %195 : vector<2x512xf32>
    %197 = vector.extract_strided_slice %196 {offsets = [0, 0], sizes = [2, 128], strides = [1, 1]} : vector<2x512xf32> to vector<2x128xf32>
    %198 = arith.negf %197 : vector<2x128xf32>
    %199 = math.exp %198 : vector<2x128xf32>
    %cst_91 = arith.constant 1.000000e+00 : f32
    %200 = vector.broadcast %cst_91 : f32 to vector<2x128xf32>
    %201 = arith.addf %200, %199 : vector<2x128xf32>
    %202 = arith.divf %200, %201 : vector<2x128xf32>
    %203 = vector.extract_strided_slice %196 {offsets = [0, 128], sizes = [2, 128], strides = [1, 1]} : vector<2x512xf32> to vector<2x128xf32>
    %204 = arith.negf %203 : vector<2x128xf32>
    %205 = math.exp %204 : vector<2x128xf32>
    %cst_92 = arith.constant 1.000000e+00 : f32
    %206 = vector.broadcast %cst_92 : f32 to vector<2x128xf32>
    %207 = arith.addf %206, %205 : vector<2x128xf32>
    %208 = arith.divf %206, %207 : vector<2x128xf32>
    %209 = vector.extract_strided_slice %196 {offsets = [0, 256], sizes = [2, 128], strides = [1, 1]} : vector<2x512xf32> to vector<2x128xf32>
    %210 = math.tanh %209 : vector<2x128xf32>
    %211 = vector.extract_strided_slice %196 {offsets = [0, 384], sizes = [2, 128], strides = [1, 1]} : vector<2x512xf32> to vector<2x128xf32>
    %212 = arith.negf %211 : vector<2x128xf32>
    %213 = math.exp %212 : vector<2x128xf32>
    %cst_93 = arith.constant 1.000000e+00 : f32
    %214 = vector.broadcast %cst_93 : f32 to vector<2x128xf32>
    %215 = arith.addf %214, %213 : vector<2x128xf32>
    %216 = arith.divf %214, %215 : vector<2x128xf32>
    %217 = arith.mulf %208, %190 : vector<2x128xf32>
    %218 = arith.mulf %202, %210 : vector<2x128xf32>
    %219 = arith.addf %217, %218 : vector<2x128xf32>
    %220 = math.tanh %219 : vector<2x128xf32>
    %221 = arith.mulf %216, %220 : vector<2x128xf32>
    %c8_94 = arith.constant 8 : index
    %c0_95 = arith.constant 0 : index
    %222 = vector.load %arg13[%c8_94, %c0_95] : memref<16x128xf32, #tpu.memory_space<vmem>>, vector<2x128xf32>
    tpu.vector_store %arg13[%c8_94, %c0_95], %221 {strides = array<i32>} : memref<16x128xf32, #tpu.memory_space<vmem>>, vector<2x128xf32>,
    %c10_96 = arith.constant 10 : index
    %c0_97 = arith.constant 0 : index
    %223 = vector.load %arg12[%c10_96, %c0_97] : memref<16x512xf32, #tpu.memory_space<vmem>>, vector<2x512xf32>
    %cst_98 = arith.constant dense<0.000000e+00> : vector<2x512xf32>
    %224 = tpu.matmul %221, %75, %cst_98 {dimension_numbers = #tpu.dot_dimension_numbers<[1], [0], [0], [1], [0, 0, 1, 1], [], []>} : vector<2x128xf32>, vector<128x512xf32>, vector<2x512xf32> -> vector<2x512xf32>
    %225 = arith.addf %223, %224 : vector<2x512xf32>
    %226 = vector.extract_strided_slice %225 {offsets = [0, 0], sizes = [2, 128], strides = [1, 1]} : vector<2x512xf32> to vector<2x128xf32>
    %227 = arith.negf %226 : vector<2x128xf32>
    %228 = math.exp %227 : vector<2x128xf32>
    %cst_99 = arith.constant 1.000000e+00 : f32
    %229 = vector.broadcast %cst_99 : f32 to vector<2x128xf32>
    %230 = arith.addf %229, %228 : vector<2x128xf32>
    %231 = arith.divf %229, %230 : vector<2x128xf32>
    %232 = vector.extract_strided_slice %225 {offsets = [0, 128], sizes = [2, 128], strides = [1, 1]} : vector<2x512xf32> to vector<2x128xf32>
    %233 = arith.negf %232 : vector<2x128xf32>
    %234 = math.exp %233 : vector<2x128xf32>
    %cst_100 = arith.constant 1.000000e+00 : f32
    %235 = vector.broadcast %cst_100 : f32 to vector<2x128xf32>
    %236 = arith.addf %235, %234 : vector<2x128xf32>
    %237 = arith.divf %235, %236 : vector<2x128xf32>
    %238 = vector.extract_strided_slice %225 {offsets = [0, 256], sizes = [2, 128], strides = [1, 1]} : vector<2x512xf32> to vector<2x128xf32>
    %239 = math.tanh %238 : vector<2x128xf32>
    %240 = vector.extract_strided_slice %225 {offsets = [0, 384], sizes = [2, 128], strides = [1, 1]} : vector<2x512xf32> to vector<2x128xf32>
    %241 = arith.negf %240 : vector<2x128xf32>
    %242 = math.exp %241 : vector<2x128xf32>
    %cst_101 = arith.constant 1.000000e+00 : f32
    %243 = vector.broadcast %cst_101 : f32 to vector<2x128xf32>
    %244 = arith.addf %243, %242 : vector<2x128xf32>
    %245 = arith.divf %243, %244 : vector<2x128xf32>
    %246 = arith.mulf %237, %219 : vector<2x128xf32>
    %247 = arith.mulf %231, %239 : vector<2x128xf32>
    %248 = arith.addf %246, %247 : vector<2x128xf32>
    %249 = math.tanh %248 : vector<2x128xf32>
    %250 = arith.mulf %245, %249 : vector<2x128xf32>
    %c10_102 = arith.constant 10 : index
    %c0_103 = arith.constant 0 : index
    %251 = vector.load %arg13[%c10_102, %c0_103] : memref<16x128xf32, #tpu.memory_space<vmem>>, vector<2x128xf32>
    tpu.vector_store %arg13[%c10_102, %c0_103], %250 {strides = array<i32>} : memref<16x128xf32, #tpu.memory_space<vmem>>, vector<2x128xf32>,
    %c12_104 = arith.constant 12 : index
    %c0_105 = arith.constant 0 : index
    %252 = vector.load %arg12[%c12_104, %c0_105] : memref<16x512xf32, #tpu.memory_space<vmem>>, vector<2x512xf32>
    %cst_106 = arith.constant dense<0.000000e+00> : vector<2x512xf32>
    %253 = tpu.matmul %250, %75, %cst_106 {dimension_numbers = #tpu.dot_dimension_numbers<[1], [0], [0], [1], [0, 0, 1, 1], [], []>} : vector<2x128xf32>, vector<128x512xf32>, vector<2x512xf32> -> vector<2x512xf32>
    %254 = arith.addf %252, %253 : vector<2x512xf32>
    %255 = vector.extract_strided_slice %254 {offsets = [0, 0], sizes = [2, 128], strides = [1, 1]} : vector<2x512xf32> to vector<2x128xf32>
    %256 = arith.negf %255 : vector<2x128xf32>
    %257 = math.exp %256 : vector<2x128xf32>
    %cst_107 = arith.constant 1.000000e+00 : f32
    %258 = vector.broadcast %cst_107 : f32 to vector<2x128xf32>
    %259 = arith.addf %258, %257 : vector<2x128xf32>
    %260 = arith.divf %258, %259 : vector<2x128xf32>
    %261 = vector.extract_strided_slice %254 {offsets = [0, 128], sizes = [2, 128], strides = [1, 1]} : vector<2x512xf32> to vector<2x128xf32>
    %262 = arith.negf %261 : vector<2x128xf32>
    %263 = math.exp %262 : vector<2x128xf32>
    %cst_108 = arith.constant 1.000000e+00 : f32
    %264 = vector.broadcast %cst_108 : f32 to vector<2x128xf32>
    %265 = arith.addf %264, %263 : vector<2x128xf32>
    %266 = arith.divf %264, %265 : vector<2x128xf32>
    %267 = vector.extract_strided_slice %254 {offsets = [0, 256], sizes = [2, 128], strides = [1, 1]} : vector<2x512xf32> to vector<2x128xf32>
    %268 = math.tanh %267 : vector<2x128xf32>
    %269 = vector.extract_strided_slice %254 {offsets = [0, 384], sizes = [2, 128], strides = [1, 1]} : vector<2x512xf32> to vector<2x128xf32>
    %270 = arith.negf %269 : vector<2x128xf32>
    %271 = math.exp %270 : vector<2x128xf32>
    %cst_109 = arith.constant 1.000000e+00 : f32
    %272 = vector.broadcast %cst_109 : f32 to vector<2x128xf32>
    %273 = arith.addf %272, %271 : vector<2x128xf32>
    %274 = arith.divf %272, %273 : vector<2x128xf32>
    %275 = arith.mulf %266, %248 : vector<2x128xf32>
    %276 = arith.mulf %260, %268 : vector<2x128xf32>
    %277 = arith.addf %275, %276 : vector<2x128xf32>
    %278 = math.tanh %277 : vector<2x128xf32>
    %279 = arith.mulf %274, %278 : vector<2x128xf32>
    %c12_110 = arith.constant 12 : index
    %c0_111 = arith.constant 0 : index
    %280 = vector.load %arg13[%c12_110, %c0_111] : memref<16x128xf32, #tpu.memory_space<vmem>>, vector<2x128xf32>
    tpu.vector_store %arg13[%c12_110, %c0_111], %279 {strides = array<i32>} : memref<16x128xf32, #tpu.memory_space<vmem>>, vector<2x128xf32>,
    %c14_112 = arith.constant 14 : index
    %c0_113 = arith.constant 0 : index
    %281 = vector.load %arg12[%c14_112, %c0_113] : memref<16x512xf32, #tpu.memory_space<vmem>>, vector<2x512xf32>
    %cst_114 = arith.constant dense<0.000000e+00> : vector<2x512xf32>
    %282 = tpu.matmul %279, %75, %cst_114 {dimension_numbers = #tpu.dot_dimension_numbers<[1], [0], [0], [1], [0, 0, 1, 1], [], []>} : vector<2x128xf32>, vector<128x512xf32>, vector<2x512xf32> -> vector<2x512xf32>
    %283 = arith.addf %281, %282 : vector<2x512xf32>
    %284 = vector.extract_strided_slice %283 {offsets = [0, 0], sizes = [2, 128], strides = [1, 1]} : vector<2x512xf32> to vector<2x128xf32>
    %285 = arith.negf %284 : vector<2x128xf32>
    %286 = math.exp %285 : vector<2x128xf32>
    %cst_115 = arith.constant 1.000000e+00 : f32
    %287 = vector.broadcast %cst_115 : f32 to vector<2x128xf32>
    %288 = arith.addf %287, %286 : vector<2x128xf32>
    %289 = arith.divf %287, %288 : vector<2x128xf32>
    %290 = vector.extract_strided_slice %283 {offsets = [0, 128], sizes = [2, 128], strides = [1, 1]} : vector<2x512xf32> to vector<2x128xf32>
    %291 = arith.negf %290 : vector<2x128xf32>
    %292 = math.exp %291 : vector<2x128xf32>
    %cst_116 = arith.constant 1.000000e+00 : f32
    %293 = vector.broadcast %cst_116 : f32 to vector<2x128xf32>
    %294 = arith.addf %293, %292 : vector<2x128xf32>
    %295 = arith.divf %293, %294 : vector<2x128xf32>
    %296 = vector.extract_strided_slice %283 {offsets = [0, 256], sizes = [2, 128], strides = [1, 1]} : vector<2x512xf32> to vector<2x128xf32>
    %297 = math.tanh %296 : vector<2x128xf32>
    %298 = vector.extract_strided_slice %283 {offsets = [0, 384], sizes = [2, 128], strides = [1, 1]} : vector<2x512xf32> to vector<2x128xf32>
    %299 = arith.negf %298 : vector<2x128xf32>
    %300 = math.exp %299 : vector<2x128xf32>
    %cst_117 = arith.constant 1.000000e+00 : f32
    %301 = vector.broadcast %cst_117 : f32 to vector<2x128xf32>
    %302 = arith.addf %301, %300 : vector<2x128xf32>
    %303 = arith.divf %301, %302 : vector<2x128xf32>
    %304 = arith.mulf %295, %277 : vector<2x128xf32>
    %305 = arith.mulf %289, %297 : vector<2x128xf32>
    %306 = arith.addf %304, %305 : vector<2x128xf32>
    %307 = math.tanh %306 : vector<2x128xf32>
    %308 = arith.mulf %303, %307 : vector<2x128xf32>
    %c14_118 = arith.constant 14 : index
    %c0_119 = arith.constant 0 : index
    %309 = vector.load %arg13[%c14_118, %c0_119] : memref<16x128xf32, #tpu.memory_space<vmem>>, vector<2x128xf32>
    tpu.vector_store %arg13[%c14_118, %c0_119], %308 {strides = array<i32>} : memref<16x128xf32, #tpu.memory_space<vmem>>, vector<2x128xf32>,
    %c0_120 = arith.constant 0 : index
    %c0_121 = arith.constant 0 : index
    %310 = vector.load %arg13[%c0_120, %c0_121] : memref<16x128xf32, #tpu.memory_space<vmem>>, vector<2x128xf32>
    %c14_122 = arith.constant 14 : index
    %c0_123 = arith.constant 0 : index
    %311 = vector.load %arg13[%c14_122, %c0_123] : memref<16x128xf32, #tpu.memory_space<vmem>>, vector<2x128xf32>
    %312 = arith.select %21, %310, %311 : vector<2x128xi1>, vector<2x128xf32>
    %c0_124 = arith.constant 0 : index
    %c0_125 = arith.constant 0 : index
    %313 = vector.load %arg14[%c0_124, %c0_125] : memref<16x128xf32, #tpu.memory_space<vmem>>, vector<2x128xf32>
    tpu.vector_store %arg14[%c0_124, %c0_125], %312 {strides = array<i32>} : memref<16x128xf32, #tpu.memory_space<vmem>>, vector<2x128xf32>,
    %c2_126 = arith.constant 2 : index
    %c0_127 = arith.constant 0 : index
    %314 = vector.load %arg13[%c2_126, %c0_127] : memref<16x128xf32, #tpu.memory_space<vmem>>, vector<2x128xf32>
    %c12_128 = arith.constant 12 : index
    %c0_129 = arith.constant 0 : index
    %315 = vector.load %arg13[%c12_128, %c0_129] : memref<16x128xf32, #tpu.memory_space<vmem>>, vector<2x128xf32>
    %316 = arith.select %21, %314, %315 : vector<2x128xi1>, vector<2x128xf32>
    %c2_130 = arith.constant 2 : index
    %c0_131 = arith.constant 0 : index
    %317 = vector.load %arg14[%c2_130, %c0_131] : memref<16x128xf32, #tpu.memory_space<vmem>>, vector<2x128xf32>
    tpu.vector_store %arg14[%c2_130, %c0_131], %316 {strides = array<i32>} : memref<16x128xf32, #tpu.memory_space<vmem>>, vector<2x128xf32>,
    %c4_132 = arith.constant 4 : index
    %c0_133 = arith.constant 0 : index
    %318 = vector.load %arg13[%c4_132, %c0_133] : memref<16x128xf32, #tpu.memory_space<vmem>>, vector<2x128xf32>
    %c10_134 = arith.constant 10 : index
    %c0_135 = arith.constant 0 : index
    %319 = vector.load %arg13[%c10_134, %c0_135] : memref<16x128xf32, #tpu.memory_space<vmem>>, vector<2x128xf32>
    %320 = arith.select %21, %318, %319 : vector<2x128xi1>, vector<2x128xf32>
    %c4_136 = arith.constant 4 : index
    %c0_137 = arith.constant 0 : index
    %321 = vector.load %arg14[%c4_136, %c0_137] : memref<16x128xf32, #tpu.memory_space<vmem>>, vector<2x128xf32>
    tpu.vector_store %arg14[%c4_136, %c0_137], %320 {strides = array<i32>} : memref<16x128xf32, #tpu.memory_space<vmem>>, vector<2x128xf32>,
    %c6_138 = arith.constant 6 : index
    %c0_139 = arith.constant 0 : index
    %322 = vector.load %arg13[%c6_138, %c0_139] : memref<16x128xf32, #tpu.memory_space<vmem>>, vector<2x128xf32>
    %c8_140 = arith.constant 8 : index
    %c0_141 = arith.constant 0 : index
    %323 = vector.load %arg13[%c8_140, %c0_141] : memref<16x128xf32, #tpu.memory_space<vmem>>, vector<2x128xf32>
    %324 = arith.select %21, %322, %323 : vector<2x128xi1>, vector<2x128xf32>
    %c6_142 = arith.constant 6 : index
    %c0_143 = arith.constant 0 : index
    %325 = vector.load %arg14[%c6_142, %c0_143] : memref<16x128xf32, #tpu.memory_space<vmem>>, vector<2x128xf32>
    tpu.vector_store %arg14[%c6_142, %c0_143], %324 {strides = array<i32>} : memref<16x128xf32, #tpu.memory_space<vmem>>, vector<2x128xf32>,
    %c8_144 = arith.constant 8 : index
    %c0_145 = arith.constant 0 : index
    %326 = vector.load %arg13[%c8_144, %c0_145] : memref<16x128xf32, #tpu.memory_space<vmem>>, vector<2x128xf32>
    %c6_146 = arith.constant 6 : index
    %c0_147 = arith.constant 0 : index
    %327 = vector.load %arg13[%c6_146, %c0_147] : memref<16x128xf32, #tpu.memory_space<vmem>>, vector<2x128xf32>
    %328 = arith.select %21, %326, %327 : vector<2x128xi1>, vector<2x128xf32>
    %c8_148 = arith.constant 8 : index
    %c0_149 = arith.constant 0 : index
    %329 = vector.load %arg14[%c8_148, %c0_149] : memref<16x128xf32, #tpu.memory_space<vmem>>, vector<2x128xf32>
    tpu.vector_store %arg14[%c8_148, %c0_149], %328 {strides = array<i32>} : memref<16x128xf32, #tpu.memory_space<vmem>>, vector<2x128xf32>,
    %c10_150 = arith.constant 10 : index
    %c0_151 = arith.constant 0 : index
    %330 = vector.load %arg13[%c10_150, %c0_151] : memref<16x128xf32, #tpu.memory_space<vmem>>, vector<2x128xf32>
    %c4_152 = arith.constant 4 : index
    %c0_153 = arith.constant 0 : index
    %331 = vector.load %arg13[%c4_152, %c0_153] : memref<16x128xf32, #tpu.memory_space<vmem>>, vector<2x128xf32>
    %332 = arith.select %21, %330, %331 : vector<2x128xi1>, vector<2x128xf32>
    %c10_154 = arith.constant 10 : index
    %c0_155 = arith.constant 0 : index
    %333 = vector.load %arg14[%c10_154, %c0_155] : memref<16x128xf32, #tpu.memory_space<vmem>>, vector<2x128xf32>
    tpu.vector_store %arg14[%c10_154, %c0_155], %332 {strides = array<i32>} : memref<16x128xf32, #tpu.memory_space<vmem>>, vector<2x128xf32>,
    %c12_156 = arith.constant 12 : index
    %c0_157 = arith.constant 0 : index
    %334 = vector.load %arg13[%c12_156, %c0_157] : memref<16x128xf32, #tpu.memory_space<vmem>>, vector<2x128xf32>
    %c2_158 = arith.constant 2 : index
    %c0_159 = arith.constant 0 : index
    %335 = vector.load %arg13[%c2_158, %c0_159] : memref<16x128xf32, #tpu.memory_space<vmem>>, vector<2x128xf32>
    %336 = arith.select %21, %334, %335 : vector<2x128xi1>, vector<2x128xf32>
    %c12_160 = arith.constant 12 : index
    %c0_161 = arith.constant 0 : index
    %337 = vector.load %arg14[%c12_160, %c0_161] : memref<16x128xf32, #tpu.memory_space<vmem>>, vector<2x128xf32>
    tpu.vector_store %arg14[%c12_160, %c0_161], %336 {strides = array<i32>} : memref<16x128xf32, #tpu.memory_space<vmem>>, vector<2x128xf32>,
    %c14_162 = arith.constant 14 : index
    %c0_163 = arith.constant 0 : index
    %338 = vector.load %arg13[%c14_162, %c0_163] : memref<16x128xf32, #tpu.memory_space<vmem>>, vector<2x128xf32>
    %c0_164 = arith.constant 0 : index
    %c0_165 = arith.constant 0 : index
    %339 = vector.load %arg13[%c0_164, %c0_165] : memref<16x128xf32, #tpu.memory_space<vmem>>, vector<2x128xf32>
    %340 = arith.select %21, %338, %339 : vector<2x128xi1>, vector<2x128xf32>
    %c14_166 = arith.constant 14 : index
    %c0_167 = arith.constant 0 : index
    %341 = vector.load %arg14[%c14_166, %c0_167] : memref<16x128xf32, #tpu.memory_space<vmem>>, vector<2x128xf32>
    tpu.vector_store %arg14[%c14_166, %c0_167], %340 {strides = array<i32>} : memref<16x128xf32, #tpu.memory_space<vmem>>, vector<2x128xf32>,
    %c0_168 = arith.constant 0 : index
    %c0_169 = arith.constant 0 : index
    %342 = vector.load %arg14[%c0_168, %c0_169] : memref<16x128xf32, #tpu.memory_space<vmem>>, vector<16x128xf32>
    %c0_170 = arith.constant 0 : index
    %c0_171 = arith.constant 0 : index
    %343 = vector.load %arg4[%c0_170, %c0_171] : memref<128x512xf32, #tpu.memory_space<vmem>>, vector<128x512xf32>
    %cst_172 = arith.constant dense<0.000000e+00> : vector<16x512xf32>
    %344 = tpu.matmul %342, %343, %cst_172 {dimension_numbers = #tpu.dot_dimension_numbers<[1], [0], [0], [1], [0, 0, 1, 1], [], []>} : vector<16x128xf32>, vector<128x512xf32>, vector<16x512xf32> -> vector<16x512xf32>
    %c0_173 = arith.constant 0 : index
    %c0_174 = arith.constant 0 : index
    %345 = vector.load %arg11[%c0_173, %c0_174] : memref<16x512xf32, #tpu.memory_space<vmem>>, vector<16x512xf32>
    tpu.vector_store %arg11[%c0_173, %c0_174], %344 {strides = array<i32>} : memref<16x512xf32, #tpu.memory_space<vmem>>, vector<16x512xf32>,
    %c0_175 = arith.constant 0 : index
    %c0_176 = arith.constant 0 : index
    %346 = vector.load %arg5[%c0_175, %c0_176] : memref<1x512xf32, #tpu.memory_space<vmem>>, vector<1x512xf32>
    %c0_177 = arith.constant 0 : index
    %c0_178 = arith.constant 0 : index
    %347 = vector.load %arg11[%c0_177, %c0_178] : memref<16x512xf32, #tpu.memory_space<vmem>>, vector<2x512xf32>
    %c14_179 = arith.constant 14 : index
    %c0_180 = arith.constant 0 : index
    %348 = vector.load %arg11[%c14_179, %c0_180] : memref<16x512xf32, #tpu.memory_space<vmem>>, vector<2x512xf32>
    %349 = arith.select %18, %347, %348 : vector<2x512xi1>, vector<2x512xf32>
    %350 = vector.broadcast %346 : vector<1x512xf32> to vector<2x512xf32>
    %351 = arith.addf %349, %350 : vector<2x512xf32>
    %c0_181 = arith.constant 0 : index
    %c0_182 = arith.constant 0 : index
    %352 = vector.load %arg12[%c0_181, %c0_182] : memref<16x512xf32, #tpu.memory_space<vmem>>, vector<2x512xf32>
    tpu.vector_store %arg12[%c0_181, %c0_182], %351 {strides = array<i32>} : memref<16x512xf32, #tpu.memory_space<vmem>>, vector<2x512xf32>,
    %c2_183 = arith.constant 2 : index
    %c0_184 = arith.constant 0 : index
    %353 = vector.load %arg11[%c2_183, %c0_184] : memref<16x512xf32, #tpu.memory_space<vmem>>, vector<2x512xf32>
    %c12_185 = arith.constant 12 : index
    %c0_186 = arith.constant 0 : index
    %354 = vector.load %arg11[%c12_185, %c0_186] : memref<16x512xf32, #tpu.memory_space<vmem>>, vector<2x512xf32>
    %355 = arith.select %18, %353, %354 : vector<2x512xi1>, vector<2x512xf32>
    %356 = vector.broadcast %346 : vector<1x512xf32> to vector<2x512xf32>
    %357 = arith.addf %355, %356 : vector<2x512xf32>
    %c2_187 = arith.constant 2 : index
    %c0_188 = arith.constant 0 : index
    %358 = vector.load %arg12[%c2_187, %c0_188] : memref<16x512xf32, #tpu.memory_space<vmem>>, vector<2x512xf32>
    tpu.vector_store %arg12[%c2_187, %c0_188], %357 {strides = array<i32>} : memref<16x512xf32, #tpu.memory_space<vmem>>, vector<2x512xf32>,
    %c4_189 = arith.constant 4 : index
    %c0_190 = arith.constant 0 : index
    %359 = vector.load %arg11[%c4_189, %c0_190] : memref<16x512xf32, #tpu.memory_space<vmem>>, vector<2x512xf32>
    %c10_191 = arith.constant 10 : index
    %c0_192 = arith.constant 0 : index
    %360 = vector.load %arg11[%c10_191, %c0_192] : memref<16x512xf32, #tpu.memory_space<vmem>>, vector<2x512xf32>
    %361 = arith.select %18, %359, %360 : vector<2x512xi1>, vector<2x512xf32>
    %362 = vector.broadcast %346 : vector<1x512xf32> to vector<2x512xf32>
    %363 = arith.addf %361, %362 : vector<2x512xf32>
    %c4_193 = arith.constant 4 : index
    %c0_194 = arith.constant 0 : index
    %364 = vector.load %arg12[%c4_193, %c0_194] : memref<16x512xf32, #tpu.memory_space<vmem>>, vector<2x512xf32>
    tpu.vector_store %arg12[%c4_193, %c0_194], %363 {strides = array<i32>} : memref<16x512xf32, #tpu.memory_space<vmem>>, vector<2x512xf32>,
    %c6_195 = arith.constant 6 : index
    %c0_196 = arith.constant 0 : index
    %365 = vector.load %arg11[%c6_195, %c0_196] : memref<16x512xf32, #tpu.memory_space<vmem>>, vector<2x512xf32>
    %c8_197 = arith.constant 8 : index
    %c0_198 = arith.constant 0 : index
    %366 = vector.load %arg11[%c8_197, %c0_198] : memref<16x512xf32, #tpu.memory_space<vmem>>, vector<2x512xf32>
    %367 = arith.select %18, %365, %366 : vector<2x512xi1>, vector<2x512xf32>
    %368 = vector.broadcast %346 : vector<1x512xf32> to vector<2x512xf32>
    %369 = arith.addf %367, %368 : vector<2x512xf32>
    %c6_199 = arith.constant 6 : index
    %c0_200 = arith.constant 0 : index
    %370 = vector.load %arg12[%c6_199, %c0_200] : memref<16x512xf32, #tpu.memory_space<vmem>>, vector<2x512xf32>
    tpu.vector_store %arg12[%c6_199, %c0_200], %369 {strides = array<i32>} : memref<16x512xf32, #tpu.memory_space<vmem>>, vector<2x512xf32>,
    %c8_201 = arith.constant 8 : index
    %c0_202 = arith.constant 0 : index
    %371 = vector.load %arg11[%c8_201, %c0_202] : memref<16x512xf32, #tpu.memory_space<vmem>>, vector<2x512xf32>
    %c6_203 = arith.constant 6 : index
    %c0_204 = arith.constant 0 : index
    %372 = vector.load %arg11[%c6_203, %c0_204] : memref<16x512xf32, #tpu.memory_space<vmem>>, vector<2x512xf32>
    %373 = arith.select %18, %371, %372 : vector<2x512xi1>, vector<2x512xf32>
    %374 = vector.broadcast %346 : vector<1x512xf32> to vector<2x512xf32>
    %375 = arith.addf %373, %374 : vector<2x512xf32>
    %c8_205 = arith.constant 8 : index
    %c0_206 = arith.constant 0 : index
    %376 = vector.load %arg12[%c8_205, %c0_206] : memref<16x512xf32, #tpu.memory_space<vmem>>, vector<2x512xf32>
    tpu.vector_store %arg12[%c8_205, %c0_206], %375 {strides = array<i32>} : memref<16x512xf32, #tpu.memory_space<vmem>>, vector<2x512xf32>,
    %c10_207 = arith.constant 10 : index
    %c0_208 = arith.constant 0 : index
    %377 = vector.load %arg11[%c10_207, %c0_208] : memref<16x512xf32, #tpu.memory_space<vmem>>, vector<2x512xf32>
    %c4_209 = arith.constant 4 : index
    %c0_210 = arith.constant 0 : index
    %378 = vector.load %arg11[%c4_209, %c0_210] : memref<16x512xf32, #tpu.memory_space<vmem>>, vector<2x512xf32>
    %379 = arith.select %18, %377, %378 : vector<2x512xi1>, vector<2x512xf32>
    %380 = vector.broadcast %346 : vector<1x512xf32> to vector<2x512xf32>
    %381 = arith.addf %379, %380 : vector<2x512xf32>
    %c10_211 = arith.constant 10 : index
    %c0_212 = arith.constant 0 : index
    %382 = vector.load %arg12[%c10_211, %c0_212] : memref<16x512xf32, #tpu.memory_space<vmem>>, vector<2x512xf32>
    tpu.vector_store %arg12[%c10_211, %c0_212], %381 {strides = array<i32>} : memref<16x512xf32, #tpu.memory_space<vmem>>, vector<2x512xf32>,
    %c12_213 = arith.constant 12 : index
    %c0_214 = arith.constant 0 : index
    %383 = vector.load %arg11[%c12_213, %c0_214] : memref<16x512xf32, #tpu.memory_space<vmem>>, vector<2x512xf32>
    %c2_215 = arith.constant 2 : index
    %c0_216 = arith.constant 0 : index
    %384 = vector.load %arg11[%c2_215, %c0_216] : memref<16x512xf32, #tpu.memory_space<vmem>>, vector<2x512xf32>
    %385 = arith.select %18, %383, %384 : vector<2x512xi1>, vector<2x512xf32>
    %386 = vector.broadcast %346 : vector<1x512xf32> to vector<2x512xf32>
    %387 = arith.addf %385, %386 : vector<2x512xf32>
    %c12_217 = arith.constant 12 : index
    %c0_218 = arith.constant 0 : index
    %388 = vector.load %arg12[%c12_217, %c0_218] : memref<16x512xf32, #tpu.memory_space<vmem>>, vector<2x512xf32>
    tpu.vector_store %arg12[%c12_217, %c0_218], %387 {strides = array<i32>} : memref<16x512xf32, #tpu.memory_space<vmem>>, vector<2x512xf32>,
    %c14_219 = arith.constant 14 : index
    %c0_220 = arith.constant 0 : index
    %389 = vector.load %arg11[%c14_219, %c0_220] : memref<16x512xf32, #tpu.memory_space<vmem>>, vector<2x512xf32>
    %c0_221 = arith.constant 0 : index
    %c0_222 = arith.constant 0 : index
    %390 = vector.load %arg11[%c0_221, %c0_222] : memref<16x512xf32, #tpu.memory_space<vmem>>, vector<2x512xf32>
    %391 = arith.select %18, %389, %390 : vector<2x512xi1>, vector<2x512xf32>
    %392 = vector.broadcast %346 : vector<1x512xf32> to vector<2x512xf32>
    %393 = arith.addf %391, %392 : vector<2x512xf32>
    %c14_223 = arith.constant 14 : index
    %c0_224 = arith.constant 0 : index
    %394 = vector.load %arg12[%c14_223, %c0_224] : memref<16x512xf32, #tpu.memory_space<vmem>>, vector<2x512xf32>
    tpu.vector_store %arg12[%c14_223, %c0_224], %393 {strides = array<i32>} : memref<16x512xf32, #tpu.memory_space<vmem>>, vector<2x512xf32>,
    %c0_225 = arith.constant 0 : index
    %c0_226 = arith.constant 0 : index
    %395 = vector.load %arg6[%c0_225, %c0_226] : memref<128x512xf32, #tpu.memory_space<vmem>>, vector<128x512xf32>
    %cst_227 = arith.constant 0.000000e+00 : f32
    %396 = vector.broadcast %cst_227 : f32 to vector<2x128xf32>
    %cst_228 = arith.constant 0.000000e+00 : f32
    %397 = vector.broadcast %cst_228 : f32 to vector<2x128xf32>
    %c0_229 = arith.constant 0 : index
    %c0_230 = arith.constant 0 : index
    %398 = vector.load %arg12[%c0_229, %c0_230] : memref<16x512xf32, #tpu.memory_space<vmem>>, vector<2x512xf32>
    %cst_231 = arith.constant dense<0.000000e+00> : vector<2x512xf32>
    %399 = tpu.matmul %396, %395, %cst_231 {dimension_numbers = #tpu.dot_dimension_numbers<[1], [0], [0], [1], [0, 0, 1, 1], [], []>} : vector<2x128xf32>, vector<128x512xf32>, vector<2x512xf32> -> vector<2x512xf32>
    %400 = arith.addf %398, %399 : vector<2x512xf32>
    %401 = vector.extract_strided_slice %400 {offsets = [0, 0], sizes = [2, 128], strides = [1, 1]} : vector<2x512xf32> to vector<2x128xf32>
    %402 = arith.negf %401 : vector<2x128xf32>
    %403 = math.exp %402 : vector<2x128xf32>
    %cst_232 = arith.constant 1.000000e+00 : f32
    %404 = vector.broadcast %cst_232 : f32 to vector<2x128xf32>
    %405 = arith.addf %404, %403 : vector<2x128xf32>
    %406 = arith.divf %404, %405 : vector<2x128xf32>
    %407 = vector.extract_strided_slice %400 {offsets = [0, 128], sizes = [2, 128], strides = [1, 1]} : vector<2x512xf32> to vector<2x128xf32>
    %408 = arith.negf %407 : vector<2x128xf32>
    %409 = math.exp %408 : vector<2x128xf32>
    %cst_233 = arith.constant 1.000000e+00 : f32
    %410 = vector.broadcast %cst_233 : f32 to vector<2x128xf32>
    %411 = arith.addf %410, %409 : vector<2x128xf32>
    %412 = arith.divf %410, %411 : vector<2x128xf32>
    %413 = vector.extract_strided_slice %400 {offsets = [0, 256], sizes = [2, 128], strides = [1, 1]} : vector<2x512xf32> to vector<2x128xf32>
    %414 = math.tanh %413 : vector<2x128xf32>
    %415 = vector.extract_strided_slice %400 {offsets = [0, 384], sizes = [2, 128], strides = [1, 1]} : vector<2x512xf32> to vector<2x128xf32>
    %416 = arith.negf %415 : vector<2x128xf32>
    %417 = math.exp %416 : vector<2x128xf32>
    %cst_234 = arith.constant 1.000000e+00 : f32
    %418 = vector.broadcast %cst_234 : f32 to vector<2x128xf32>
    %419 = arith.addf %418, %417 : vector<2x128xf32>
    %420 = arith.divf %418, %419 : vector<2x128xf32>
    %421 = arith.mulf %412, %397 : vector<2x128xf32>
    %422 = arith.mulf %406, %414 : vector<2x128xf32>
    %423 = arith.addf %421, %422 : vector<2x128xf32>
    %424 = math.tanh %423 : vector<2x128xf32>
    %425 = arith.mulf %420, %424 : vector<2x128xf32>
    %c0_235 = arith.constant 0 : index
    %c0_236 = arith.constant 0 : index
    %426 = vector.load %arg13[%c0_235, %c0_236] : memref<16x128xf32, #tpu.memory_space<vmem>>, vector<2x128xf32>
    tpu.vector_store %arg13[%c0_235, %c0_236], %425 {strides = array<i32>} : memref<16x128xf32, #tpu.memory_space<vmem>>, vector<2x128xf32>,
    %c2_237 = arith.constant 2 : index
    %c0_238 = arith.constant 0 : index
    %427 = vector.load %arg12[%c2_237, %c0_238] : memref<16x512xf32, #tpu.memory_space<vmem>>, vector<2x512xf32>
    %cst_239 = arith.constant dense<0.000000e+00> : vector<2x512xf32>
    %428 = tpu.matmul %425, %395, %cst_239 {dimension_numbers = #tpu.dot_dimension_numbers<[1], [0], [0], [1], [0, 0, 1, 1], [], []>} : vector<2x128xf32>, vector<128x512xf32>, vector<2x512xf32> -> vector<2x512xf32>
    %429 = arith.addf %427, %428 : vector<2x512xf32>
    %430 = vector.extract_strided_slice %429 {offsets = [0, 0], sizes = [2, 128], strides = [1, 1]} : vector<2x512xf32> to vector<2x128xf32>
    %431 = arith.negf %430 : vector<2x128xf32>
    %432 = math.exp %431 : vector<2x128xf32>
    %cst_240 = arith.constant 1.000000e+00 : f32
    %433 = vector.broadcast %cst_240 : f32 to vector<2x128xf32>
    %434 = arith.addf %433, %432 : vector<2x128xf32>
    %435 = arith.divf %433, %434 : vector<2x128xf32>
    %436 = vector.extract_strided_slice %429 {offsets = [0, 128], sizes = [2, 128], strides = [1, 1]} : vector<2x512xf32> to vector<2x128xf32>
    %437 = arith.negf %436 : vector<2x128xf32>
    %438 = math.exp %437 : vector<2x128xf32>
    %cst_241 = arith.constant 1.000000e+00 : f32
    %439 = vector.broadcast %cst_241 : f32 to vector<2x128xf32>
    %440 = arith.addf %439, %438 : vector<2x128xf32>
    %441 = arith.divf %439, %440 : vector<2x128xf32>
    %442 = vector.extract_strided_slice %429 {offsets = [0, 256], sizes = [2, 128], strides = [1, 1]} : vector<2x512xf32> to vector<2x128xf32>
    %443 = math.tanh %442 : vector<2x128xf32>
    %444 = vector.extract_strided_slice %429 {offsets = [0, 384], sizes = [2, 128], strides = [1, 1]} : vector<2x512xf32> to vector<2x128xf32>
    %445 = arith.negf %444 : vector<2x128xf32>
    %446 = math.exp %445 : vector<2x128xf32>
    %cst_242 = arith.constant 1.000000e+00 : f32
    %447 = vector.broadcast %cst_242 : f32 to vector<2x128xf32>
    %448 = arith.addf %447, %446 : vector<2x128xf32>
    %449 = arith.divf %447, %448 : vector<2x128xf32>
    %450 = arith.mulf %441, %423 : vector<2x128xf32>
    %451 = arith.mulf %435, %443 : vector<2x128xf32>
    %452 = arith.addf %450, %451 : vector<2x128xf32>
    %453 = math.tanh %452 : vector<2x128xf32>
    %454 = arith.mulf %449, %453 : vector<2x128xf32>
    %c2_243 = arith.constant 2 : index
    %c0_244 = arith.constant 0 : index
    %455 = vector.load %arg13[%c2_243, %c0_244] : memref<16x128xf32, #tpu.memory_space<vmem>>, vector<2x128xf32>
    tpu.vector_store %arg13[%c2_243, %c0_244], %454 {strides = array<i32>} : memref<16x128xf32, #tpu.memory_space<vmem>>, vector<2x128xf32>,
    %c4_245 = arith.constant 4 : index
    %c0_246 = arith.constant 0 : index
    %456 = vector.load %arg12[%c4_245, %c0_246] : memref<16x512xf32, #tpu.memory_space<vmem>>, vector<2x512xf32>
    %cst_247 = arith.constant dense<0.000000e+00> : vector<2x512xf32>
    %457 = tpu.matmul %454, %395, %cst_247 {dimension_numbers = #tpu.dot_dimension_numbers<[1], [0], [0], [1], [0, 0, 1, 1], [], []>} : vector<2x128xf32>, vector<128x512xf32>, vector<2x512xf32> -> vector<2x512xf32>
    %458 = arith.addf %456, %457 : vector<2x512xf32>
    %459 = vector.extract_strided_slice %458 {offsets = [0, 0], sizes = [2, 128], strides = [1, 1]} : vector<2x512xf32> to vector<2x128xf32>
    %460 = arith.negf %459 : vector<2x128xf32>
    %461 = math.exp %460 : vector<2x128xf32>
    %cst_248 = arith.constant 1.000000e+00 : f32
    %462 = vector.broadcast %cst_248 : f32 to vector<2x128xf32>
    %463 = arith.addf %462, %461 : vector<2x128xf32>
    %464 = arith.divf %462, %463 : vector<2x128xf32>
    %465 = vector.extract_strided_slice %458 {offsets = [0, 128], sizes = [2, 128], strides = [1, 1]} : vector<2x512xf32> to vector<2x128xf32>
    %466 = arith.negf %465 : vector<2x128xf32>
    %467 = math.exp %466 : vector<2x128xf32>
    %cst_249 = arith.constant 1.000000e+00 : f32
    %468 = vector.broadcast %cst_249 : f32 to vector<2x128xf32>
    %469 = arith.addf %468, %467 : vector<2x128xf32>
    %470 = arith.divf %468, %469 : vector<2x128xf32>
    %471 = vector.extract_strided_slice %458 {offsets = [0, 256], sizes = [2, 128], strides = [1, 1]} : vector<2x512xf32> to vector<2x128xf32>
    %472 = math.tanh %471 : vector<2x128xf32>
    %473 = vector.extract_strided_slice %458 {offsets = [0, 384], sizes = [2, 128], strides = [1, 1]} : vector<2x512xf32> to vector<2x128xf32>
    %474 = arith.negf %473 : vector<2x128xf32>
    %475 = math.exp %474 : vector<2x128xf32>
    %cst_250 = arith.constant 1.000000e+00 : f32
    %476 = vector.broadcast %cst_250 : f32 to vector<2x128xf32>
    %477 = arith.addf %476, %475 : vector<2x128xf32>
    %478 = arith.divf %476, %477 : vector<2x128xf32>
    %479 = arith.mulf %470, %452 : vector<2x128xf32>
    %480 = arith.mulf %464, %472 : vector<2x128xf32>
    %481 = arith.addf %479, %480 : vector<2x128xf32>
    %482 = math.tanh %481 : vector<2x128xf32>
    %483 = arith.mulf %478, %482 : vector<2x128xf32>
    %c4_251 = arith.constant 4 : index
    %c0_252 = arith.constant 0 : index
    %484 = vector.load %arg13[%c4_251, %c0_252] : memref<16x128xf32, #tpu.memory_space<vmem>>, vector<2x128xf32>
    tpu.vector_store %arg13[%c4_251, %c0_252], %483 {strides = array<i32>} : memref<16x128xf32, #tpu.memory_space<vmem>>, vector<2x128xf32>,
    %c6_253 = arith.constant 6 : index
    %c0_254 = arith.constant 0 : index
    %485 = vector.load %arg12[%c6_253, %c0_254] : memref<16x512xf32, #tpu.memory_space<vmem>>, vector<2x512xf32>
    %cst_255 = arith.constant dense<0.000000e+00> : vector<2x512xf32>
    %486 = tpu.matmul %483, %395, %cst_255 {dimension_numbers = #tpu.dot_dimension_numbers<[1], [0], [0], [1], [0, 0, 1, 1], [], []>} : vector<2x128xf32>, vector<128x512xf32>, vector<2x512xf32> -> vector<2x512xf32>
    %487 = arith.addf %485, %486 : vector<2x512xf32>
    %488 = vector.extract_strided_slice %487 {offsets = [0, 0], sizes = [2, 128], strides = [1, 1]} : vector<2x512xf32> to vector<2x128xf32>
    %489 = arith.negf %488 : vector<2x128xf32>
    %490 = math.exp %489 : vector<2x128xf32>
    %cst_256 = arith.constant 1.000000e+00 : f32
    %491 = vector.broadcast %cst_256 : f32 to vector<2x128xf32>
    %492 = arith.addf %491, %490 : vector<2x128xf32>
    %493 = arith.divf %491, %492 : vector<2x128xf32>
    %494 = vector.extract_strided_slice %487 {offsets = [0, 128], sizes = [2, 128], strides = [1, 1]} : vector<2x512xf32> to vector<2x128xf32>
    %495 = arith.negf %494 : vector<2x128xf32>
    %496 = math.exp %495 : vector<2x128xf32>
    %cst_257 = arith.constant 1.000000e+00 : f32
    %497 = vector.broadcast %cst_257 : f32 to vector<2x128xf32>
    %498 = arith.addf %497, %496 : vector<2x128xf32>
    %499 = arith.divf %497, %498 : vector<2x128xf32>
    %500 = vector.extract_strided_slice %487 {offsets = [0, 256], sizes = [2, 128], strides = [1, 1]} : vector<2x512xf32> to vector<2x128xf32>
    %501 = math.tanh %500 : vector<2x128xf32>
    %502 = vector.extract_strided_slice %487 {offsets = [0, 384], sizes = [2, 128], strides = [1, 1]} : vector<2x512xf32> to vector<2x128xf32>
    %503 = arith.negf %502 : vector<2x128xf32>
    %504 = math.exp %503 : vector<2x128xf32>
    %cst_258 = arith.constant 1.000000e+00 : f32
    %505 = vector.broadcast %cst_258 : f32 to vector<2x128xf32>
    %506 = arith.addf %505, %504 : vector<2x128xf32>
    %507 = arith.divf %505, %506 : vector<2x128xf32>
    %508 = arith.mulf %499, %481 : vector<2x128xf32>
    %509 = arith.mulf %493, %501 : vector<2x128xf32>
    %510 = arith.addf %508, %509 : vector<2x128xf32>
    %511 = math.tanh %510 : vector<2x128xf32>
    %512 = arith.mulf %507, %511 : vector<2x128xf32>
    %c6_259 = arith.constant 6 : index
    %c0_260 = arith.constant 0 : index
    %513 = vector.load %arg13[%c6_259, %c0_260] : memref<16x128xf32, #tpu.memory_space<vmem>>, vector<2x128xf32>
    tpu.vector_store %arg13[%c6_259, %c0_260], %512 {strides = array<i32>} : memref<16x128xf32, #tpu.memory_space<vmem>>, vector<2x128xf32>,
    %c8_261 = arith.constant 8 : index
    %c0_262 = arith.constant 0 : index
    %514 = vector.load %arg12[%c8_261, %c0_262] : memref<16x512xf32, #tpu.memory_space<vmem>>, vector<2x512xf32>
    %cst_263 = arith.constant dense<0.000000e+00> : vector<2x512xf32>
    %515 = tpu.matmul %512, %395, %cst_263 {dimension_numbers = #tpu.dot_dimension_numbers<[1], [0], [0], [1], [0, 0, 1, 1], [], []>} : vector<2x128xf32>, vector<128x512xf32>, vector<2x512xf32> -> vector<2x512xf32>
    %516 = arith.addf %514, %515 : vector<2x512xf32>
    %517 = vector.extract_strided_slice %516 {offsets = [0, 0], sizes = [2, 128], strides = [1, 1]} : vector<2x512xf32> to vector<2x128xf32>
    %518 = arith.negf %517 : vector<2x128xf32>
    %519 = math.exp %518 : vector<2x128xf32>
    %cst_264 = arith.constant 1.000000e+00 : f32
    %520 = vector.broadcast %cst_264 : f32 to vector<2x128xf32>
    %521 = arith.addf %520, %519 : vector<2x128xf32>
    %522 = arith.divf %520, %521 : vector<2x128xf32>
    %523 = vector.extract_strided_slice %516 {offsets = [0, 128], sizes = [2, 128], strides = [1, 1]} : vector<2x512xf32> to vector<2x128xf32>
    %524 = arith.negf %523 : vector<2x128xf32>
    %525 = math.exp %524 : vector<2x128xf32>
    %cst_265 = arith.constant 1.000000e+00 : f32
    %526 = vector.broadcast %cst_265 : f32 to vector<2x128xf32>
    %527 = arith.addf %526, %525 : vector<2x128xf32>
    %528 = arith.divf %526, %527 : vector<2x128xf32>
    %529 = vector.extract_strided_slice %516 {offsets = [0, 256], sizes = [2, 128], strides = [1, 1]} : vector<2x512xf32> to vector<2x128xf32>
    %530 = math.tanh %529 : vector<2x128xf32>
    %531 = vector.extract_strided_slice %516 {offsets = [0, 384], sizes = [2, 128], strides = [1, 1]} : vector<2x512xf32> to vector<2x128xf32>
    %532 = arith.negf %531 : vector<2x128xf32>
    %533 = math.exp %532 : vector<2x128xf32>
    %cst_266 = arith.constant 1.000000e+00 : f32
    %534 = vector.broadcast %cst_266 : f32 to vector<2x128xf32>
    %535 = arith.addf %534, %533 : vector<2x128xf32>
    %536 = arith.divf %534, %535 : vector<2x128xf32>
    %537 = arith.mulf %528, %510 : vector<2x128xf32>
    %538 = arith.mulf %522, %530 : vector<2x128xf32>
    %539 = arith.addf %537, %538 : vector<2x128xf32>
    %540 = math.tanh %539 : vector<2x128xf32>
    %541 = arith.mulf %536, %540 : vector<2x128xf32>
    %c8_267 = arith.constant 8 : index
    %c0_268 = arith.constant 0 : index
    %542 = vector.load %arg13[%c8_267, %c0_268] : memref<16x128xf32, #tpu.memory_space<vmem>>, vector<2x128xf32>
    tpu.vector_store %arg13[%c8_267, %c0_268], %541 {strides = array<i32>} : memref<16x128xf32, #tpu.memory_space<vmem>>, vector<2x128xf32>,
    %c10_269 = arith.constant 10 : index
    %c0_270 = arith.constant 0 : index
    %543 = vector.load %arg12[%c10_269, %c0_270] : memref<16x512xf32, #tpu.memory_space<vmem>>, vector<2x512xf32>
    %cst_271 = arith.constant dense<0.000000e+00> : vector<2x512xf32>
    %544 = tpu.matmul %541, %395, %cst_271 {dimension_numbers = #tpu.dot_dimension_numbers<[1], [0], [0], [1], [0, 0, 1, 1], [], []>} : vector<2x128xf32>, vector<128x512xf32>, vector<2x512xf32> -> vector<2x512xf32>
    %545 = arith.addf %543, %544 : vector<2x512xf32>
    %546 = vector.extract_strided_slice %545 {offsets = [0, 0], sizes = [2, 128], strides = [1, 1]} : vector<2x512xf32> to vector<2x128xf32>
    %547 = arith.negf %546 : vector<2x128xf32>
    %548 = math.exp %547 : vector<2x128xf32>
    %cst_272 = arith.constant 1.000000e+00 : f32
    %549 = vector.broadcast %cst_272 : f32 to vector<2x128xf32>
    %550 = arith.addf %549, %548 : vector<2x128xf32>
    %551 = arith.divf %549, %550 : vector<2x128xf32>
    %552 = vector.extract_strided_slice %545 {offsets = [0, 128], sizes = [2, 128], strides = [1, 1]} : vector<2x512xf32> to vector<2x128xf32>
    %553 = arith.negf %552 : vector<2x128xf32>
    %554 = math.exp %553 : vector<2x128xf32>
    %cst_273 = arith.constant 1.000000e+00 : f32
    %555 = vector.broadcast %cst_273 : f32 to vector<2x128xf32>
    %556 = arith.addf %555, %554 : vector<2x128xf32>
    %557 = arith.divf %555, %556 : vector<2x128xf32>
    %558 = vector.extract_strided_slice %545 {offsets = [0, 256], sizes = [2, 128], strides = [1, 1]} : vector<2x512xf32> to vector<2x128xf32>
    %559 = math.tanh %558 : vector<2x128xf32>
    %560 = vector.extract_strided_slice %545 {offsets = [0, 384], sizes = [2, 128], strides = [1, 1]} : vector<2x512xf32> to vector<2x128xf32>
    %561 = arith.negf %560 : vector<2x128xf32>
    %562 = math.exp %561 : vector<2x128xf32>
    %cst_274 = arith.constant 1.000000e+00 : f32
    %563 = vector.broadcast %cst_274 : f32 to vector<2x128xf32>
    %564 = arith.addf %563, %562 : vector<2x128xf32>
    %565 = arith.divf %563, %564 : vector<2x128xf32>
    %566 = arith.mulf %557, %539 : vector<2x128xf32>
    %567 = arith.mulf %551, %559 : vector<2x128xf32>
    %568 = arith.addf %566, %567 : vector<2x128xf32>
    %569 = math.tanh %568 : vector<2x128xf32>
    %570 = arith.mulf %565, %569 : vector<2x128xf32>
    %c10_275 = arith.constant 10 : index
    %c0_276 = arith.constant 0 : index
    %571 = vector.load %arg13[%c10_275, %c0_276] : memref<16x128xf32, #tpu.memory_space<vmem>>, vector<2x128xf32>
    tpu.vector_store %arg13[%c10_275, %c0_276], %570 {strides = array<i32>} : memref<16x128xf32, #tpu.memory_space<vmem>>, vector<2x128xf32>,
    %c12_277 = arith.constant 12 : index
    %c0_278 = arith.constant 0 : index
    %572 = vector.load %arg12[%c12_277, %c0_278] : memref<16x512xf32, #tpu.memory_space<vmem>>, vector<2x512xf32>
    %cst_279 = arith.constant dense<0.000000e+00> : vector<2x512xf32>
    %573 = tpu.matmul %570, %395, %cst_279 {dimension_numbers = #tpu.dot_dimension_numbers<[1], [0], [0], [1], [0, 0, 1, 1], [], []>} : vector<2x128xf32>, vector<128x512xf32>, vector<2x512xf32> -> vector<2x512xf32>
    %574 = arith.addf %572, %573 : vector<2x512xf32>
    %575 = vector.extract_strided_slice %574 {offsets = [0, 0], sizes = [2, 128], strides = [1, 1]} : vector<2x512xf32> to vector<2x128xf32>
    %576 = arith.negf %575 : vector<2x128xf32>
    %577 = math.exp %576 : vector<2x128xf32>
    %cst_280 = arith.constant 1.000000e+00 : f32
    %578 = vector.broadcast %cst_280 : f32 to vector<2x128xf32>
    %579 = arith.addf %578, %577 : vector<2x128xf32>
    %580 = arith.divf %578, %579 : vector<2x128xf32>
    %581 = vector.extract_strided_slice %574 {offsets = [0, 128], sizes = [2, 128], strides = [1, 1]} : vector<2x512xf32> to vector<2x128xf32>
    %582 = arith.negf %581 : vector<2x128xf32>
    %583 = math.exp %582 : vector<2x128xf32>
    %cst_281 = arith.constant 1.000000e+00 : f32
    %584 = vector.broadcast %cst_281 : f32 to vector<2x128xf32>
    %585 = arith.addf %584, %583 : vector<2x128xf32>
    %586 = arith.divf %584, %585 : vector<2x128xf32>
    %587 = vector.extract_strided_slice %574 {offsets = [0, 256], sizes = [2, 128], strides = [1, 1]} : vector<2x512xf32> to vector<2x128xf32>
    %588 = math.tanh %587 : vector<2x128xf32>
    %589 = vector.extract_strided_slice %574 {offsets = [0, 384], sizes = [2, 128], strides = [1, 1]} : vector<2x512xf32> to vector<2x128xf32>
    %590 = arith.negf %589 : vector<2x128xf32>
    %591 = math.exp %590 : vector<2x128xf32>
    %cst_282 = arith.constant 1.000000e+00 : f32
    %592 = vector.broadcast %cst_282 : f32 to vector<2x128xf32>
    %593 = arith.addf %592, %591 : vector<2x128xf32>
    %594 = arith.divf %592, %593 : vector<2x128xf32>
    %595 = arith.mulf %586, %568 : vector<2x128xf32>
    %596 = arith.mulf %580, %588 : vector<2x128xf32>
    %597 = arith.addf %595, %596 : vector<2x128xf32>
    %598 = math.tanh %597 : vector<2x128xf32>
    %599 = arith.mulf %594, %598 : vector<2x128xf32>
    %c12_283 = arith.constant 12 : index
    %c0_284 = arith.constant 0 : index
    %600 = vector.load %arg13[%c12_283, %c0_284] : memref<16x128xf32, #tpu.memory_space<vmem>>, vector<2x128xf32>
    tpu.vector_store %arg13[%c12_283, %c0_284], %599 {strides = array<i32>} : memref<16x128xf32, #tpu.memory_space<vmem>>, vector<2x128xf32>,
    %c14_285 = arith.constant 14 : index
    %c0_286 = arith.constant 0 : index
    %601 = vector.load %arg12[%c14_285, %c0_286] : memref<16x512xf32, #tpu.memory_space<vmem>>, vector<2x512xf32>
    %cst_287 = arith.constant dense<0.000000e+00> : vector<2x512xf32>
    %602 = tpu.matmul %599, %395, %cst_287 {dimension_numbers = #tpu.dot_dimension_numbers<[1], [0], [0], [1], [0, 0, 1, 1], [], []>} : vector<2x128xf32>, vector<128x512xf32>, vector<2x512xf32> -> vector<2x512xf32>
    %603 = arith.addf %601, %602 : vector<2x512xf32>
    %604 = vector.extract_strided_slice %603 {offsets = [0, 0], sizes = [2, 128], strides = [1, 1]} : vector<2x512xf32> to vector<2x128xf32>
    %605 = arith.negf %604 : vector<2x128xf32>
    %606 = math.exp %605 : vector<2x128xf32>
    %cst_288 = arith.constant 1.000000e+00 : f32
    %607 = vector.broadcast %cst_288 : f32 to vector<2x128xf32>
    %608 = arith.addf %607, %606 : vector<2x128xf32>
    %609 = arith.divf %607, %608 : vector<2x128xf32>
    %610 = vector.extract_strided_slice %603 {offsets = [0, 128], sizes = [2, 128], strides = [1, 1]} : vector<2x512xf32> to vector<2x128xf32>
    %611 = arith.negf %610 : vector<2x128xf32>
    %612 = math.exp %611 : vector<2x128xf32>
    %cst_289 = arith.constant 1.000000e+00 : f32
    %613 = vector.broadcast %cst_289 : f32 to vector<2x128xf32>
    %614 = arith.addf %613, %612 : vector<2x128xf32>
    %615 = arith.divf %613, %614 : vector<2x128xf32>
    %616 = vector.extract_strided_slice %603 {offsets = [0, 256], sizes = [2, 128], strides = [1, 1]} : vector<2x512xf32> to vector<2x128xf32>
    %617 = math.tanh %616 : vector<2x128xf32>
    %618 = vector.extract_strided_slice %603 {offsets = [0, 384], sizes = [2, 128], strides = [1, 1]} : vector<2x512xf32> to vector<2x128xf32>
    %619 = arith.negf %618 : vector<2x128xf32>
    %620 = math.exp %619 : vector<2x128xf32>
    %cst_290 = arith.constant 1.000000e+00 : f32
    %621 = vector.broadcast %cst_290 : f32 to vector<2x128xf32>
    %622 = arith.addf %621, %620 : vector<2x128xf32>
    %623 = arith.divf %621, %622 : vector<2x128xf32>
    %624 = arith.mulf %615, %597 : vector<2x128xf32>
    %625 = arith.mulf %609, %617 : vector<2x128xf32>
    %626 = arith.addf %624, %625 : vector<2x128xf32>
    %627 = math.tanh %626 : vector<2x128xf32>
    %628 = arith.mulf %623, %627 : vector<2x128xf32>
    %c14_291 = arith.constant 14 : index
    %c0_292 = arith.constant 0 : index
    %629 = vector.load %arg13[%c14_291, %c0_292] : memref<16x128xf32, #tpu.memory_space<vmem>>, vector<2x128xf32>
    tpu.vector_store %arg13[%c14_291, %c0_292], %628 {strides = array<i32>} : memref<16x128xf32, #tpu.memory_space<vmem>>, vector<2x128xf32>,
    %c0_293 = arith.constant 0 : index
    %c0_294 = arith.constant 0 : index
    %630 = vector.load %arg13[%c0_293, %c0_294] : memref<16x128xf32, #tpu.memory_space<vmem>>, vector<2x128xf32>
    %c14_295 = arith.constant 14 : index
    %c0_296 = arith.constant 0 : index
    %631 = vector.load %arg13[%c14_295, %c0_296] : memref<16x128xf32, #tpu.memory_space<vmem>>, vector<2x128xf32>
    %632 = arith.select %21, %630, %631 : vector<2x128xi1>, vector<2x128xf32>
    %c0_297 = arith.constant 0 : index
    %c0_298 = arith.constant 0 : index
    %633 = vector.load %arg14[%c0_297, %c0_298] : memref<16x128xf32, #tpu.memory_space<vmem>>, vector<2x128xf32>
    tpu.vector_store %arg14[%c0_297, %c0_298], %632 {strides = array<i32>} : memref<16x128xf32, #tpu.memory_space<vmem>>, vector<2x128xf32>,
    %c2_299 = arith.constant 2 : index
    %c0_300 = arith.constant 0 : index
    %634 = vector.load %arg13[%c2_299, %c0_300] : memref<16x128xf32, #tpu.memory_space<vmem>>, vector<2x128xf32>
    %c12_301 = arith.constant 12 : index
    %c0_302 = arith.constant 0 : index
    %635 = vector.load %arg13[%c12_301, %c0_302] : memref<16x128xf32, #tpu.memory_space<vmem>>, vector<2x128xf32>
    %636 = arith.select %21, %634, %635 : vector<2x128xi1>, vector<2x128xf32>
    %c2_303 = arith.constant 2 : index
    %c0_304 = arith.constant 0 : index
    %637 = vector.load %arg14[%c2_303, %c0_304] : memref<16x128xf32, #tpu.memory_space<vmem>>, vector<2x128xf32>
    tpu.vector_store %arg14[%c2_303, %c0_304], %636 {strides = array<i32>} : memref<16x128xf32, #tpu.memory_space<vmem>>, vector<2x128xf32>,
    %c4_305 = arith.constant 4 : index
    %c0_306 = arith.constant 0 : index
    %638 = vector.load %arg13[%c4_305, %c0_306] : memref<16x128xf32, #tpu.memory_space<vmem>>, vector<2x128xf32>
    %c10_307 = arith.constant 10 : index
    %c0_308 = arith.constant 0 : index
    %639 = vector.load %arg13[%c10_307, %c0_308] : memref<16x128xf32, #tpu.memory_space<vmem>>, vector<2x128xf32>
    %640 = arith.select %21, %638, %639 : vector<2x128xi1>, vector<2x128xf32>
    %c4_309 = arith.constant 4 : index
    %c0_310 = arith.constant 0 : index
    %641 = vector.load %arg14[%c4_309, %c0_310] : memref<16x128xf32, #tpu.memory_space<vmem>>, vector<2x128xf32>
    tpu.vector_store %arg14[%c4_309, %c0_310], %640 {strides = array<i32>} : memref<16x128xf32, #tpu.memory_space<vmem>>, vector<2x128xf32>,
    %c6_311 = arith.constant 6 : index
    %c0_312 = arith.constant 0 : index
    %642 = vector.load %arg13[%c6_311, %c0_312] : memref<16x128xf32, #tpu.memory_space<vmem>>, vector<2x128xf32>
    %c8_313 = arith.constant 8 : index
    %c0_314 = arith.constant 0 : index
    %643 = vector.load %arg13[%c8_313, %c0_314] : memref<16x128xf32, #tpu.memory_space<vmem>>, vector<2x128xf32>
    %644 = arith.select %21, %642, %643 : vector<2x128xi1>, vector<2x128xf32>
    %c6_315 = arith.constant 6 : index
    %c0_316 = arith.constant 0 : index
    %645 = vector.load %arg14[%c6_315, %c0_316] : memref<16x128xf32, #tpu.memory_space<vmem>>, vector<2x128xf32>
    tpu.vector_store %arg14[%c6_315, %c0_316], %644 {strides = array<i32>} : memref<16x128xf32, #tpu.memory_space<vmem>>, vector<2x128xf32>,
    %c8_317 = arith.constant 8 : index
    %c0_318 = arith.constant 0 : index
    %646 = vector.load %arg13[%c8_317, %c0_318] : memref<16x128xf32, #tpu.memory_space<vmem>>, vector<2x128xf32>
    %c6_319 = arith.constant 6 : index
    %c0_320 = arith.constant 0 : index
    %647 = vector.load %arg13[%c6_319, %c0_320] : memref<16x128xf32, #tpu.memory_space<vmem>>, vector<2x128xf32>
    %648 = arith.select %21, %646, %647 : vector<2x128xi1>, vector<2x128xf32>
    %c8_321 = arith.constant 8 : index
    %c0_322 = arith.constant 0 : index
    %649 = vector.load %arg14[%c8_321, %c0_322] : memref<16x128xf32, #tpu.memory_space<vmem>>, vector<2x128xf32>
    tpu.vector_store %arg14[%c8_321, %c0_322], %648 {strides = array<i32>} : memref<16x128xf32, #tpu.memory_space<vmem>>, vector<2x128xf32>,
    %c10_323 = arith.constant 10 : index
    %c0_324 = arith.constant 0 : index
    %650 = vector.load %arg13[%c10_323, %c0_324] : memref<16x128xf32, #tpu.memory_space<vmem>>, vector<2x128xf32>
    %c4_325 = arith.constant 4 : index
    %c0_326 = arith.constant 0 : index
    %651 = vector.load %arg13[%c4_325, %c0_326] : memref<16x128xf32, #tpu.memory_space<vmem>>, vector<2x128xf32>
    %652 = arith.select %21, %650, %651 : vector<2x128xi1>, vector<2x128xf32>
    %c10_327 = arith.constant 10 : index
    %c0_328 = arith.constant 0 : index
    %653 = vector.load %arg14[%c10_327, %c0_328] : memref<16x128xf32, #tpu.memory_space<vmem>>, vector<2x128xf32>
    tpu.vector_store %arg14[%c10_327, %c0_328], %652 {strides = array<i32>} : memref<16x128xf32, #tpu.memory_space<vmem>>, vector<2x128xf32>,
    %c12_329 = arith.constant 12 : index
    %c0_330 = arith.constant 0 : index
    %654 = vector.load %arg13[%c12_329, %c0_330] : memref<16x128xf32, #tpu.memory_space<vmem>>, vector<2x128xf32>
    %c2_331 = arith.constant 2 : index
    %c0_332 = arith.constant 0 : index
    %655 = vector.load %arg13[%c2_331, %c0_332] : memref<16x128xf32, #tpu.memory_space<vmem>>, vector<2x128xf32>
    %656 = arith.select %21, %654, %655 : vector<2x128xi1>, vector<2x128xf32>
    %c12_333 = arith.constant 12 : index
    %c0_334 = arith.constant 0 : index
    %657 = vector.load %arg14[%c12_333, %c0_334] : memref<16x128xf32, #tpu.memory_space<vmem>>, vector<2x128xf32>
    tpu.vector_store %arg14[%c12_333, %c0_334], %656 {strides = array<i32>} : memref<16x128xf32, #tpu.memory_space<vmem>>, vector<2x128xf32>,
    %c14_335 = arith.constant 14 : index
    %c0_336 = arith.constant 0 : index
    %658 = vector.load %arg13[%c14_335, %c0_336] : memref<16x128xf32, #tpu.memory_space<vmem>>, vector<2x128xf32>
    %c0_337 = arith.constant 0 : index
    %c0_338 = arith.constant 0 : index
    %659 = vector.load %arg13[%c0_337, %c0_338] : memref<16x128xf32, #tpu.memory_space<vmem>>, vector<2x128xf32>
    %660 = arith.select %21, %658, %659 : vector<2x128xi1>, vector<2x128xf32>
    %c14_339 = arith.constant 14 : index
    %c0_340 = arith.constant 0 : index
    %661 = vector.load %arg14[%c14_339, %c0_340] : memref<16x128xf32, #tpu.memory_space<vmem>>, vector<2x128xf32>
    tpu.vector_store %arg14[%c14_339, %c0_340], %660 {strides = array<i32>} : memref<16x128xf32, #tpu.memory_space<vmem>>, vector<2x128xf32>,
    %c0_341 = arith.constant 0 : index
    %c0_342 = arith.constant 0 : index
    %662 = vector.load %arg14[%c0_341, %c0_342] : memref<16x128xf32, #tpu.memory_space<vmem>>, vector<16x128xf32>
    %c0_343 = arith.constant 0 : index
    %c0_344 = arith.constant 0 : index
    %663 = vector.load %arg7[%c0_343, %c0_344] : memref<1x128xf32, #tpu.memory_space<vmem>>, vector<1x128xf32>
    %664 = vector.broadcast %663 : vector<1x128xf32> to vector<16x128xf32>
    %665 = arith.mulf %662, %664 : vector<16x128xf32>
    %cst_345 = arith.constant dense<0.000000e+00> : vector<16xf32>
    %666 = vector.multi_reduction <add>, %665, %cst_345 [1] : vector<16x128xf32> to vector<16xf32>
    %667 = vector.shape_cast %666 : vector<16xf32> to vector<16x1xf32>
    %c0_346 = arith.constant 0 : index
    %c0_347 = arith.constant 0 : index
    %668 = vector.load %arg8[%c0_346, %c0_347] : memref<128x10xf32, #tpu.memory_space<vmem>>, vector<128x10xf32>
    %cst_348 = arith.constant dense<0.000000e+00> : vector<16x10xf32>
    %669 = tpu.matmul %662, %668, %cst_348 {dimension_numbers = #tpu.dot_dimension_numbers<[1], [0], [0], [1], [0, 0, 1, 1], [], []>} : vector<16x128xf32>, vector<128x10xf32>, vector<16x10xf32> -> vector<16x10xf32>
    %670 = vector.extract_strided_slice %667 {offsets = [0, 0], sizes = [2, 1], strides = [1, 1]} : vector<16x1xf32> to vector<2x1xf32>
    %671 = vector.extract_strided_slice %667 {offsets = [2, 0], sizes = [2, 1], strides = [1, 1]} : vector<16x1xf32> to vector<2x1xf32>
    %672 = arith.maximumf %670, %671 : vector<2x1xf32>
    %673 = vector.extract_strided_slice %667 {offsets = [4, 0], sizes = [2, 1], strides = [1, 1]} : vector<16x1xf32> to vector<2x1xf32>
    %674 = arith.maximumf %672, %673 : vector<2x1xf32>
    %675 = vector.extract_strided_slice %667 {offsets = [6, 0], sizes = [2, 1], strides = [1, 1]} : vector<16x1xf32> to vector<2x1xf32>
    %676 = arith.maximumf %674, %675 : vector<2x1xf32>
    %677 = vector.extract_strided_slice %667 {offsets = [8, 0], sizes = [2, 1], strides = [1, 1]} : vector<16x1xf32> to vector<2x1xf32>
    %678 = arith.maximumf %676, %677 : vector<2x1xf32>
    %679 = vector.extract_strided_slice %667 {offsets = [10, 0], sizes = [2, 1], strides = [1, 1]} : vector<16x1xf32> to vector<2x1xf32>
    %680 = arith.maximumf %678, %679 : vector<2x1xf32>
    %681 = vector.extract_strided_slice %667 {offsets = [12, 0], sizes = [2, 1], strides = [1, 1]} : vector<16x1xf32> to vector<2x1xf32>
    %682 = arith.maximumf %680, %681 : vector<2x1xf32>
    %683 = vector.extract_strided_slice %667 {offsets = [14, 0], sizes = [2, 1], strides = [1, 1]} : vector<16x1xf32> to vector<2x1xf32>
    %684 = arith.maximumf %682, %683 : vector<2x1xf32>
    %cst_349 = arith.constant 0.000000e+00 : f32
    %685 = vector.broadcast %cst_349 : f32 to vector<2x1xf32>
    %cst_350 = arith.constant 0.000000e+00 : f32
    %686 = vector.broadcast %cst_350 : f32 to vector<2x10xf32>
    %687 = vector.extract_strided_slice %667 {offsets = [0, 0], sizes = [2, 1], strides = [1, 1]} : vector<16x1xf32> to vector<2x1xf32>
    %688 = arith.subf %687, %684 : vector<2x1xf32>
    %689 = math.exp %688 : vector<2x1xf32>
    %690 = arith.addf %685, %689 : vector<2x1xf32>
    %691 = vector.extract_strided_slice %669 {offsets = [0, 0], sizes = [2, 10], strides = [1, 1]} : vector<16x10xf32> to vector<2x10xf32>
    %692 = vector.broadcast %689 : vector<2x1xf32> to vector<2x10xf32>
    %693 = arith.mulf %692, %691 : vector<2x10xf32>
    %694 = arith.addf %686, %693 : vector<2x10xf32>
    %695 = vector.extract_strided_slice %667 {offsets = [2, 0], sizes = [2, 1], strides = [1, 1]} : vector<16x1xf32> to vector<2x1xf32>
    %696 = arith.subf %695, %684 : vector<2x1xf32>
    %697 = math.exp %696 : vector<2x1xf32>
    %698 = arith.addf %690, %697 : vector<2x1xf32>
    %699 = vector.extract_strided_slice %669 {offsets = [2, 0], sizes = [2, 10], strides = [1, 1]} : vector<16x10xf32> to vector<2x10xf32>
    %700 = vector.broadcast %697 : vector<2x1xf32> to vector<2x10xf32>
    %701 = arith.mulf %700, %699 : vector<2x10xf32>
    %702 = arith.addf %694, %701 : vector<2x10xf32>
    %703 = vector.extract_strided_slice %667 {offsets = [4, 0], sizes = [2, 1], strides = [1, 1]} : vector<16x1xf32> to vector<2x1xf32>
    %704 = arith.subf %703, %684 : vector<2x1xf32>
    %705 = math.exp %704 : vector<2x1xf32>
    %706 = arith.addf %698, %705 : vector<2x1xf32>
    %707 = vector.extract_strided_slice %669 {offsets = [4, 0], sizes = [2, 10], strides = [1, 1]} : vector<16x10xf32> to vector<2x10xf32>
    %708 = vector.broadcast %705 : vector<2x1xf32> to vector<2x10xf32>
    %709 = arith.mulf %708, %707 : vector<2x10xf32>
    %710 = arith.addf %702, %709 : vector<2x10xf32>
    %711 = vector.extract_strided_slice %667 {offsets = [6, 0], sizes = [2, 1], strides = [1, 1]} : vector<16x1xf32> to vector<2x1xf32>
    %712 = arith.subf %711, %684 : vector<2x1xf32>
    %713 = math.exp %712 : vector<2x1xf32>
    %714 = arith.addf %706, %713 : vector<2x1xf32>
    %715 = vector.extract_strided_slice %669 {offsets = [6, 0], sizes = [2, 10], strides = [1, 1]} : vector<16x10xf32> to vector<2x10xf32>
    %716 = vector.broadcast %713 : vector<2x1xf32> to vector<2x10xf32>
    %717 = arith.mulf %716, %715 : vector<2x10xf32>
    %718 = arith.addf %710, %717 : vector<2x10xf32>
    %719 = vector.extract_strided_slice %667 {offsets = [8, 0], sizes = [2, 1], strides = [1, 1]} : vector<16x1xf32> to vector<2x1xf32>
    %720 = arith.subf %719, %684 : vector<2x1xf32>
    %721 = math.exp %720 : vector<2x1xf32>
    %722 = arith.addf %714, %721 : vector<2x1xf32>
    %723 = vector.extract_strided_slice %669 {offsets = [8, 0], sizes = [2, 10], strides = [1, 1]} : vector<16x10xf32> to vector<2x10xf32>
    %724 = vector.broadcast %721 : vector<2x1xf32> to vector<2x10xf32>
    %725 = arith.mulf %724, %723 : vector<2x10xf32>
    %726 = arith.addf %718, %725 : vector<2x10xf32>
    %727 = vector.extract_strided_slice %667 {offsets = [10, 0], sizes = [2, 1], strides = [1, 1]} : vector<16x1xf32> to vector<2x1xf32>
    %728 = arith.subf %727, %684 : vector<2x1xf32>
    %729 = math.exp %728 : vector<2x1xf32>
    %730 = arith.addf %722, %729 : vector<2x1xf32>
    %731 = vector.extract_strided_slice %669 {offsets = [10, 0], sizes = [2, 10], strides = [1, 1]} : vector<16x10xf32> to vector<2x10xf32>
    %732 = vector.broadcast %729 : vector<2x1xf32> to vector<2x10xf32>
    %733 = arith.mulf %732, %731 : vector<2x10xf32>
    %734 = arith.addf %726, %733 : vector<2x10xf32>
    %735 = vector.extract_strided_slice %667 {offsets = [12, 0], sizes = [2, 1], strides = [1, 1]} : vector<16x1xf32> to vector<2x1xf32>
    %736 = arith.subf %735, %684 : vector<2x1xf32>
    %737 = math.exp %736 : vector<2x1xf32>
    %738 = arith.addf %730, %737 : vector<2x1xf32>
    %739 = vector.extract_strided_slice %669 {offsets = [12, 0], sizes = [2, 10], strides = [1, 1]} : vector<16x10xf32> to vector<2x10xf32>
    %740 = vector.broadcast %737 : vector<2x1xf32> to vector<2x10xf32>
    %741 = arith.mulf %740, %739 : vector<2x10xf32>
    %742 = arith.addf %734, %741 : vector<2x10xf32>
    %743 = vector.extract_strided_slice %667 {offsets = [14, 0], sizes = [2, 1], strides = [1, 1]} : vector<16x1xf32> to vector<2x1xf32>
    %744 = arith.subf %743, %684 : vector<2x1xf32>
    %745 = math.exp %744 : vector<2x1xf32>
    %746 = arith.addf %738, %745 : vector<2x1xf32>
    %747 = vector.extract_strided_slice %669 {offsets = [14, 0], sizes = [2, 10], strides = [1, 1]} : vector<16x10xf32> to vector<2x10xf32>
    %748 = vector.broadcast %745 : vector<2x1xf32> to vector<2x10xf32>
    %749 = arith.mulf %748, %747 : vector<2x10xf32>
    %750 = arith.addf %742, %749 : vector<2x10xf32>
    %751 = vector.broadcast %746 : vector<2x1xf32> to vector<2x10xf32>
    %752 = arith.divf %750, %751 : vector<2x10xf32>
    %c0_351 = arith.constant 0 : index
    %c0_352 = arith.constant 0 : index
    %753 = vector.load %arg9[%c0_351, %c0_352] : memref<1x10xf32, #tpu.memory_space<vmem>>, vector<1x10xf32>
    %754 = vector.broadcast %753 : vector<1x10xf32> to vector<2x10xf32>
    %755 = arith.addf %752, %754 : vector<2x10xf32>
    %cst_353 = arith.constant dense<0xFF800000> : vector<2xf32>
    %756 = vector.multi_reduction <maximumf>, %755, %cst_353 [1] : vector<2x10xf32> to vector<2xf32>
    %757 = vector.shape_cast %756 : vector<2xf32> to vector<2x1xf32>
    %758 = vector.broadcast %757 : vector<2x1xf32> to vector<2x10xf32>
    %759 = arith.subf %755, %758 : vector<2x10xf32>
    %760 = math.exp %759 : vector<2x10xf32>
    %cst_354 = arith.constant dense<0.000000e+00> : vector<2xf32>
    %761 = vector.multi_reduction <add>, %760, %cst_354 [1] : vector<2x10xf32> to vector<2xf32>
    %762 = vector.shape_cast %761 : vector<2xf32> to vector<2x1xf32>
    %763 = vector.broadcast %762 : vector<2x1xf32> to vector<2x10xf32>
    %764 = arith.divf %760, %763 : vector<2x10xf32>
    %c0_355 = arith.constant 0 : index
    %c0_356 = arith.constant 0 : index
    %765 = vector.load %arg10[%c0_355, %c0_356] : memref<2x10xf32, #tpu.memory_space<vmem>>, vector<2x10xf32>
    tpu.vector_store %arg10[%c0_355, %c0_356], %764 {strides = array<i32>} : memref<2x10xf32, #tpu.memory_space<vmem>>, vector<2x10xf32>,
    return
  }
}

</mosaic_0001>

<llo_original>
// kernel: bilstm_predictor.1
$region0: #{bilstm_predictor.1}
  #allocation0 [shape = 'u32[]', space=smem, size = 0x4, offset = 0x4, fixed_abs, tag = 'smem constant byte address 0x4 - core index']
  #allocation1 [shape = 'u32[144,128]{1,0:T(1,128)}', space=vmem, size = 0x12000, scoped, tag = 'internal scratch']
  #allocation2 [shape = 'f32[16,512]{1,0:T(8,128)}', space=vmem, size = 0x8000, scoped, tag = 'scratch operand']
  #allocation3 [shape = 'f32[16,512]{1,0:T(8,128)}', space=vmem, size = 0x8000, scoped, tag = 'scratch operand']
  #allocation4 [shape = 'f32[16,128]{1,0:T(8,128)}', space=vmem, size = 0x2000, scoped, tag = 'scratch operand']
  #allocation5 [shape = 'f32[16,128]{1,0:T(8,128)}', space=vmem, size = 0x2000, scoped, tag = 'scratch operand']
  %s0 = inlined_call_operand.vmem [shape: f32[16,10], index: 0, kind: input, shape index: {}]
  %s1 = inlined_call_operand.vmem [shape: f32[10,512], index: 1, kind: input, shape index: {}]
  %s2 = inlined_call_operand.vmem [shape: f32[1,512], index: 2, kind: input, shape index: {}]
  %s3 = inlined_call_operand.hbm [shape: f32[128,512], index: 3, kind: input, shape index: {}]
  %s4 = inlined_call_operand.hbm [shape: f32[128,512], index: 4, kind: input, shape index: {}]
  %s5 = inlined_call_operand.vmem [shape: f32[1,512], index: 5, kind: input, shape index: {}]
  %s6 = inlined_call_operand.hbm [shape: f32[128,512], index: 6, kind: input, shape index: {}]
  %s7 = inlined_call_operand.vmem [shape: f32[1,128], index: 7, kind: input, shape index: {}]
  %s8 = inlined_call_operand.vmem [shape: f32[128,10], index: 8, kind: input, shape index: {}]
  %s9 = inlined_call_operand.vmem [shape: f32[1,10], index: 9, kind: input, shape index: {}]
  %s10 = inlined_call_operand.hbm [shape: f32[2,10], index: 10, kind: output, shape index: {}]
  %s11 = sld [smem:[#allocation0]]
  $region62: #{bilstm_predictor.1} parent=0
    _
  %s13 = ssub.s32 1, %s11
  %s14 = scalar_select 0, %s13, %s11
  $region1: #{bilstm_predictor.1} parent=0
    #allocation6 [shape = 'u8[262144]{0}', space=vmem, size = 0x40000, scoped, tag = 'input window, operand 3, single buffered']
    #allocation7 [shape = 's32[1]{0}', space=sflag, size = 0x4, scoped, tag = 'scoped memory for bilstm_predictor.1']
    #allocation8 [shape = 's32[1]{0}', space=sflag, size = 0x4, scoped, tag = 'scoped memory for bilstm_predictor.1']
    #allocation9 [shape = 'u8[262144]{0}', space=vmem, size = 0x40000, scoped, tag = 'input window, operand 4, single buffered']
    #allocation10 [shape = 's32[1]{0}', space=sflag, size = 0x4, scoped, tag = 'scoped memory for bilstm_predictor.1']
    #allocation11 [shape = 'u8[262144]{0}', space=vmem, size = 0x40000, scoped, tag = 'input window, operand 6, single buffered']
    #allocation12 [shape = 'u8[1024]{0}', space=vmem, size = 0x400, scoped, tag = 'output window, operand 0, single buffered']
    %15 = vsyncpa [#allocation7], 0
    %16 = vsyncpa [#allocation10], 0
    %17 = vsyncpa [#allocation8], 0
    // Predicated region
    $region2: #{bilstm_predictor.1} parent=1 // pred_check
      _
    $region3: #{bilstm_predictor.1} parent=1 // pred_check_branch
      %19 = sbr.rel (0) target = $region5
    $region4: #{bilstm_predictor.1} parent=1 // pred_region
      _
    $region5: #{bilstm_predictor.1} parent=1 // pred_fallthru
      _
    // Predicated region
    $region6: #{bilstm_predictor.1} parent=1 // pred_check
      _
    $region7: #{bilstm_predictor.1} parent=1 // pred_check_branch
      %21 = sbr.rel (0) target = $region9
    $region8: #{bilstm_predictor.1} parent=1 // pred_region
      _
    $region9: #{bilstm_predictor.1} parent=1 // pred_fallthru
      _
    // Predicated region
    $region10: #{bilstm_predictor.1} parent=1 // pred_check
      _
    $region11: #{bilstm_predictor.1} parent=1 // pred_check_branch
      %23 = sbr.rel (0) target = $region13
    $region12: #{bilstm_predictor.1} parent=1 // pred_region
      _
    $region13: #{bilstm_predictor.1} parent=1 // pred_fallthru
      _
    // Predicated region
    $region14: #{bilstm_predictor.1} parent=1 // pred_check
      _
    $region15: #{bilstm_predictor.1} parent=1 // pred_check_branch
      %25 = sbr.rel (0) target = $region17
    $region16: #{bilstm_predictor.1} parent=1 // pred_region
      %s27 = ssub.s32 8192, 8192
      %28 = vsyncadd [#allocation7], %s27
      %s29 = sshll.u32 [#allocation6], 4
      %s30 = int_to_ptr.vmem [resolvable:$true] %s29
      %35 = dma.hbm_to_vmem [thread:$0]  %s3, 8192, %s30, [#allocation7], 512, 512, 32
    $region17: #{bilstm_predictor.1} parent=1 // pred_fallthru
      _
    // Predicated region
    $region18: #{bilstm_predictor.1} parent=1 // pred_check
      _
    $region19: #{bilstm_predictor.1} parent=1 // pred_check_branch
      %37 = sbr.rel (0) target = $region21
    $region20: #{bilstm_predictor.1} parent=1 // pred_region
      %s39 = ssub.s32 8192, 8192
      %40 = vsyncadd [#allocation10], %s39
      %s41 = sshll.u32 [#allocation9], 4
      %s42 = int_to_ptr.vmem [resolvable:$true] %s41
      %47 = dma.hbm_to_vmem [thread:$0]  %s4, 8192, %s42, [#allocation10], 512, 512, 32
    $region21: #{bilstm_predictor.1} parent=1 // pred_fallthru
      _
    // Predicated region
    $region22: #{bilstm_predictor.1} parent=1 // pred_check
      _
    $region23: #{bilstm_predictor.1} parent=1 // pred_check_branch
      %49 = sbr.rel (0) target = $region25
    $region24: #{bilstm_predictor.1} parent=1 // pred_region
      _
    $region25: #{bilstm_predictor.1} parent=1 // pred_fallthru
      _
    // Predicated region
    $region26: #{bilstm_predictor.1} parent=1 // pred_check
      _
    $region27: #{bilstm_predictor.1} parent=1 // pred_check_branch
      %51 = sbr.rel (0) target = $region29
    $region28: #{bilstm_predictor.1} parent=1 // pred_region
      %s53 = ssub.s32 8192, 8192
      %54 = vsyncadd [#allocation10], %s53
      %s55 = sshll.u32 [#allocation11], 4
      %s56 = int_to_ptr.vmem [resolvable:$true] %s55
      %61 = dma.hbm_to_vmem [thread:$0]  %s6, 8192, %s56, [#allocation10], 512, 512, 32
    $region29: #{bilstm_predictor.1} parent=1 // pred_fallthru
      _
    // Predicated region
    $region30: #{bilstm_predictor.1} parent=1 // pred_check
      _
    $region31: #{bilstm_predictor.1} parent=1 // pred_check_branch
      %63 = sbr.rel (0) target = $region33
    $region32: #{bilstm_predictor.1} parent=1 // pred_region
      _
    $region33: #{bilstm_predictor.1} parent=1 // pred_fallthru
      _
    // Predicated region
    $region34: #{bilstm_predictor.1} parent=1 // pred_check
      _
    $region35: #{bilstm_predictor.1} parent=1 // pred_check_branch
      %65 = sbr.rel (0) target = $region37
    $region36: #{bilstm_predictor.1} parent=1 // pred_region
      _
    $region37: #{bilstm_predictor.1} parent=1 // pred_fallthru
      _
    // Predicated region
    $region38: #{bilstm_predictor.1} parent=1 // pred_check
      _
    $region39: #{bilstm_predictor.1} parent=1 // pred_check_branch
      %67 = sbr.rel (0) target = $region41
    $region40: #{bilstm_predictor.1} parent=1 // pred_region
      _
    $region41: #{bilstm_predictor.1} parent=1 // pred_fallthru
      _
    // Predicated region
    $region42: #{bilstm_predictor.1} parent=1 // pred_check
      _
    $region43: #{bilstm_predictor.1} parent=1 // pred_check_branch
      %69 = sbr.rel (0) target = $region45
    $region44: #{bilstm_predictor.1} parent=1 // pred_region
      %70 = dma.done [#allocation7], 8192
    $region45: #{bilstm_predictor.1} parent=1 // pred_fallthru
      _
    // Predicated region
    $region46: #{bilstm_predictor.1} parent=1 // pred_check
      _
    $region47: #{bilstm_predictor.1} parent=1 // pred_check_branch
      %72 = sbr.rel (0) target = $region49
    $region48: #{bilstm_predictor.1} parent=1 // pred_region
      %73 = dma.done [#allocation10], 8192
    $region49: #{bilstm_predictor.1} parent=1 // pred_fallthru
      _
    // Predicated region
    $region50: #{bilstm_predictor.1} parent=1 // pred_check
      _
    $region51: #{bilstm_predictor.1} parent=1 // pred_check_branch
      %75 = sbr.rel (0) target = $region53
    $region52: #{bilstm_predictor.1} parent=1 // pred_region
      %76 = dma.done [#allocation10], 8192
    $region53: #{bilstm_predictor.1} parent=1 // pred_fallthru
      _
    %v77 = vlaneseq
    %v78 = vand.u32 %v77, 127
    %v79 = vadd.s32 %v78, 128
    %v80 = vadd.s32 %v78, 256
    %v81 = vadd.s32 %v78, 384
    %vm82 = vcmp.lt.s32.totalorder %v78, 0
    %v83 = vsub.s32 0, %v78
    %v84 = vsel %vm82, %v83, %v78
    %v85 = vshrl.u32 %v84, 7
    %v86 = vand.u32 %v84, 127
    %v87 = vsub.s32 0, %v86
    %v88 = vsel %vm82, %v87, %v86
    %vm89 = vcmp.lt.s32.totalorder %v79, 0
    %v90 = vsub.s32 0, %v79
    %v91 = vsel %vm89, %v90, %v79
    %v92 = vshrl.u32 %v91, 7
    %v93 = vand.u32 %v91, 127
    %v94 = vsub.s32 0, %v93
    %v95 = vsel %vm89, %v94, %v93
    %vm96 = vcmp.lt.s32.totalorder %v80, 0
    %v97 = vsub.s32 0, %v80
    %v98 = vsel %vm96, %v97, %v80
    %v99 = vshrl.u32 %v98, 7
    %v100 = vand.u32 %v98, 127
    %v101 = vsub.s32 0, %v100
    %v102 = vsel %vm96, %v101, %v100
    %vm103 = vcmp.lt.s32.totalorder %v81, 0
    %v104 = vsub.s32 0, %v81
    %v105 = vsel %vm103, %v104, %v81
    %v106 = vshrl.u32 %v105, 7
    %v107 = vand.u32 %v105, 127
    %v108 = vsub.s32 0, %v107
    %v109 = vsel %vm103, %v108, %v107
    %vm110 = vcmp.ne.s32.totalorder %v88, 0
    %vm111 = vcmp.ne.s32.totalorder %v95, 0
    %vm112 = vcmp.ne.s32.totalorder %v102, 0
    %vm113 = vcmp.ne.s32.totalorder %v109, 0
    %vm114 = vcmp.lt.s32.totalorder %v88, 0
    %vm115 = vcmp.lt.s32.totalorder %v95, 0
    %vm116 = vcmp.lt.s32.totalorder %v102, 0
    %vm117 = vcmp.lt.s32.totalorder %v109, 0
    %vm118 = vmand %vm114, %vm110
    %vm119 = vmand %vm115, %vm111
    %vm120 = vmand %vm116, %vm112
    %vm121 = vmand %vm117, %vm113
    %v122 = vadd.s32 %v88, 128
    %v123 = vadd.s32 %v95, 128
    %v124 = vadd.s32 %v102, 128
    %v125 = vadd.s32 %v109, 128
    %v126 = vsel %vm118, %v122, %v88
    %v127 = vsel %vm119, %v123, %v95
    %v128 = vsel %vm120, %v124, %v102
    %v129 = vsel %vm121, %v125, %v109
    %vm130 = vcmp.lt.s32.totalorder %v126, 64
    %vm131 = vcmp.lt.s32.totalorder %v127, 64
    %vm132 = vcmp.lt.s32.totalorder %v128, 64
    %vm133 = vcmp.lt.s32.totalorder %v129, 64
    %vm134 = vcmp.lt.s32.totalorder %v78, 64
    %v135 = vld [vmem:[%s0] sm:$0xff]
    %v136 = vld [vmem:[%s0 + $0x8] sm:$0xff]
    %v137 = vld [vmem:[%s1] sm:$0xff]
    %v138 = vld [vmem:[%s1 + $0x8] sm:$0xff]
    %v139 = vld [vmem:[%s1 + $0x10] sm:$0xff]
    %v140 = vld [vmem:[%s1 + $0x18] sm:$0xff]
    %v141 = vld [vmem:[%s1 + $0x20] sm:$0x3]
    %v142 = vld [vmem:[%s1 + $0x28] sm:$0x3]
    %v143 = vld [vmem:[%s1 + $0x30] sm:$0x3]
    %v144 = vld [vmem:[%s1 + $0x38] sm:$0x3]
    %vm145 = vcmask 80896
    %v147 = vsel %vm145, %v135, 0
    %v150 = vsel %vm145, %v136, 0
    %vm152 = vcmask 1041408
    %v154 = vsel %vm152, %v141, 0
    %v157 = vsel %vm152, %v142, 0
    %v160 = vsel %vm152, %v143, 0
    %v163 = vsel %vm152, %v144, 0
    %165 = vmatprep.subr.mxu0 0.0
    %166 = vmatpush1.msra.mxu0 0.0
    %167 = vmatprep.subr.mxu0 0.0
    %168 = vmatpush1.msra.mxu0 0.0
    %169 = vmatprep.subr.mxu0 0.0
    %170 = vmatpush1.msra.mxu0 0.0
    %171 = vmatprep.subr.mxu0 0.0
    %172 = vmatpush1.msra.mxu0 0.0
    %173 = vmatprep.subr.mxu0 0.0
    %174 = vmatpush1.msra.mxu0 0.0
    %175 = vmatprep.subr.mxu0 0.0
    %176 = vmatpush1.msra.mxu0 0.0
    %177 = vmatprep.subr.mxu0 0.0
    %178 = vmatpush1.msra.mxu0 0.0
    %179 = vmatprep.subr.mxu0 0.0
    %180 = vmatpush1.msra.mxu0 0.0
    %181 = vmatprep.subr.mxu0 0.0
    %182 = vmatpush1.msra.mxu0 0.0
    %183 = vmatprep.subr.mxu0 0.0
    %184 = vmatpush1.msra.mxu0 0.0
    %185 = vmatprep.subr.mxu0 0.0
    %186 = vmatpush1.msra.mxu0 0.0
    %187 = vmatprep.subr.mxu0 0.0
    %188 = vmatpush1.msra.mxu0 0.0
    %189 = vmatprep.subr.mxu0 0.0
    %190 = vmatpush1.msra.mxu0 0.0
    %191 = vmatprep.subr.mxu0 0.0
    %192 = vmatpush1.msra.mxu0 0.0
    %193 = vmatprep.subr.mxu0 %v157
    %194 = vmatpush1.msra.mxu0 %v154
    %195 = vmatprep.subr.mxu0 %v138
    %196 = vmatpush1.msra.mxu0 %v137
    %197 = vmatprep.subr.mxu0 0.0
    %198 = vmatpush2.msra.mxu0 0.0
    %199 = vmatprep.subr.mxu0 0.0
    %200 = vmatpush2.msra.mxu0 0.0
    %201 = vmatprep.subr.mxu0 0.0
    %202 = vmatpush2.msra.mxu0 0.0
    %203 = vmatprep.subr.mxu0 0.0
    %204 = vmatpush2.msra.mxu0 0.0
    %205 = vmatprep.subr.mxu0 0.0
    %206 = vmatpush2.msra.mxu0 0.0
    %207 = vmatprep.subr.mxu0 0.0
    %208 = vmatpush2.msra.mxu0 0.0
    %209 = vmatprep.subr.mxu0 0.0
    %210 = vmatpush2.msra.mxu0 0.0
    %211 = vmatprep.subr.mxu0 0.0
    %212 = vmatpush2.msra.mxu0 0.0
    %213 = vmatprep.subr.mxu0 0.0
    %214 = vmatpush2.msra.mxu0 0.0
    %215 = vmatprep.subr.mxu0 0.0
    %216 = vmatpush2.msra.mxu0 0.0
    %217 = vmatprep.subr.mxu0 0.0
    %218 = vmatpush2.msra.mxu0 0.0
    %219 = vmatprep.subr.mxu0 0.0
    %220 = vmatpush2.msra.mxu0 0.0
    %221 = vmatprep.subr.mxu0 0.0
    %222 = vmatpush2.msra.mxu0 0.0
    %223 = vmatprep.subr.mxu0 0.0
    %224 = vmatpush2.msra.mxu0 0.0
    %225 = vmatprep.subr.mxu0 0.0
    %226 = vmatpush2.msra.mxu0 0.0
    %227 = vmatprep.subr.mxu0 0.0
    %228 = vmatpush2.msra.mxu0 0.0
    %229 = vmatprep.mubr.f32.mxu0 0.0
    %230 = vmatmul.mubr.f32.gmra.mxu0 %v147
    %v231 = vpop.f32.mrf.mxu0
    %v232 = vadd.f32 0.0, %v231
    %v233 = vpop.f32.mrf.mxu0
    %v234 = vadd.f32 0.0, %v233
    %235 = vmatprep.mubr.f32.mxu0 0.0
    %236 = vmatmul.mubr.f32.gmra.mxu0 %v150
    %v237 = vpop.f32.mrf.mxu0
    %v238 = vadd.f32 0.0, %v237
    %v239 = vpop.f32.mrf.mxu0
    %v240 = vadd.f32 0.0, %v239
    %241 = vdwg.mxu0
    %242 = vmatprep.subr.mxu0 0.0
    %243 = vmatpush1.msra.mxu0 0.0
    %244 = vmatprep.subr.mxu0 0.0
    %245 = vmatpush1.msra.mxu0 0.0
    %246 = vmatprep.subr.mxu0 0.0
    %247 = vmatpush1.msra.mxu0 0.0
    %248 = vmatprep.subr.mxu0 0.0
    %249 = vmatpush1.msra.mxu0 0.0
    %250 = vmatprep.subr.mxu0 0.0
    %251 = vmatpush1.msra.mxu0 0.0
    %252 = vmatprep.subr.mxu0 0.0
    %253 = vmatpush1.msra.mxu0 0.0
    %254 = vmatprep.subr.mxu0 0.0
    %255 = vmatpush1.msra.mxu0 0.0
    %256 = vmatprep.subr.mxu0 0.0
    %257 = vmatpush1.msra.mxu0 0.0
    %258 = vmatprep.subr.mxu0 0.0
    %259 = vmatpush1.msra.mxu0 0.0
    %260 = vmatprep.subr.mxu0 0.0
    %261 = vmatpush1.msra.mxu0 0.0
    %262 = vmatprep.subr.mxu0 0.0
    %263 = vmatpush1.msra.mxu0 0.0
    %264 = vmatprep.subr.mxu0 0.0
    %265 = vmatpush1.msra.mxu0 0.0
    %266 = vmatprep.subr.mxu0 0.0
    %267 = vmatpush1.msra.mxu0 0.0
    %268 = vmatprep.subr.mxu0 0.0
    %269 = vmatpush1.msra.mxu0 0.0
    %270 = vmatprep.subr.mxu0 %v163
    %271 = vmatpush1.msra.mxu0 %v160
    %272 = vmatprep.subr.mxu0 %v140
    %273 = vmatpush1.msra.mxu0 %v139
    %274 = vmatprep.subr.mxu0 0.0
    %275 = vmatpush2.msra.mxu0 0.0
    %276 = vmatprep.subr.mxu0 0.0
    %277 = vmatpush2.msra.mxu0 0.0
    %278 = vmatprep.subr.mxu0 0.0
    %279 = vmatpush2.msra.mxu0 0.0
    %280 = vmatprep.subr.mxu0 0.0
    %281 = vmatpush2.msra.mxu0 0.0
    %282 = vmatprep.subr.mxu0 0.0
    %283 = vmatpush2.msra.mxu0 0.0
    %284 = vmatprep.subr.mxu0 0.0
    %285 = vmatpush2.msra.mxu0 0.0
    %286 = vmatprep.subr.mxu0 0.0
    %287 = vmatpush2.msra.mxu0 0.0
    %288 = vmatprep.subr.mxu0 0.0
    %289 = vmatpush2.msra.mxu0 0.0
    %290 = vmatprep.subr.mxu0 0.0
    %291 = vmatpush2.msra.mxu0 0.0
    %292 = vmatprep.subr.mxu0 0.0
    %293 = vmatpush2.msra.mxu0 0.0
    %294 = vmatprep.subr.mxu0 0.0
    %295 = vmatpush2.msra.mxu0 0.0
    %296 = vmatprep.subr.mxu0 0.0
    %297 = vmatpush2.msra.mxu0 0.0
    %298 = vmatprep.subr.mxu0 0.0
    %299 = vmatpush2.msra.mxu0 0.0
    %300 = vmatprep.subr.mxu0 0.0
    %301 = vmatpush2.msra.mxu0 0.0
    %302 = vmatprep.subr.mxu0 0.0
    %303 = vmatpush2.msra.mxu0 0.0
    %304 = vmatprep.subr.mxu0 0.0
    %305 = vmatpush2.msra.mxu0 0.0
    %306 = vmatprep.mubr.f32.mxu0 0.0
    %307 = vmatmul.mubr.f32.gmra.mxu0 %v147
    %v308 = vpop.f32.mrf.mxu0
    %v309 = vadd.f32 0.0, %v308
    %v310 = vpop.f32.mrf.mxu0
    %v311 = vadd.f32 0.0, %v310
    %312 = vmatprep.mubr.f32.mxu0 0.0
    %313 = vmatmul.mubr.f32.gmra.mxu0 %v150
    %v314 = vpop.f32.mrf.mxu0
    %v315 = vadd.f32 0.0, %v314
    %v316 = vpop.f32.mrf.mxu0
    %v317 = vadd.f32 0.0, %v316
    %318 = vdwg.mxu0
    %319 = vst [vmem:[#allocation2] sm:$0xff] %v232
    %320 = vst [vmem:[#allocation2 + $0x8] sm:$0xff] %v234
    %321 = vst [vmem:[#allocation2 + $0x10] sm:$0xff] %v309
    %322 = vst [vmem:[#allocation2 + $0x18] sm:$0xff] %v311
    %323 = vst [vmem:[#allocation2 + $0x20] sm:$0xff] %v238
    %324 = vst [vmem:[#allocation2 + $0x28] sm:$0xff] %v240
    %325 = vst [vmem:[#allocation2 + $0x30] sm:$0xff] %v315
    %326 = vst [vmem:[#allocation2 + $0x38] sm:$0xff] %v317
    %v327 = vld [vmem:[%s2] sm:$0xf]
    %v328 = vld [vmem:[#allocation2] sm:$0x3]
    %v329 = vld [vmem:[#allocation2 + $0x8] sm:$0x3]
    %v330 = vld [vmem:[#allocation2 + $0x10] sm:$0x3]
    %v331 = vld [vmem:[#allocation2 + $0x18] sm:$0x3]
    %v332 = vld [vmem:[#allocation2 + $0x20] sm:$0xc0]
    %v333 = vld [vmem:[#allocation2 + $0x28] sm:$0xc0]
    %v334 = vld [vmem:[#allocation2 + $0x30] sm:$0xc0]
    %v335 = vld [vmem:[#allocation2 + $0x38] sm:$0xc0]
    %v340 = vrot.slane %v332, 6
    %v341 = vrot.slane %v333, 6
    %v342 = vrot.slane %v334, 6
    %v343 = vrot.slane %v335, 6
    %v348 = vsel %vm130, %v328, %v340
    %v349 = vsel %vm131, %v329, %v341
    %v350 = vsel %vm132, %v330, %v342
    %v351 = vsel %vm133, %v331, %v343
    %v353 = vlaneseq
    %v354 = vshrl.u32 %v353, 7
    %v355 = vsub.s32 0, %v354
    %v356 = vrot.slane %v327, %v355
    %v357 = vlaneseq
    %v358 = vshrl.u32 %v357, 7
    %v359 = vsub.s32 1, %v358
    %v360 = vrot.slane %v327, %v359
    %v361 = vlaneseq
    %v362 = vshrl.u32 %v361, 7
    %v363 = vsub.s32 2, %v362
    %v364 = vrot.slane %v327, %v363
    %v365 = vlaneseq
    %v366 = vshrl.u32 %v365, 7
    %v367 = vsub.s32 3, %v366
    %v368 = vrot.slane %v327, %v367
    %v373 = vadd.f32 %v348, %v356
    %v374 = vadd.f32 %v349, %v360
    %v375 = vadd.f32 %v350, %v364
    %v376 = vadd.f32 %v351, %v368
    %377 = vst [vmem:[#allocation3] sm:$0x3] %v373
    %378 = vst [vmem:[#allocation3 + $0x8] sm:$0x3] %v374
    %379 = vst [vmem:[#allocation3 + $0x10] sm:$0x3] %v375
    %380 = vst [vmem:[#allocation3 + $0x18] sm:$0x3] %v376
    %v381 = vld [vmem:[#allocation2] sm:$0xc]
    %v382 = vld [vmem:[#allocation2 + $0x8] sm:$0xc]
    %v383 = vld [vmem:[#allocation2 + $0x10] sm:$0xc]
    %v384 = vld [vmem:[#allocation2 + $0x18] sm:$0xc]
    %v385 = vld [vmem:[#allocation2 + $0x20] sm:$0x30]
    %v386 = vld [vmem:[#allocation2 + $0x28] sm:$0x30]
    %v387 = vld [vmem:[#allocation2 + $0x30] sm:$0x30]
    %v388 = vld [vmem:[#allocation2 + $0x38] sm:$0x30]
    %v393 = vrot.slane %v385, 2
    %v394 = vrot.slane %v386, 2
    %v395 = vrot.slane %v387, 2
    %v396 = vrot.slane %v388, 2
    %v401 = vsel %vm130, %v381, %v393
    %v402 = vsel %vm131, %v382, %v394
    %v403 = vsel %vm132, %v383, %v395
    %v404 = vsel %vm133, %v384, %v396
    %v405 = vadd.f32 %v401, %v356
    %v406 = vadd.f32 %v402, %v360
    %v407 = vadd.f32 %v403, %v364
    %v408 = vadd.f32 %v404, %v368
    %409 = vst [vmem:[#allocation3] sm:$0xc] %v405
    %410 = vst [vmem:[#allocation3 + $0x8] sm:$0xc] %v406
    %411 = vst [vmem:[#allocation3 + $0x10] sm:$0xc] %v407
    %412 = vst [vmem:[#allocation3 + $0x18] sm:$0xc] %v408
    %v413 = vld [vmem:[#allocation2] sm:$0x30]
    %v414 = vld [vmem:[#allocation2 + $0x8] sm:$0x30]
    %v415 = vld [vmem:[#allocation2 + $0x10] sm:$0x30]
    %v416 = vld [vmem:[#allocation2 + $0x18] sm:$0x30]
    %v417 = vld [vmem:[#allocation2 + $0x20] sm:$0xc]
    %v418 = vld [vmem:[#allocation2 + $0x28] sm:$0xc]
    %v419 = vld [vmem:[#allocation2 + $0x30] sm:$0xc]
    %v420 = vld [vmem:[#allocation2 + $0x38] sm:$0xc]
    %v425 = vrot.slane %v417, 6
    %v426 = vrot.slane %v418, 6
    %v427 = vrot.slane %v419, 6
    %v428 = vrot.slane %v420, 6
    %v433 = vsel %vm130, %v413, %v425
    %v434 = vsel %vm131, %v414, %v426
    %v435 = vsel %vm132, %v415, %v427
    %v436 = vsel %vm133, %v416, %v428
    %v437 = vadd.f32 %v433, %v356
    %v438 = vadd.f32 %v434, %v360
    %v439 = vadd.f32 %v435, %v364
    %v440 = vadd.f32 %v436, %v368
    %441 = vst [vmem:[#allocation3] sm:$0x30] %v437
    %442 = vst [vmem:[#allocation3 + $0x8] sm:$0x30] %v438
    %443 = vst [vmem:[#allocation3 + $0x10] sm:$0x30] %v439
    %444 = vst [vmem:[#allocation3 + $0x18] sm:$0x30] %v440
    %v445 = vld [vmem:[#allocation2] sm:$0xc0]
    %v446 = vld [vmem:[#allocation2 + $0x8] sm:$0xc0]
    %v447 = vld [vmem:[#allocation2 + $0x10] sm:$0xc0]
    %v448 = vld [vmem:[#allocation2 + $0x18] sm:$0xc0]
    %v449 = vld [vmem:[#allocation2 + $0x20] sm:$0x3]
    %v450 = vld [vmem:[#allocation2 + $0x28] sm:$0x3]
    %v451 = vld [vmem:[#allocation2 + $0x30] sm:$0x3]
    %v452 = vld [vmem:[#allocation2 + $0x38] sm:$0x3]
    %v457 = vrot.slane %v449, 2
    %v458 = vrot.slane %v450, 2
    %v459 = vrot.slane %v451, 2
    %v460 = vrot.slane %v452, 2
    %v465 = vsel %vm130, %v445, %v457
    %v466 = vsel %vm131, %v446, %v458
    %v467 = vsel %vm132, %v447, %v459
    %v468 = vsel %vm133, %v448, %v460
    %v469 = vadd.f32 %v465, %v356
    %v470 = vadd.f32 %v466, %v360
    %v471 = vadd.f32 %v467, %v364
    %v472 = vadd.f32 %v468, %v368
    %473 = vst [vmem:[#allocation3] sm:$0xc0] %v469
    %474 = vst [vmem:[#allocation3 + $0x8] sm:$0xc0] %v470
    %475 = vst [vmem:[#allocation3 + $0x10] sm:$0xc0] %v471
    %476 = vst [vmem:[#allocation3 + $0x18] sm:$0xc0] %v472
    %v477 = vld [vmem:[#allocation2 + $0x20] sm:$0x3]
    %v478 = vld [vmem:[#allocation2 + $0x28] sm:$0x3]
    %v479 = vld [vmem:[#allocation2 + $0x30] sm:$0x3]
    %v480 = vld [vmem:[#allocation2 + $0x38] sm:$0x3]
    %v481 = vld [vmem:[#allocation2] sm:$0xc0]
    %v482 = vld [vmem:[#allocation2 + $0x8] sm:$0xc0]
    %v483 = vld [vmem:[#allocation2 + $0x10] sm:$0xc0]
    %v484 = vld [vmem:[#allocation2 + $0x18] sm:$0xc0]
    %v489 = vrot.slane %v481, 6
    %v490 = vrot.slane %v482, 6
    %v491 = vrot.slane %v483, 6
    %v492 = vrot.slane %v484, 6
    %v497 = vsel %vm130, %v477, %v489
    %v498 = vsel %vm131, %v478, %v490
    %v499 = vsel %vm132, %v479, %v491
    %v500 = vsel %vm133, %v480, %v492
    %v501 = vadd.f32 %v497, %v356
    %v502 = vadd.f32 %v498, %v360
    %v503 = vadd.f32 %v499, %v364
    %v504 = vadd.f32 %v500, %v368
    %505 = vst [vmem:[#allocation3 + $0x20] sm:$0x3] %v501
    %506 = vst [vmem:[#allocation3 + $0x28] sm:$0x3] %v502
    %507 = vst [vmem:[#allocation3 + $0x30] sm:$0x3] %v503
    %508 = vst [vmem:[#allocation3 + $0x38] sm:$0x3] %v504
    %v509 = vld [vmem:[#allocation2 + $0x20] sm:$0xc]
    %v510 = vld [vmem:[#allocation2 + $0x28] sm:$0xc]
    %v511 = vld [vmem:[#allocation2 + $0x30] sm:$0xc]
    %v512 = vld [vmem:[#allocation2 + $0x38] sm:$0xc]
    %v513 = vld [vmem:[#allocation2] sm:$0x30]
    %v514 = vld [vmem:[#allocation2 + $0x8] sm:$0x30]
    %v515 = vld [vmem:[#allocation2 + $0x10] sm:$0x30]
    %v516 = vld [vmem:[#allocation2 + $0x18] sm:$0x30]
    %v521 = vrot.slane %v513, 2
    %v522 = vrot.slane %v514, 2
    %v523 = vrot.slane %v515, 2
    %v524 = vrot.slane %v516, 2
    %v529 = vsel %vm130, %v509, %v521
    %v530 = vsel %vm131, %v510, %v522
    %v531 = vsel %vm132, %v511, %v523
    %v532 = vsel %vm133, %v512, %v524
    %v533 = vadd.f32 %v529, %v356
    %v534 = vadd.f32 %v530, %v360
    %v535 = vadd.f32 %v531, %v364
    %v536 = vadd.f32 %v532, %v368
    %537 = vst [vmem:[#allocation3 + $0x20] sm:$0xc] %v533
    %538 = vst [vmem:[#allocation3 + $0x28] sm:$0xc] %v534
    %539 = vst [vmem:[#allocation3 + $0x30] sm:$0xc] %v535
    %540 = vst [vmem:[#allocation3 + $0x38] sm:$0xc] %v536
    %v541 = vld [vmem:[#allocation2 + $0x20] sm:$0x30]
    %v542 = vld [vmem:[#allocation2 + $0x28] sm:$0x30]
    %v543 = vld [vmem:[#allocation2 + $0x30] sm:$0x30]
    %v544 = vld [vmem:[#allocation2 + $0x38] sm:$0x30]
    %v545 = vld [vmem:[#allocation2] sm:$0xc]
    %v546 = vld [vmem:[#allocation2 + $0x8] sm:$0xc]
    %v547 = vld [vmem:[#allocation2 + $0x10] sm:$0xc]
    %v548 = vld [vmem:[#allocation2 + $0x18] sm:$0xc]
    %v553 = vrot.slane %v545, 6
    %v554 = vrot.slane %v546, 6
    %v555 = vrot.slane %v547, 6
    %v556 = vrot.slane %v548, 6
    %v561 = vsel %vm130, %v541, %v553
    %v562 = vsel %vm131, %v542, %v554
    %v563 = vsel %vm132, %v543, %v555
    %v564 = vsel %vm133, %v544, %v556
    %v565 = vadd.f32 %v561, %v356
    %v566 = vadd.f32 %v562, %v360
    %v567 = vadd.f32 %v563, %v364
    %v568 = vadd.f32 %v564, %v368
    %569 = vst [vmem:[#allocation3 + $0x20] sm:$0x30] %v565
    %570 = vst [vmem:[#allocation3 + $0x28] sm:$0x30] %v566
    %571 = vst [vmem:[#allocation3 + $0x30] sm:$0x30] %v567
    %572 = vst [vmem:[#allocation3 + $0x38] sm:$0x30] %v568
    %v573 = vld [vmem:[#allocation2 + $0x20] sm:$0xc0]
    %v574 = vld [vmem:[#allocation2 + $0x28] sm:$0xc0]
    %v575 = vld [vmem:[#allocation2 + $0x30] sm:$0xc0]
    %v576 = vld [vmem:[#allocation2 + $0x38] sm:$0xc0]
    %v577 = vld [vmem:[#allocation2] sm:$0x3]
    %v578 = vld [vmem:[#allocation2 + $0x8] sm:$0x3]
    %v579 = vld [vmem:[#allocation2 + $0x10] sm:$0x3]
    %v580 = vld [vmem:[#allocation2 + $0x18] sm:$0x3]
    %v585 = vrot.slane %v577, 2
    %v586 = vrot.slane %v578, 2
    %v587 = vrot.slane %v579, 2
    %v588 = vrot.slane %v580, 2
    %v593 = vsel %vm130, %v573, %v585
    %v594 = vsel %vm131, %v574, %v586
    %v595 = vsel %vm132, %v575, %v587
    %v596 = vsel %vm133, %v576, %v588
    %v597 = vadd.f32 %v593, %v356
    %v598 = vadd.f32 %v594, %v360
    %v599 = vadd.f32 %v595, %v364
    %v600 = vadd.f32 %v596, %v368
    %601 = vst [vmem:[#allocation3 + $0x20] sm:$0xc0] %v597
    %602 = vst [vmem:[#allocation3 + $0x28] sm:$0xc0] %v598
    %603 = vst [vmem:[#allocation3 + $0x30] sm:$0xc0] %v599
    %604 = vst [vmem:[#allocation3 + $0x38] sm:$0xc0] %v600
    %v605 = vld [vmem:[#allocation6] sm:$0xff]
    %v606 = vld [vmem:[#allocation6 + $0x8] sm:$0xff]
    %v607 = vld [vmem:[#allocation6 + $0x10] sm:$0xff]
    %v608 = vld [vmem:[#allocation6 + $0x18] sm:$0xff]
    %v609 = vld [vmem:[#allocation6 + $0x20] sm:$0xff]
    %v610 = vld [vmem:[#allocation6 + $0x28] sm:$0xff]
    %v611 = vld [vmem:[#allocation6 + $0x30] sm:$0xff]
    %v612 = vld [vmem:[#allocation6 + $0x38] sm:$0xff]
    %v613 = vld [vmem:[#allocation6 + $0x40] sm:$0xff]
    %v614 = vld [vmem:[#allocation6 + $0x48] sm:$0xff]
    %v615 = vld [vmem:[#allocation6 + $0x50] sm:$0xff]
    %v616 = vld [vmem:[#allocation6 + $0x58] sm:$0xff]
    %v617 = vld [vmem:[#allocation6 + $0x60] sm:$0xff]
    %v618 = vld [vmem:[#allocation6 + $0x68] sm:$0xff]
    %v619 = vld [vmem:[#allocation6 + $0x70] sm:$0xff]
    %v620 = vld [vmem:[#allocation6 + $0x78] sm:$0xff]
    %v621 = vld [vmem:[#allocation6 + $0x80] sm:$0xff]
    %v622 = vld [vmem:[#allocation6 + $0x88] sm:$0xff]
    %v623 = vld [vmem:[#allocation6 + $0x90] sm:$0xff]
    %v624 = vld [vmem:[#allocation6 + $0x98] sm:$0xff]
    %v625 = vld [vmem:[#allocation6 + $0xa0] sm:$0xff]
    %v626 = vld [vmem:[#allocation6 + $0xa8] sm:$0xff]
    %v627 = vld [vmem:[#allocation6 + $0xb0] sm:$0xff]
    %v628 = vld [vmem:[#allocation6 + $0xb8] sm:$0xff]
    %v629 = vld [vmem:[#allocation6 + $0xc0] sm:$0xff]
    %v630 = vld [vmem:[#allocation6 + $0xc8] sm:$0xff]
    %v631 = vld [vmem:[#allocation6 + $0xd0] sm:$0xff]
    %v632 = vld [vmem:[#allocation6 + $0xd8] sm:$0xff]
    %v633 = vld [vmem:[#allocation6 + $0xe0] sm:$0xff]
    %v634 = vld [vmem:[#allocation6 + $0xe8] sm:$0xff]
    %v635 = vld [vmem:[#allocation6 + $0xf0] sm:$0xff]
    %v636 = vld [vmem:[#allocation6 + $0xf8] sm:$0xff]
    %v637 = vld [vmem:[#allocation6 + $0x100] sm:$0xff]
    %v638 = vld [vmem:[#allocation6 + $0x108] sm:$0xff]
    %v639 = vld [vmem:[#allocation6 + $0x110] sm:$0xff]
    %v640 = vld [vmem:[#allocation6 + $0x118] sm:$0xff]
    %v641 = vld [vmem:[#allocation6 + $0x120] sm:$0xff]
    %v642 = vld [vmem:[#allocation6 + $0x128] sm:$0xff]
    %v643 = vld [vmem:[#allocation6 + $0x130] sm:$0xff]
    %v644 = vld [vmem:[#allocation6 + $0x138] sm:$0xff]
    %v645 = vld [vmem:[#allocation6 + $0x140] sm:$0xff]
    %v646 = vld [vmem:[#allocation6 + $0x148] sm:$0xff]
    %v647 = vld [vmem:[#allocation6 + $0x150] sm:$0xff]
    %v648 = vld [vmem:[#allocation6 + $0x158] sm:$0xff]
    %v649 = vld [vmem:[#allocation6 + $0x160] sm:$0xff]
    %v650 = vld [vmem:[#allocation6 + $0x168] sm:$0xff]
    %v651 = vld [vmem:[#allocation6 + $0x170] sm:$0xff]
    %v652 = vld [vmem:[#allocation6 + $0x178] sm:$0xff]
    %v653 = vld [vmem:[#allocation6 + $0x180] sm:$0xff]
    %v654 = vld [vmem:[#allocation6 + $0x188] sm:$0xff]
    %v655 = vld [vmem:[#allocation6 + $0x190] sm:$0xff]
    %v656 = vld [vmem:[#allocation6 + $0x198] sm:$0xff]
    %v657 = vld [vmem:[#allocation6 + $0x1a0] sm:$0xff]
    %v658 = vld [vmem:[#allocation6 + $0x1a8] sm:$0xff]
    %v659 = vld [vmem:[#allocation6 + $0x1b0] sm:$0xff]
    %v660 = vld [vmem:[#allocation6 + $0x1b8] sm:$0xff]
    %v661 = vld [vmem:[#allocation6 + $0x1c0] sm:$0xff]
    %v662 = vld [vmem:[#allocation6 + $0x1c8] sm:$0xff]
    %v663 = vld [vmem:[#allocation6 + $0x1d0] sm:$0xff]
    %v664 = vld [vmem:[#allocation6 + $0x1d8] sm:$0xff]
    %v665 = vld [vmem:[#allocation6 + $0x1e0] sm:$0xff]
    %v666 = vld [vmem:[#allocation6 + $0x1e8] sm:$0xff]
    %v667 = vld [vmem:[#allocation6 + $0x1f0] sm:$0xff]
    %v668 = vld [vmem:[#allocation6 + $0x1f8] sm:$0xff]
    %v669 = vld [vmem:[#allocation3] sm:$0x3]
    %v670 = vld [vmem:[#allocation3 + $0x8] sm:$0x3]
    %v671 = vld [vmem:[#allocation3 + $0x10] sm:$0x3]
    %v672 = vld [vmem:[#allocation3 + $0x18] sm:$0x3]
    %673 = vmatprep.subr.mxu0 %v666
    %674 = vmatpush1.msra.mxu0 %v665
    %675 = vmatprep.subr.mxu0 %v662
    %676 = vmatpush1.msra.mxu0 %v661
    %677 = vmatprep.subr.mxu0 %v658
    %678 = vmatpush1.msra.mxu0 %v657
    %679 = vmatprep.subr.mxu0 %v654
    %680 = vmatpush1.msra.mxu0 %v653
    %681 = vmatprep.subr.mxu0 %v650
    %682 = vmatpush1.msra.mxu0 %v649
    %683 = vmatprep.subr.mxu0 %v646
    %684 = vmatpush1.msra.mxu0 %v645
    %685 = vmatprep.subr.mxu0 %v642
    %686 = vmatpush1.msra.mxu0 %v641
    %687 = vmatprep.subr.mxu0 %v638
    %688 = vmatpush1.msra.mxu0 %v637
    %689 = vmatprep.subr.mxu0 %v634
    %690 = vmatpush1.msra.mxu0 %v633
    %691 = vmatprep.subr.mxu0 %v630
    %692 = vmatpush1.msra.mxu0 %v629
    %693 = vmatprep.subr.mxu0 %v626
    %694 = vmatpush1.msra.mxu0 %v625
    %695 = vmatprep.subr.mxu0 %v622
    %696 = vmatpush1.msra.mxu0 %v621
    %697 = vmatprep.subr.mxu0 %v618
    %698 = vmatpush1.msra.mxu0 %v617
    %699 = vmatprep.subr.mxu0 %v614
    %700 = vmatpush1.msra.mxu0 %v613
    %701 = vmatprep.subr.mxu0 %v610
    %702 = vmatpush1.msra.mxu0 %v609
    %703 = vmatprep.subr.mxu0 %v606
    %704 = vmatpush1.msra.mxu0 %v605
    %705 = vmatprep.subr.mxu0 0.0
    %706 = vmatpush2.msra.mxu0 0.0
    %707 = vmatprep.subr.mxu0 0.0
    %708 = vmatpush2.msra.mxu0 0.0
    %709 = vmatprep.subr.mxu0 0.0
    %710 = vmatpush2.msra.mxu0 0.0
    %711 = vmatprep.subr.mxu0 0.0
    %712 = vmatpush2.msra.mxu0 0.0
    %713 = vmatprep.subr.mxu0 0.0
    %714 = vmatpush2.msra.mxu0 0.0
    %715 = vmatprep.subr.mxu0 0.0
    %716 = vmatpush2.msra.mxu0 0.0
    %717 = vmatprep.subr.mxu0 0.0
    %718 = vmatpush2.msra.mxu0 0.0
    %719 = vmatprep.subr.mxu0 0.0
    %720 = vmatpush2.msra.mxu0 0.0
    %721 = vmatprep.subr.mxu0 0.0
    %722 = vmatpush2.msra.mxu0 0.0
    %723 = vmatprep.subr.mxu0 0.0
    %724 = vmatpush2.msra.mxu0 0.0
    %725 = vmatprep.subr.mxu0 0.0
    %726 = vmatpush2.msra.mxu0 0.0
    %727 = vmatprep.subr.mxu0 0.0
    %728 = vmatpush2.msra.mxu0 0.0
    %729 = vmatprep.subr.mxu0 0.0
    %730 = vmatpush2.msra.mxu0 0.0
    %731 = vmatprep.subr.mxu0 0.0
    %732 = vmatpush2.msra.mxu0 0.0
    %733 = vmatprep.subr.mxu0 0.0
    %734 = vmatpush2.msra.mxu0 0.0
    %735 = vmatprep.subr.mxu0 0.0
    %736 = vmatpush2.msra.mxu0 0.0
    %737 = vmatprep.mubr.f32.mxu0 0.0
    %738 = vmatmul.mubr.f32.gmra.mxu0 0.0
    %v739 = vpop.f32.mrf.mxu0
    %v740 = vadd.f32 0.0, %v739
    %v741 = vpop.f32.mrf.mxu0
    %v742 = vadd.f32 0.0, %v741
    %743 = vdwg.mxu0
    %744 = vmatprep.subr.mxu0 %v668
    %745 = vmatpush1.msra.mxu0 %v667
    %746 = vmatprep.subr.mxu0 %v664
    %747 = vmatpush1.msra.mxu0 %v663
    %748 = vmatprep.subr.mxu0 %v660
    %749 = vmatpush1.msra.mxu0 %v659
    %750 = vmatprep.subr.mxu0 %v656
    %751 = vmatpush1.msra.mxu0 %v655
    %752 = vmatprep.subr.mxu0 %v652
    %753 = vmatpush1.msra.mxu0 %v651
    %754 = vmatprep.subr.mxu0 %v648
    %755 = vmatpush1.msra.mxu0 %v647
    %756 = vmatprep.subr.mxu0 %v644
    %757 = vmatpush1.msra.mxu0 %v643
    %758 = vmatprep.subr.mxu0 %v640
    %759 = vmatpush1.msra.mxu0 %v639
    %760 = vmatprep.subr.mxu0 %v636
    %761 = vmatpush1.msra.mxu0 %v635
    %762 = vmatprep.subr.mxu0 %v632
    %763 = vmatpush1.msra.mxu0 %v631
    %764 = vmatprep.subr.mxu0 %v628
    %765 = vmatpush1.msra.mxu0 %v627
    %766 = vmatprep.subr.mxu0 %v624
    %767 = vmatpush1.msra.mxu0 %v623
    %768 = vmatprep.subr.mxu0 %v620
    %769 = vmatpush1.msra.mxu0 %v619
    %770 = vmatprep.subr.mxu0 %v616
    %771 = vmatpush1.msra.mxu0 %v615
    %772 = vmatprep.subr.mxu0 %v612
    %773 = vmatpush1.msra.mxu0 %v611
    %774 = vmatprep.subr.mxu0 %v608
    %775 = vmatpush1.msra.mxu0 %v607
    %776 = vmatprep.subr.mxu0 0.0
    %777 = vmatpush2.msra.mxu0 0.0
    %778 = vmatprep.subr.mxu0 0.0
    %779 = vmatpush2.msra.mxu0 0.0
    %780 = vmatprep.subr.mxu0 0.0
    %781 = vmatpush2.msra.mxu0 0.0
    %782 = vmatprep.subr.mxu0 0.0
    %783 = vmatpush2.msra.mxu0 0.0
    %784 = vmatprep.subr.mxu0 0.0
    %785 = vmatpush2.msra.mxu0 0.0
    %786 = vmatprep.subr.mxu0 0.0
    %787 = vmatpush2.msra.mxu0 0.0
    %788 = vmatprep.subr.mxu0 0.0
    %789 = vmatpush2.msra.mxu0 0.0
    %790 = vmatprep.subr.mxu0 0.0
    %791 = vmatpush2.msra.mxu0 0.0
    %792 = vmatprep.subr.mxu0 0.0
    %793 = vmatpush2.msra.mxu0 0.0
    %794 = vmatprep.subr.mxu0 0.0
    %795 = vmatpush2.msra.mxu0 0.0
    %796 = vmatprep.subr.mxu0 0.0
    %797 = vmatpush2.msra.mxu0 0.0
    %798 = vmatprep.subr.mxu0 0.0
    %799 = vmatpush2.msra.mxu0 0.0
    %800 = vmatprep.subr.mxu0 0.0
    %801 = vmatpush2.msra.mxu0 0.0
    %802 = vmatprep.subr.mxu0 0.0
    %803 = vmatpush2.msra.mxu0 0.0
    %804 = vmatprep.subr.mxu0 0.0
    %805 = vmatpush2.msra.mxu0 0.0
    %806 = vmatprep.subr.mxu0 0.0
    %807 = vmatpush2.msra.mxu0 0.0
    %808 = vmatprep.mubr.f32.mxu0 0.0
    %809 = vmatmul.mubr.f32.gmra.mxu0 0.0
    %v810 = vpop.f32.mrf.mxu0
    %v811 = vadd.f32 0.0, %v810
    %v812 = vpop.f32.mrf.mxu0
    %v813 = vadd.f32 0.0, %v812
    %814 = vdwg.mxu0
    %v815 = vadd.f32 %v669, %v740
    %v816 = vadd.f32 %v670, %v742
    %v817 = vadd.f32 %v671, %v811
    %v818 = vadd.f32 %v672, %v813
    %v819 = vxor.u32 %v815, 2147483648
    %v820 = vmul.f32 %v819, 1.442695
    %v821 = vpow.pop %v820
    %v822 = vadd.f32 %v821, 1.0
    %v823 = vrcp.pop %v822
    %v824 = vmul.f32 1.0, %v823
    %v825 = vxor.u32 %v816, 2147483648
    %v826 = vmul.f32 %v825, 1.442695
    %v827 = vpow.pop %v826
    %v828 = vadd.f32 %v827, 1.0
    %v829 = vrcp.pop %v828
    %v830 = vmul.f32 1.0, %v829
    %v831 = vtanh.pop %v817
    %v832 = vxor.u32 %v818, 2147483648
    %v833 = vmul.f32 %v832, 1.442695
    %v834 = vpow.pop %v833
    %v835 = vadd.f32 %v834, 1.0
    %v836 = vrcp.pop %v835
    %v837 = vmul.f32 1.0, %v836
    %v838 = vmul.f32 %v830, 0.0
    %v839 = vmul.f32 %v824, %v831
    %v840 = vadd.f32 %v838, %v839
    %v841 = vtanh.pop %v840
    %v842 = vmul.f32 %v837, %v841
    %843 = vst [vmem:[#allocation4] sm:$0x3] %v842
    %v844 = vld [vmem:[#allocation3] sm:$0xc]
    %v845 = vld [vmem:[#allocation3 + $0x8] sm:$0xc]
    %v846 = vld [vmem:[#allocation3 + $0x10] sm:$0xc]
    %v847 = vld [vmem:[#allocation3 + $0x18] sm:$0xc]
    %848 = vmatprep.subr.mxu0 %v666
    %849 = vmatpush1.msra.mxu0 %v665
    %850 = vmatprep.subr.mxu0 %v662
    %851 = vmatpush1.msra.mxu0 %v661
    %852 = vmatprep.subr.mxu0 %v658
    %853 = vmatpush1.msra.mxu0 %v657
    %854 = vmatprep.subr.mxu0 %v654
    %855 = vmatpush1.msra.mxu0 %v653
    %856 = vmatprep.subr.mxu0 %v650
    %857 = vmatpush1.msra.mxu0 %v649
    %858 = vmatprep.subr.mxu0 %v646
    %859 = vmatpush1.msra.mxu0 %v645
    %860 = vmatprep.subr.mxu0 %v642
    %861 = vmatpush1.msra.mxu0 %v641
    %862 = vmatprep.subr.mxu0 %v638
    %863 = vmatpush1.msra.mxu0 %v637
    %864 = vmatprep.subr.mxu0 %v634
    %865 = vmatpush1.msra.mxu0 %v633
    %866 = vmatprep.subr.mxu0 %v630
    %867 = vmatpush1.msra.mxu0 %v629
    %868 = vmatprep.subr.mxu0 %v626
    %869 = vmatpush1.msra.mxu0 %v625
    %870 = vmatprep.subr.mxu0 %v622
    %871 = vmatpush1.msra.mxu0 %v621
    %872 = vmatprep.subr.mxu0 %v618
    %873 = vmatpush1.msra.mxu0 %v617
    %874 = vmatprep.subr.mxu0 %v614
    %875 = vmatpush1.msra.mxu0 %v613
    %876 = vmatprep.subr.mxu0 %v610
    %877 = vmatpush1.msra.mxu0 %v609
    %878 = vmatprep.subr.mxu0 %v606
    %879 = vmatpush1.msra.mxu0 %v605
    %880 = vmatprep.subr.mxu0 0.0
    %881 = vmatpush2.msra.mxu0 0.0
    %882 = vmatprep.subr.mxu0 0.0
    %883 = vmatpush2.msra.mxu0 0.0
    %884 = vmatprep.subr.mxu0 0.0
    %885 = vmatpush2.msra.mxu0 0.0
    %886 = vmatprep.subr.mxu0 0.0
    %887 = vmatpush2.msra.mxu0 0.0
    %888 = vmatprep.subr.mxu0 0.0
    %889 = vmatpush2.msra.mxu0 0.0
    %890 = vmatprep.subr.mxu0 0.0
    %891 = vmatpush2.msra.mxu0 0.0
    %892 = vmatprep.subr.mxu0 0.0
    %893 = vmatpush2.msra.mxu0 0.0
    %894 = vmatprep.subr.mxu0 0.0
    %895 = vmatpush2.msra.mxu0 0.0
    %896 = vmatprep.subr.mxu0 0.0
    %897 = vmatpush2.msra.mxu0 0.0
    %898 = vmatprep.subr.mxu0 0.0
    %899 = vmatpush2.msra.mxu0 0.0
    %900 = vmatprep.subr.mxu0 0.0
    %901 = vmatpush2.msra.mxu0 0.0
    %902 = vmatprep.subr.mxu0 0.0
    %903 = vmatpush2.msra.mxu0 0.0
    %904 = vmatprep.subr.mxu0 0.0
    %905 = vmatpush2.msra.mxu0 0.0
    %906 = vmatprep.subr.mxu0 0.0
    %907 = vmatpush2.msra.mxu0 0.0
    %908 = vmatprep.subr.mxu0 0.0
    %909 = vmatpush2.msra.mxu0 0.0
    %910 = vmatprep.subr.mxu0 0.0
    %911 = vmatpush2.msra.mxu0 0.0
    %912 = vmatprep.mubr.f32.mxu0 0.0
    %913 = vmatmul.mubr.f32.gmra.mxu0 %v842
    %v914 = vpop.f32.mrf.mxu0
    %v915 = vadd.f32 0.0, %v914
    %v916 = vpop.f32.mrf.mxu0
    %v917 = vadd.f32 0.0, %v916
    %918 = vdwg.mxu0
    %919 = vmatprep.subr.mxu0 %v668
    %920 = vmatpush1.msra.mxu0 %v667
    %921 = vmatprep.subr.mxu0 %v664
    %922 = vmatpush1.msra.mxu0 %v663
    %923 = vmatprep.subr.mxu0 %v660
    %924 = vmatpush1.msra.mxu0 %v659
    %925 = vmatprep.subr.mxu0 %v656
    %926 = vmatpush1.msra.mxu0 %v655
    %927 = vmatprep.subr.mxu0 %v652
    %928 = vmatpush1.msra.mxu0 %v651
    %929 = vmatprep.subr.mxu0 %v648
    %930 = vmatpush1.msra.mxu0 %v647
    %931 = vmatprep.subr.mxu0 %v644
    %932 = vmatpush1.msra.mxu0 %v643
    %933 = vmatprep.subr.mxu0 %v640
    %934 = vmatpush1.msra.mxu0 %v639
    %935 = vmatprep.subr.mxu0 %v636
    %936 = vmatpush1.msra.mxu0 %v635
    %937 = vmatprep.subr.mxu0 %v632
    %938 = vmatpush1.msra.mxu0 %v631
    %939 = vmatprep.subr.mxu0 %v628
    %940 = vmatpush1.msra.mxu0 %v627
    %941 = vmatprep.subr.mxu0 %v624
    %942 = vmatpush1.msra.mxu0 %v623
    %943 = vmatprep.subr.mxu0 %v620
    %944 = vmatpush1.msra.mxu0 %v619
    %945 = vmatprep.subr.mxu0 %v616
    %946 = vmatpush1.msra.mxu0 %v615
    %947 = vmatprep.subr.mxu0 %v612
    %948 = vmatpush1.msra.mxu0 %v611
    %949 = vmatprep.subr.mxu0 %v608
    %950 = vmatpush1.msra.mxu0 %v607
    %951 = vmatprep.subr.mxu0 0.0
    %952 = vmatpush2.msra.mxu0 0.0
    %953 = vmatprep.subr.mxu0 0.0
    %954 = vmatpush2.msra.mxu0 0.0
    %955 = vmatprep.subr.mxu0 0.0
    %956 = vmatpush2.msra.mxu0 0.0
    %957 = vmatprep.subr.mxu0 0.0
    %958 = vmatpush2.msra.mxu0 0.0
    %959 = vmatprep.subr.mxu0 0.0
    %960 = vmatpush2.msra.mxu0 0.0
    %961 = vmatprep.subr.mxu0 0.0
    %962 = vmatpush2.msra.mxu0 0.0
    %963 = vmatprep.subr.mxu0 0.0
    %964 = vmatpush2.msra.mxu0 0.0
    %965 = vmatprep.subr.mxu0 0.0
    %966 = vmatpush2.msra.mxu0 0.0
    %967 = vmatprep.subr.mxu0 0.0
    %968 = vmatpush2.msra.mxu0 0.0
    %969 = vmatprep.subr.mxu0 0.0
    %970 = vmatpush2.msra.mxu0 0.0
    %971 = vmatprep.subr.mxu0 0.0
    %972 = vmatpush2.msra.mxu0 0.0
    %973 = vmatprep.subr.mxu0 0.0
    %974 = vmatpush2.msra.mxu0 0.0
    %975 = vmatprep.subr.mxu0 0.0
    %976 = vmatpush2.msra.mxu0 0.0
    %977 = vmatprep.subr.mxu0 0.0
    %978 = vmatpush2.msra.mxu0 0.0
    %979 = vmatprep.subr.mxu0 0.0
    %980 = vmatpush2.msra.mxu0 0.0
    %981 = vmatprep.subr.mxu0 0.0
    %982 = vmatpush2.msra.mxu0 0.0
    %983 = vmatprep.mubr.f32.mxu0 0.0
    %984 = vmatmul.mubr.f32.gmra.mxu0 %v842
    %v985 = vpop.f32.mrf.mxu0
    %v986 = vadd.f32 0.0, %v985
    %v987 = vpop.f32.mrf.mxu0
    %v988 = vadd.f32 0.0, %v987
    %989 = vdwg.mxu0
    %v994 = vrot.slane %v915, 6
    %v995 = vrot.slane %v917, 6
    %v996 = vrot.slane %v986, 6
    %v997 = vrot.slane %v988, 6
    %v1002 = vadd.f32 %v844, %v994
    %v1003 = vadd.f32 %v845, %v995
    %v1004 = vadd.f32 %v846, %v996
    %v1005 = vadd.f32 %v847, %v997
    %v1006 = vxor.u32 %v1002, 2147483648
    %v1007 = vmul.f32 %v1006, 1.442695
    %v1008 = vpow.pop %v1007
    %v1009 = vadd.f32 %v1008, 1.0
    %v1010 = vrcp.pop %v1009
    %v1011 = vmul.f32 1.0, %v1010
    %v1012 = vxor.u32 %v1003, 2147483648
    %v1013 = vmul.f32 %v1012, 1.442695
    %v1014 = vpow.pop %v1013
    %v1015 = vadd.f32 %v1014, 1.0
    %v1016 = vrcp.pop %v1015
    %v1017 = vmul.f32 1.0, %v1016
    %v1018 = vtanh.pop %v1004
    %v1019 = vxor.u32 %v1005, 2147483648
    %v1020 = vmul.f32 %v1019, 1.442695
    %v1021 = vpow.pop %v1020
    %v1022 = vadd.f32 %v1021, 1.0
    %v1023 = vrcp.pop %v1022
    %v1024 = vmul.f32 1.0, %v1023
    %v1026 = vrot.slane %v840, 6
    %v1028 = vmul.f32 %v1017, %v1026
    %v1029 = vmul.f32 %v1011, %v1018
    %v1030 = vadd.f32 %v1028, %v1029
    %v1031 = vtanh.pop %v1030
    %v1032 = vmul.f32 %v1024, %v1031
    %1033 = vst [vmem:[#allocation4] sm:$0xc] %v1032
    %v1034 = vld [vmem:[#allocation3] sm:$0x30]
    %v1035 = vld [vmem:[#allocation3 + $0x8] sm:$0x30]
    %v1036 = vld [vmem:[#allocation3 + $0x10] sm:$0x30]
    %v1037 = vld [vmem:[#allocation3 + $0x18] sm:$0x30]
    %v1039 = vrot.slane %v1032, 2
    %1041 = vmatprep.subr.mxu0 %v666
    %1042 = vmatpush1.msra.mxu0 %v665
    %1043 = vmatprep.subr.mxu0 %v662
    %1044 = vmatpush1.msra.mxu0 %v661
    %1045 = vmatprep.subr.mxu0 %v658
    %1046 = vmatpush1.msra.mxu0 %v657
    %1047 = vmatprep.subr.mxu0 %v654
    %1048 = vmatpush1.msra.mxu0 %v653
    %1049 = vmatprep.subr.mxu0 %v650
    %1050 = vmatpush1.msra.mxu0 %v649
    %1051 = vmatprep.subr.mxu0 %v646
    %1052 = vmatpush1.msra.mxu0 %v645
    %1053 = vmatprep.subr.mxu0 %v642
    %1054 = vmatpush1.msra.mxu0 %v641
    %1055 = vmatprep.subr.mxu0 %v638
    %1056 = vmatpush1.msra.mxu0 %v637
    %1057 = vmatprep.subr.mxu0 %v634
    %1058 = vmatpush1.msra.mxu0 %v633
    %1059 = vmatprep.subr.mxu0 %v630
    %1060 = vmatpush1.msra.mxu0 %v629
    %1061 = vmatprep.subr.mxu0 %v626
    %1062 = vmatpush1.msra.mxu0 %v625
    %1063 = vmatprep.subr.mxu0 %v622
    %1064 = vmatpush1.msra.mxu0 %v621
    %1065 = vmatprep.subr.mxu0 %v618
    %1066 = vmatpush1.msra.mxu0 %v617
    %1067 = vmatprep.subr.mxu0 %v614
    %1068 = vmatpush1.msra.mxu0 %v613
    %1069 = vmatprep.subr.mxu0 %v610
    %1070 = vmatpush1.msra.mxu0 %v609
    %1071 = vmatprep.subr.mxu0 %v606
    %1072 = vmatpush1.msra.mxu0 %v605
    %1073 = vmatprep.subr.mxu0 0.0
    %1074 = vmatpush2.msra.mxu0 0.0
    %1075 = vmatprep.subr.mxu0 0.0
    %1076 = vmatpush2.msra.mxu0 0.0
    %1077 = vmatprep.subr.mxu0 0.0
    %1078 = vmatpush2.msra.mxu0 0.0
    %1079 = vmatprep.subr.mxu0 0.0
    %1080 = vmatpush2.msra.mxu0 0.0
    %1081 = vmatprep.subr.mxu0 0.0
    %1082 = vmatpush2.msra.mxu0 0.0
    %1083 = vmatprep.subr.mxu0 0.0
    %1084 = vmatpush2.msra.mxu0 0.0
    %1085 = vmatprep.subr.mxu0 0.0
    %1086 = vmatpush2.msra.mxu0 0.0
    %1087 = vmatprep.subr.mxu0 0.0
    %1088 = vmatpush2.msra.mxu0 0.0
    %1089 = vmatprep.subr.mxu0 0.0
    %1090 = vmatpush2.msra.mxu0 0.0
    %1091 = vmatprep.subr.mxu0 0.0
    %1092 = vmatpush2.msra.mxu0 0.0
    %1093 = vmatprep.subr.mxu0 0.0
    %1094 = vmatpush2.msra.mxu0 0.0
    %1095 = vmatprep.subr.mxu0 0.0
    %1096 = vmatpush2.msra.mxu0 0.0
    %1097 = vmatprep.subr.mxu0 0.0
    %1098 = vmatpush2.msra.mxu0 0.0
    %1099 = vmatprep.subr.mxu0 0.0
    %1100 = vmatpush2.msra.mxu0 0.0
    %1101 = vmatprep.subr.mxu0 0.0
    %1102 = vmatpush2.msra.mxu0 0.0
    %1103 = vmatprep.subr.mxu0 0.0
    %1104 = vmatpush2.msra.mxu0 0.0
    %1105 = vmatprep.mubr.f32.mxu0 0.0
    %1106 = vmatmul.mubr.f32.gmra.mxu0 %v1039
    %v1107 = vpop.f32.mrf.mxu0
    %v1108 = vadd.f32 0.0, %v1107
    %v1109 = vpop.f32.mrf.mxu0
    %v1110 = vadd.f32 0.0, %v1109
    %1111 = vdwg.mxu0
    %1112 = vmatprep.subr.mxu0 %v668
    %1113 = vmatpush1.msra.mxu0 %v667
    %1114 = vmatprep.subr.mxu0 %v664
    %1115 = vmatpush1.msra.mxu0 %v663
    %1116 = vmatprep.subr.mxu0 %v660
    %1117 = vmatpush1.msra.mxu0 %v659
    %1118 = vmatprep.subr.mxu0 %v656
    %1119 = vmatpush1.msra.mxu0 %v655
    %1120 = vmatprep.subr.mxu0 %v652
    %1121 = vmatpush1.msra.mxu0 %v651
    %1122 = vmatprep.subr.mxu0 %v648
    %1123 = vmatpush1.msra.mxu0 %v647
    %1124 = vmatprep.subr.mxu0 %v644
    %1125 = vmatpush1.msra.mxu0 %v643
    %1126 = vmatprep.subr.mxu0 %v640
    %1127 = vmatpush1.msra.mxu0 %v639
    %1128 = vmatprep.subr.mxu0 %v636
    %1129 = vmatpush1.msra.mxu0 %v635
    %1130 = vmatprep.subr.mxu0 %v632
    %1131 = vmatpush1.msra.mxu0 %v631
    %1132 = vmatprep.subr.mxu0 %v628
    %1133 = vmatpush1.msra.mxu0 %v627
    %1134 = vmatprep.subr.mxu0 %v624
    %1135 = vmatpush1.msra.mxu0 %v623
    %1136 = vmatprep.subr.mxu0 %v620
    %1137 = vmatpush1.msra.mxu0 %v619
    %1138 = vmatprep.subr.mxu0 %v616
    %1139 = vmatpush1.msra.mxu0 %v615
    %1140 = vmatprep.subr.mxu0 %v612
    %1141 = vmatpush1.msra.mxu0 %v611
    %1142 = vmatprep.subr.mxu0 %v608
    %1143 = vmatpush1.msra.mxu0 %v607
    %1144 = vmatprep.subr.mxu0 0.0
    %1145 = vmatpush2.msra.mxu0 0.0
    %1146 = vmatprep.subr.mxu0 0.0
    %1147 = vmatpush2.msra.mxu0 0.0
    %1148 = vmatprep.subr.mxu0 0.0
    %1149 = vmatpush2.msra.mxu0 0.0
    %1150 = vmatprep.subr.mxu0 0.0
    %1151 = vmatpush2.msra.mxu0 0.0
    %1152 = vmatprep.subr.mxu0 0.0
    %1153 = vmatpush2.msra.mxu0 0.0
    %1154 = vmatprep.subr.mxu0 0.0
    %1155 = vmatpush2.msra.mxu0 0.0
    %1156 = vmatprep.subr.mxu0 0.0
    %1157 = vmatpush2.msra.mxu0 0.0
    %1158 = vmatprep.subr.mxu0 0.0
    %1159 = vmatpush2.msra.mxu0 0.0
    %1160 = vmatprep.subr.mxu0 0.0
    %1161 = vmatpush2.msra.mxu0 0.0
    %1162 = vmatprep.subr.mxu0 0.0
    %1163 = vmatpush2.msra.mxu0 0.0
    %1164 = vmatprep.subr.mxu0 0.0
    %1165 = vmatpush2.msra.mxu0 0.0
    %1166 = vmatprep.subr.mxu0 0.0
    %1167 = vmatpush2.msra.mxu0 0.0
    %1168 = vmatprep.subr.mxu0 0.0
    %1169 = vmatpush2.msra.mxu0 0.0
    %1170 = vmatprep.subr.mxu0 0.0
    %1171 = vmatpush2.msra.mxu0 0.0
    %1172 = vmatprep.subr.mxu0 0.0
    %1173 = vmatpush2.msra.mxu0 0.0
    %1174 = vmatprep.subr.mxu0 0.0
    %1175 = vmatpush2.msra.mxu0 0.0
    %1176 = vmatprep.mubr.f32.mxu0 0.0
    %1177 = vmatmul.mubr.f32.gmra.mxu0 %v1039
    %v1178 = vpop.f32.mrf.mxu0
    %v1179 = vadd.f32 0.0, %v1178
    %v1180 = vpop.f32.mrf.mxu0
    %v1181 = vadd.f32 0.0, %v1180
    %1182 = vdwg.mxu0
    %v1187 = vrot.slane %v1108, 4
    %v1188 = vrot.slane %v1110, 4
    %v1189 = vrot.slane %v1179, 4
    %v1190 = vrot.slane %v1181, 4
    %v1195 = vadd.f32 %v1034, %v1187
    %v1196 = vadd.f32 %v1035, %v1188
    %v1197 = vadd.f32 %v1036, %v1189
    %v1198 = vadd.f32 %v1037, %v1190
    %v1199 = vxor.u32 %v1195, 2147483648
    %v1200 = vmul.f32 %v1199, 1.442695
    %v1201 = vpow.pop %v1200
    %v1202 = vadd.f32 %v1201, 1.0
    %v1203 = vrcp.pop %v1202
    %v1204 = vmul.f32 1.0, %v1203
    %v1205 = vxor.u32 %v1196, 2147483648
    %v1206 = vmul.f32 %v1205, 1.442695
    %v1207 = vpow.pop %v1206
    %v1208 = vadd.f32 %v1207, 1.0
    %v1209 = vrcp.pop %v1208
    %v1210 = vmul.f32 1.0, %v1209
    %v1211 = vtanh.pop %v1197
    %v1212 = vxor.u32 %v1198, 2147483648
    %v1213 = vmul.f32 %v1212, 1.442695
    %v1214 = vpow.pop %v1213
    %v1215 = vadd.f32 %v1214, 1.0
    %v1216 = vrcp.pop %v1215
    %v1217 = vmul.f32 1.0, %v1216
    %v1219 = vrot.slane %v1030, 6
    %v1221 = vmul.f32 %v1210, %v1219
    %v1222 = vmul.f32 %v1204, %v1211
    %v1223 = vadd.f32 %v1221, %v1222
    %v1224 = vtanh.pop %v1223
    %v1225 = vmul.f32 %v1217, %v1224
    %1226 = vst [vmem:[#allocation4] sm:$0x30] %v1225
    %v1227 = vld [vmem:[#allocation3] sm:$0xc0]
    %v1228 = vld [vmem:[#allocation3 + $0x8] sm:$0xc0]
    %v1229 = vld [vmem:[#allocation3 + $0x10] sm:$0xc0]
    %v1230 = vld [vmem:[#allocation3 + $0x18] sm:$0xc0]
    %v1232 = vrot.slane %v1225, 4
    %1234 = vmatprep.subr.mxu0 %v666
    %1235 = vmatpush1.msra.mxu0 %v665
    %1236 = vmatprep.subr.mxu0 %v662
    %1237 = vmatpush1.msra.mxu0 %v661
    %1238 = vmatprep.subr.mxu0 %v658
    %1239 = vmatpush1.msra.mxu0 %v657
    %1240 = vmatprep.subr.mxu0 %v654
    %1241 = vmatpush1.msra.mxu0 %v653
    %1242 = vmatprep.subr.mxu0 %v650
    %1243 = vmatpush1.msra.mxu0 %v649
    %1244 = vmatprep.subr.mxu0 %v646
    %1245 = vmatpush1.msra.mxu0 %v645
    %1246 = vmatprep.subr.mxu0 %v642
    %1247 = vmatpush1.msra.mxu0 %v641
    %1248 = vmatprep.subr.mxu0 %v638
    %1249 = vmatpush1.msra.mxu0 %v637
    %1250 = vmatprep.subr.mxu0 %v634
    %1251 = vmatpush1.msra.mxu0 %v633
    %1252 = vmatprep.subr.mxu0 %v630
    %1253 = vmatpush1.msra.mxu0 %v629
    %1254 = vmatprep.subr.mxu0 %v626
    %1255 = vmatpush1.msra.mxu0 %v625
    %1256 = vmatprep.subr.mxu0 %v622
    %1257 = vmatpush1.msra.mxu0 %v621
    %1258 = vmatprep.subr.mxu0 %v618
    %1259 = vmatpush1.msra.mxu0 %v617
    %1260 = vmatprep.subr.mxu0 %v614
    %1261 = vmatpush1.msra.mxu0 %v613
    %1262 = vmatprep.subr.mxu0 %v610
    %1263 = vmatpush1.msra.mxu0 %v609
    %1264 = vmatprep.subr.mxu0 %v606
    %1265 = vmatpush1.msra.mxu0 %v605
    %1266 = vmatprep.subr.mxu0 0.0
    %1267 = vmatpush2.msra.mxu0 0.0
    %1268 = vmatprep.subr.mxu0 0.0
    %1269 = vmatpush2.msra.mxu0 0.0
    %1270 = vmatprep.subr.mxu0 0.0
    %1271 = vmatpush2.msra.mxu0 0.0
    %1272 = vmatprep.subr.mxu0 0.0
    %1273 = vmatpush2.msra.mxu0 0.0
    %1274 = vmatprep.subr.mxu0 0.0
    %1275 = vmatpush2.msra.mxu0 0.0
    %1276 = vmatprep.subr.mxu0 0.0
    %1277 = vmatpush2.msra.mxu0 0.0
    %1278 = vmatprep.subr.mxu0 0.0
    %1279 = vmatpush2.msra.mxu0 0.0
    %1280 = vmatprep.subr.mxu0 0.0
    %1281 = vmatpush2.msra.mxu0 0.0
    %1282 = vmatprep.subr.mxu0 0.0
    %1283 = vmatpush2.msra.mxu0 0.0
    %1284 = vmatprep.subr.mxu0 0.0
    %1285 = vmatpush2.msra.mxu0 0.0
    %1286 = vmatprep.subr.mxu0 0.0
    %1287 = vmatpush2.msra.mxu0 0.0
    %1288 = vmatprep.subr.mxu0 0.0
    %1289 = vmatpush2.msra.mxu0 0.0
    %1290 = vmatprep.subr.mxu0 0.0
    %1291 = vmatpush2.msra.mxu0 0.0
    %1292 = vmatprep.subr.mxu0 0.0
    %1293 = vmatpush2.msra.mxu0 0.0
    %1294 = vmatprep.subr.mxu0 0.0
    %1295 = vmatpush2.msra.mxu0 0.0
    %1296 = vmatprep.subr.mxu0 0.0
    %1297 = vmatpush2.msra.mxu0 0.0
    %1298 = vmatprep.mubr.f32.mxu0 0.0
    %1299 = vmatmul.mubr.f32.gmra.mxu0 %v1232
    %v1300 = vpop.f32.mrf.mxu0
    %v1301 = vadd.f32 0.0, %v1300
    %v1302 = vpop.f32.mrf.mxu0
    %v1303 = vadd.f32 0.0, %v1302
    %1304 = vdwg.mxu0
    %1305 = vmatprep.subr.mxu0 %v668
    %1306 = vmatpush1.msra.mxu0 %v667
    %1307 = vmatprep.subr.mxu0 %v664
    %1308 = vmatpush1.msra.mxu0 %v663
    %1309 = vmatprep.subr.mxu0 %v660
    %1310 = vmatpush1.msra.mxu0 %v659
    %1311 = vmatprep.subr.mxu0 %v656
    %1312 = vmatpush1.msra.mxu0 %v655
    %1313 = vmatprep.subr.mxu0 %v652
    %1314 = vmatpush1.msra.mxu0 %v651
    %1315 = vmatprep.subr.mxu0 %v648
    %1316 = vmatpush1.msra.mxu0 %v647
    %1317 = vmatprep.subr.mxu0 %v644
    %1318 = vmatpush1.msra.mxu0 %v643
    %1319 = vmatprep.subr.mxu0 %v640
    %1320 = vmatpush1.msra.mxu0 %v639
    %1321 = vmatprep.subr.mxu0 %v636
    %1322 = vmatpush1.msra.mxu0 %v635
    %1323 = vmatprep.subr.mxu0 %v632
    %1324 = vmatpush1.msra.mxu0 %v631
    %1325 = vmatprep.subr.mxu0 %v628
    %1326 = vmatpush1.msra.mxu0 %v627
    %1327 = vmatprep.subr.mxu0 %v624
    %1328 = vmatpush1.msra.mxu0 %v623
    %1329 = vmatprep.subr.mxu0 %v620
    %1330 = vmatpush1.msra.mxu0 %v619
    %1331 = vmatprep.subr.mxu0 %v616
    %1332 = vmatpush1.msra.mxu0 %v615
    %1333 = vmatprep.subr.mxu0 %v612
    %1334 = vmatpush1.msra.mxu0 %v611
    %1335 = vmatprep.subr.mxu0 %v608
    %1336 = vmatpush1.msra.mxu0 %v607
    %1337 = vmatprep.subr.mxu0 0.0
    %1338 = vmatpush2.msra.mxu0 0.0
    %1339 = vmatprep.subr.mxu0 0.0
    %1340 = vmatpush2.msra.mxu0 0.0
    %1341 = vmatprep.subr.mxu0 0.0
    %1342 = vmatpush2.msra.mxu0 0.0
    %1343 = vmatprep.subr.mxu0 0.0
    %1344 = vmatpush2.msra.mxu0 0.0
    %1345 = vmatprep.subr.mxu0 0.0
    %1346 = vmatpush2.msra.mxu0 0.0
    %1347 = vmatprep.subr.mxu0 0.0
    %1348 = vmatpush2.msra.mxu0 0.0
    %1349 = vmatprep.subr.mxu0 0.0
    %1350 = vmatpush2.msra.mxu0 0.0
    %1351 = vmatprep.subr.mxu0 0.0
    %1352 = vmatpush2.msra.mxu0 0.0
    %1353 = vmatprep.subr.mxu0 0.0
    %1354 = vmatpush2.msra.mxu0 0.0
    %1355 = vmatprep.subr.mxu0 0.0
    %1356 = vmatpush2.msra.mxu0 0.0
    %1357 = vmatprep.subr.mxu0 0.0
    %1358 = vmatpush2.msra.mxu0 0.0
    %1359 = vmatprep.subr.mxu0 0.0
    %1360 = vmatpush2.msra.mxu0 0.0
    %1361 = vmatprep.subr.mxu0 0.0
    %1362 = vmatpush2.msra.mxu0 0.0
    %1363 = vmatprep.subr.mxu0 0.0
    %1364 = vmatpush2.msra.mxu0 0.0
    %1365 = vmatprep.subr.mxu0 0.0
    %1366 = vmatpush2.msra.mxu0 0.0
    %1367 = vmatprep.subr.mxu0 0.0
    %1368 = vmatpush2.msra.mxu0 0.0
    %1369 = vmatprep.mubr.f32.mxu0 0.0
    %1370 = vmatmul.mubr.f32.gmra.mxu0 %v1232
    %v1371 = vpop.f32.mrf.mxu0
    %v1372 = vadd.f32 0.0, %v1371
    %v1373 = vpop.f32.mrf.mxu0
    %v1374 = vadd.f32 0.0, %v1373
    %1375 = vdwg.mxu0
    %v1380 = vrot.slane %v1301, 2
    %v1381 = vrot.slane %v1303, 2
    %v1382 = vrot.slane %v1372, 2
    %v1383 = vrot.slane %v1374, 2
    %v1388 = vadd.f32 %v1227, %v1380
    %v1389 = vadd.f32 %v1228, %v1381
    %v1390 = vadd.f32 %v1229, %v1382
    %v1391 = vadd.f32 %v1230, %v1383
    %v1392 = vxor.u32 %v1388, 2147483648
    %v1393 = vmul.f32 %v1392, 1.442695
    %v1394 = vpow.pop %v1393
    %v1395 = vadd.f32 %v1394, 1.0
    %v1396 = vrcp.pop %v1395
    %v1397 = vmul.f32 1.0, %v1396
    %v1398 = vxor.u32 %v1389, 2147483648
    %v1399 = vmul.f32 %v1398, 1.442695
    %v1400 = vpow.pop %v1399
    %v1401 = vadd.f32 %v1400, 1.0
    %v1402 = vrcp.pop %v1401
    %v1403 = vmul.f32 1.0, %v1402
    %v1404 = vtanh.pop %v1390
    %v1405 = vxor.u32 %v1391, 2147483648
    %v1406 = vmul.f32 %v1405, 1.442695
    %v1407 = vpow.pop %v1406
    %v1408 = vadd.f32 %v1407, 1.0
    %v1409 = vrcp.pop %v1408
    %v1410 = vmul.f32 1.0, %v1409
    %v1412 = vrot.slane %v1223, 6
    %v1414 = vmul.f32 %v1403, %v1412
    %v1415 = vmul.f32 %v1397, %v1404
    %v1416 = vadd.f32 %v1414, %v1415
    %v1417 = vtanh.pop %v1416
    %v1418 = vmul.f32 %v1410, %v1417
    %1419 = vst [vmem:[#allocation4] sm:$0xc0] %v1418
    %v1420 = vld [vmem:[#allocation3 + $0x20] sm:$0x3]
    %v1421 = vld [vmem:[#allocation3 + $0x28] sm:$0x3]
    %v1422 = vld [vmem:[#allocation3 + $0x30] sm:$0x3]
    %v1423 = vld [vmem:[#allocation3 + $0x38] sm:$0x3]
    %v1425 = vrot.slane %v1418, 6
    %1427 = vmatprep.subr.mxu0 %v666
    %1428 = vmatpush1.msra.mxu0 %v665
    %1429 = vmatprep.subr.mxu0 %v662
    %1430 = vmatpush1.msra.mxu0 %v661
    %1431 = vmatprep.subr.mxu0 %v658
    %1432 = vmatpush1.msra.mxu0 %v657
    %1433 = vmatprep.subr.mxu0 %v654
    %1434 = vmatpush1.msra.mxu0 %v653
    %1435 = vmatprep.subr.mxu0 %v650
    %1436 = vmatpush1.msra.mxu0 %v649
    %1437 = vmatprep.subr.mxu0 %v646
    %1438 = vmatpush1.msra.mxu0 %v645
    %1439 = vmatprep.subr.mxu0 %v642
    %1440 = vmatpush1.msra.mxu0 %v641
    %1441 = vmatprep.subr.mxu0 %v638
    %1442 = vmatpush1.msra.mxu0 %v637
    %1443 = vmatprep.subr.mxu0 %v634
    %1444 = vmatpush1.msra.mxu0 %v633
    %1445 = vmatprep.subr.mxu0 %v630
    %1446 = vmatpush1.msra.mxu0 %v629
    %1447 = vmatprep.subr.mxu0 %v626
    %1448 = vmatpush1.msra.mxu0 %v625
    %1449 = vmatprep.subr.mxu0 %v622
    %1450 = vmatpush1.msra.mxu0 %v621
    %1451 = vmatprep.subr.mxu0 %v618
    %1452 = vmatpush1.msra.mxu0 %v617
    %1453 = vmatprep.subr.mxu0 %v614
    %1454 = vmatpush1.msra.mxu0 %v613
    %1455 = vmatprep.subr.mxu0 %v610
    %1456 = vmatpush1.msra.mxu0 %v609
    %1457 = vmatprep.subr.mxu0 %v606
    %1458 = vmatpush1.msra.mxu0 %v605
    %1459 = vmatprep.subr.mxu0 0.0
    %1460 = vmatpush2.msra.mxu0 0.0
    %1461 = vmatprep.subr.mxu0 0.0
    %1462 = vmatpush2.msra.mxu0 0.0
    %1463 = vmatprep.subr.mxu0 0.0
    %1464 = vmatpush2.msra.mxu0 0.0
    %1465 = vmatprep.subr.mxu0 0.0
    %1466 = vmatpush2.msra.mxu0 0.0
    %1467 = vmatprep.subr.mxu0 0.0
    %1468 = vmatpush2.msra.mxu0 0.0
    %1469 = vmatprep.subr.mxu0 0.0
    %1470 = vmatpush2.msra.mxu0 0.0
    %1471 = vmatprep.subr.mxu0 0.0
    %1472 = vmatpush2.msra.mxu0 0.0
    %1473 = vmatprep.subr.mxu0 0.0
    %1474 = vmatpush2.msra.mxu0 0.0
    %1475 = vmatprep.subr.mxu0 0.0
    %1476 = vmatpush2.msra.mxu0 0.0
    %1477 = vmatprep.subr.mxu0 0.0
    %1478 = vmatpush2.msra.mxu0 0.0
    %1479 = vmatprep.subr.mxu0 0.0
    %1480 = vmatpush2.msra.mxu0 0.0
    %1481 = vmatprep.subr.mxu0 0.0
    %1482 = vmatpush2.msra.mxu0 0.0
    %1483 = vmatprep.subr.mxu0 0.0
    %1484 = vmatpush2.msra.mxu0 0.0
    %1485 = vmatprep.subr.mxu0 0.0
    %1486 = vmatpush2.msra.mxu0 0.0
    %1487 = vmatprep.subr.mxu0 0.0
    %1488 = vmatpush2.msra.mxu0 0.0
    %1489 = vmatprep.subr.mxu0 0.0
    %1490 = vmatpush2.msra.mxu0 0.0
    %1491 = vmatprep.mubr.f32.mxu0 0.0
    %1492 = vmatmul.mubr.f32.gmra.mxu0 %v1425
    %v1493 = vpop.f32.mrf.mxu0
    %v1494 = vadd.f32 0.0, %v1493
    %v1495 = vpop.f32.mrf.mxu0
    %v1496 = vadd.f32 0.0, %v1495
    %1497 = vdwg.mxu0
    %1498 = vmatprep.subr.mxu0 %v668
    %1499 = vmatpush1.msra.mxu0 %v667
    %1500 = vmatprep.subr.mxu0 %v664
    %1501 = vmatpush1.msra.mxu0 %v663
    %1502 = vmatprep.subr.mxu0 %v660
    %1503 = vmatpush1.msra.mxu0 %v659
    %1504 = vmatprep.subr.mxu0 %v656
    %1505 = vmatpush1.msra.mxu0 %v655
    %1506 = vmatprep.subr.mxu0 %v652
    %1507 = vmatpush1.msra.mxu0 %v651
    %1508 = vmatprep.subr.mxu0 %v648
    %1509 = vmatpush1.msra.mxu0 %v647
    %1510 = vmatprep.subr.mxu0 %v644
    %1511 = vmatpush1.msra.mxu0 %v643
    %1512 = vmatprep.subr.mxu0 %v640
    %1513 = vmatpush1.msra.mxu0 %v639
    %1514 = vmatprep.subr.mxu0 %v636
    %1515 = vmatpush1.msra.mxu0 %v635
    %1516 = vmatprep.subr.mxu0 %v632
    %1517 = vmatpush1.msra.mxu0 %v631
    %1518 = vmatprep.subr.mxu0 %v628
    %1519 = vmatpush1.msra.mxu0 %v627
    %1520 = vmatprep.subr.mxu0 %v624
    %1521 = vmatpush1.msra.mxu0 %v623
    %1522 = vmatprep.subr.mxu0 %v620
    %1523 = vmatpush1.msra.mxu0 %v619
    %1524 = vmatprep.subr.mxu0 %v616
    %1525 = vmatpush1.msra.mxu0 %v615
    %1526 = vmatprep.subr.mxu0 %v612
    %1527 = vmatpush1.msra.mxu0 %v611
    %1528 = vmatprep.subr.mxu0 %v608
    %1529 = vmatpush1.msra.mxu0 %v607
    %1530 = vmatprep.subr.mxu0 0.0
    %1531 = vmatpush2.msra.mxu0 0.0
    %1532 = vmatprep.subr.mxu0 0.0
    %1533 = vmatpush2.msra.mxu0 0.0
    %1534 = vmatprep.subr.mxu0 0.0
    %1535 = vmatpush2.msra.mxu0 0.0
    %1536 = vmatprep.subr.mxu0 0.0
    %1537 = vmatpush2.msra.mxu0 0.0
    %1538 = vmatprep.subr.mxu0 0.0
    %1539 = vmatpush2.msra.mxu0 0.0
    %1540 = vmatprep.subr.mxu0 0.0
    %1541 = vmatpush2.msra.mxu0 0.0
    %1542 = vmatprep.subr.mxu0 0.0
    %1543 = vmatpush2.msra.mxu0 0.0
    %1544 = vmatprep.subr.mxu0 0.0
    %1545 = vmatpush2.msra.mxu0 0.0
    %1546 = vmatprep.subr.mxu0 0.0
    %1547 = vmatpush2.msra.mxu0 0.0
    %1548 = vmatprep.subr.mxu0 0.0
    %1549 = vmatpush2.msra.mxu0 0.0
    %1550 = vmatprep.subr.mxu0 0.0
    %1551 = vmatpush2.msra.mxu0 0.0
    %1552 = vmatprep.subr.mxu0 0.0
    %1553 = vmatpush2.msra.mxu0 0.0
    %1554 = vmatprep.subr.mxu0 0.0
    %1555 = vmatpush2.msra.mxu0 0.0
    %1556 = vmatprep.subr.mxu0 0.0
    %1557 = vmatpush2.msra.mxu0 0.0
    %1558 = vmatprep.subr.mxu0 0.0
    %1559 = vmatpush2.msra.mxu0 0.0
    %1560 = vmatprep.subr.mxu0 0.0
    %1561 = vmatpush2.msra.mxu0 0.0
    %1562 = vmatprep.mubr.f32.mxu0 0.0
    %1563 = vmatmul.mubr.f32.gmra.mxu0 %v1425
    %v1564 = vpop.f32.mrf.mxu0
    %v1565 = vadd.f32 0.0, %v1564
    %v1566 = vpop.f32.mrf.mxu0
    %v1567 = vadd.f32 0.0, %v1566
    %1568 = vdwg.mxu0
    %v1569 = vadd.f32 %v1420, %v1494
    %v1570 = vadd.f32 %v1421, %v1496
    %v1571 = vadd.f32 %v1422, %v1565
    %v1572 = vadd.f32 %v1423, %v1567
    %v1573 = vxor.u32 %v1569, 2147483648
    %v1574 = vmul.f32 %v1573, 1.442695
    %v1575 = vpow.pop %v1574
    %v1576 = vadd.f32 %v1575, 1.0
    %v1577 = vrcp.pop %v1576
    %v1578 = vmul.f32 1.0, %v1577
    %v1579 = vxor.u32 %v1570, 2147483648
    %v1580 = vmul.f32 %v1579, 1.442695
    %v1581 = vpow.pop %v1580
    %v1582 = vadd.f32 %v1581, 1.0
    %v1583 = vrcp.pop %v1582
    %v1584 = vmul.f32 1.0, %v1583
    %v1585 = vtanh.pop %v1571
    %v1586 = vxor.u32 %v1572, 2147483648
    %v1587 = vmul.f32 %v1586, 1.442695
    %v1588 = vpow.pop %v1587
    %v1589 = vadd.f32 %v1588, 1.0
    %v1590 = vrcp.pop %v1589
    %v1591 = vmul.f32 1.0, %v1590
    %v1593 = vrot.slane %v1416, 6
    %v1595 = vmul.f32 %v1584, %v1593
    %v1596 = vmul.f32 %v1578, %v1585
    %v1597 = vadd.f32 %v1595, %v1596
    %v1598 = vtanh.pop %v1597
    %v1599 = vmul.f32 %v1591, %v1598
    %1600 = vst [vmem:[#allocation4 + $0x8] sm:$0x3] %v1599
    %v1601 = vld [vmem:[#allocation3 + $0x20] sm:$0xc]
    %v1602 = vld [vmem:[#allocation3 + $0x28] sm:$0xc]
    %v1603 = vld [vmem:[#allocation3 + $0x30] sm:$0xc]
    %v1604 = vld [vmem:[#allocation3 + $0x38] sm:$0xc]
    %1605 = vmatprep.subr.mxu0 %v666
    %1606 = vmatpush1.msra.mxu0 %v665
    %1607 = vmatprep.subr.mxu0 %v662
    %1608 = vmatpush1.msra.mxu0 %v661
    %1609 = vmatprep.subr.mxu0 %v658
    %1610 = vmatpush1.msra.mxu0 %v657
    %1611 = vmatprep.subr.mxu0 %v654
    %1612 = vmatpush1.msra.mxu0 %v653
    %1613 = vmatprep.subr.mxu0 %v650
    %1614 = vmatpush1.msra.mxu0 %v649
    %1615 = vmatprep.subr.mxu0 %v646
    %1616 = vmatpush1.msra.mxu0 %v645
    %1617 = vmatprep.subr.mxu0 %v642
    %1618 = vmatpush1.msra.mxu0 %v641
    %1619 = vmatprep.subr.mxu0 %v638
    %1620 = vmatpush1.msra.mxu0 %v637
    %1621 = vmatprep.subr.mxu0 %v634
    %1622 = vmatpush1.msra.mxu0 %v633
    %1623 = vmatprep.subr.mxu0 %v630
    %1624 = vmatpush1.msra.mxu0 %v629
    %1625 = vmatprep.subr.mxu0 %v626
    %1626 = vmatpush1.msra.mxu0 %v625
    %1627 = vmatprep.subr.mxu0 %v622
    %1628 = vmatpush1.msra.mxu0 %v621
    %1629 = vmatprep.subr.mxu0 %v618
    %1630 = vmatpush1.msra.mxu0 %v617
    %1631 = vmatprep.subr.mxu0 %v614
    %1632 = vmatpush1.msra.mxu0 %v613
    %1633 = vmatprep.subr.mxu0 %v610
    %1634 = vmatpush1.msra.mxu0 %v609
    %1635 = vmatprep.subr.mxu0 %v606
    %1636 = vmatpush1.msra.mxu0 %v605
    %1637 = vmatprep.subr.mxu0 0.0
    %1638 = vmatpush2.msra.mxu0 0.0
    %1639 = vmatprep.subr.mxu0 0.0
    %1640 = vmatpush2.msra.mxu0 0.0
    %1641 = vmatprep.subr.mxu0 0.0
    %1642 = vmatpush2.msra.mxu0 0.0
    %1643 = vmatprep.subr.mxu0 0.0
    %1644 = vmatpush2.msra.mxu0 0.0
    %1645 = vmatprep.subr.mxu0 0.0
    %1646 = vmatpush2.msra.mxu0 0.0
    %1647 = vmatprep.subr.mxu0 0.0
    %1648 = vmatpush2.msra.mxu0 0.0
    %1649 = vmatprep.subr.mxu0 0.0
    %1650 = vmatpush2.msra.mxu0 0.0
    %1651 = vmatprep.subr.mxu0 0.0
    %1652 = vmatpush2.msra.mxu0 0.0
    %1653 = vmatprep.subr.mxu0 0.0
    %1654 = vmatpush2.msra.mxu0 0.0
    %1655 = vmatprep.subr.mxu0 0.0
    %1656 = vmatpush2.msra.mxu0 0.0
    %1657 = vmatprep.subr.mxu0 0.0
    %1658 = vmatpush2.msra.mxu0 0.0
    %1659 = vmatprep.subr.mxu0 0.0
    %1660 = vmatpush2.msra.mxu0 0.0
    %1661 = vmatprep.subr.mxu0 0.0
    %1662 = vmatpush2.msra.mxu0 0.0
    %1663 = vmatprep.subr.mxu0 0.0
    %1664 = vmatpush2.msra.mxu0 0.0
    %1665 = vmatprep.subr.mxu0 0.0
    %1666 = vmatpush2.msra.mxu0 0.0
    %1667 = vmatprep.subr.mxu0 0.0
    %1668 = vmatpush2.msra.mxu0 0.0
    %1669 = vmatprep.mubr.f32.mxu0 0.0
    %1670 = vmatmul.mubr.f32.gmra.mxu0 %v1599
    %v1671 = vpop.f32.mrf.mxu0
    %v1672 = vadd.f32 0.0, %v1671
    %v1673 = vpop.f32.mrf.mxu0
    %v1674 = vadd.f32 0.0, %v1673
    %1675 = vdwg.mxu0
    %1676 = vmatprep.subr.mxu0 %v668
    %1677 = vmatpush1.msra.mxu0 %v667
    %1678 = vmatprep.subr.mxu0 %v664
    %1679 = vmatpush1.msra.mxu0 %v663
    %1680 = vmatprep.subr.mxu0 %v660
    %1681 = vmatpush1.msra.mxu0 %v659
    %1682 = vmatprep.subr.mxu0 %v656
    %1683 = vmatpush1.msra.mxu0 %v655
    %1684 = vmatprep.subr.mxu0 %v652
    %1685 = vmatpush1.msra.mxu0 %v651
    %1686 = vmatprep.subr.mxu0 %v648
    %1687 = vmatpush1.msra.mxu0 %v647
    %1688 = vmatprep.subr.mxu0 %v644
    %1689 = vmatpush1.msra.mxu0 %v643
    %1690 = vmatprep.subr.mxu0 %v640
    %1691 = vmatpush1.msra.mxu0 %v639
    %1692 = vmatprep.subr.mxu0 %v636
    %1693 = vmatpush1.msra.mxu0 %v635
    %1694 = vmatprep.subr.mxu0 %v632
    %1695 = vmatpush1.msra.mxu0 %v631
    %1696 = vmatprep.subr.mxu0 %v628
    %1697 = vmatpush1.msra.mxu0 %v627
    %1698 = vmatprep.subr.mxu0 %v624
    %1699 = vmatpush1.msra.mxu0 %v623
    %1700 = vmatprep.subr.mxu0 %v620
    %1701 = vmatpush1.msra.mxu0 %v619
    %1702 = vmatprep.subr.mxu0 %v616
    %1703 = vmatpush1.msra.mxu0 %v615
    %1704 = vmatprep.subr.mxu0 %v612
    %1705 = vmatpush1.msra.mxu0 %v611
    %1706 = vmatprep.subr.mxu0 %v608
    %1707 = vmatpush1.msra.mxu0 %v607
    %1708 = vmatprep.subr.mxu0 0.0
    %1709 = vmatpush2.msra.mxu0 0.0
    %1710 = vmatprep.subr.mxu0 0.0
    %1711 = vmatpush2.msra.mxu0 0.0
    %1712 = vmatprep.subr.mxu0 0.0
    %1713 = vmatpush2.msra.mxu0 0.0
    %1714 = vmatprep.subr.mxu0 0.0
    %1715 = vmatpush2.msra.mxu0 0.0
    %1716 = vmatprep.subr.mxu0 0.0
    %1717 = vmatpush2.msra.mxu0 0.0
    %1718 = vmatprep.subr.mxu0 0.0
    %1719 = vmatpush2.msra.mxu0 0.0
    %1720 = vmatprep.subr.mxu0 0.0
    %1721 = vmatpush2.msra.mxu0 0.0
    %1722 = vmatprep.subr.mxu0 0.0
    %1723 = vmatpush2.msra.mxu0 0.0
    %1724 = vmatprep.subr.mxu0 0.0
    %1725 = vmatpush2.msra.mxu0 0.0
    %1726 = vmatprep.subr.mxu0 0.0
    %1727 = vmatpush2.msra.mxu0 0.0
    %1728 = vmatprep.subr.mxu0 0.0
    %1729 = vmatpush2.msra.mxu0 0.0
    %1730 = vmatprep.subr.mxu0 0.0
    %1731 = vmatpush2.msra.mxu0 0.0
    %1732 = vmatprep.subr.mxu0 0.0
    %1733 = vmatpush2.msra.mxu0 0.0
    %1734 = vmatprep.subr.mxu0 0.0
    %1735 = vmatpush2.msra.mxu0 0.0
    %1736 = vmatprep.subr.mxu0 0.0
    %1737 = vmatpush2.msra.mxu0 0.0
    %1738 = vmatprep.subr.mxu0 0.0
    %1739 = vmatpush2.msra.mxu0 0.0
    %1740 = vmatprep.mubr.f32.mxu0 0.0
    %1741 = vmatmul.mubr.f32.gmra.mxu0 %v1599
    %v1742 = vpop.f32.mrf.mxu0
    %v1743 = vadd.f32 0.0, %v1742
    %v1744 = vpop.f32.mrf.mxu0
    %v1745 = vadd.f32 0.0, %v1744
    %1746 = vdwg.mxu0
    %v1751 = vrot.slane %v1672, 6
    %v1752 = vrot.slane %v1674, 6
    %v1753 = vrot.slane %v1743, 6
    %v1754 = vrot.slane %v1745, 6
    %v1759 = vadd.f32 %v1601, %v1751
    %v1760 = vadd.f32 %v1602, %v1752
    %v1761 = vadd.f32 %v1603, %v1753
    %v1762 = vadd.f32 %v1604, %v1754
    %v1763 = vxor.u32 %v1759, 2147483648
    %v1764 = vmul.f32 %v1763, 1.442695
    %v1765 = vpow.pop %v1764
    %v1766 = vadd.f32 %v1765, 1.0
    %v1767 = vrcp.pop %v1766
    %v1768 = vmul.f32 1.0, %v1767
    %v1769 = vxor.u32 %v1760, 2147483648
    %v1770 = vmul.f32 %v1769, 1.442695
    %v1771 = vpow.pop %v1770
    %v1772 = vadd.f32 %v1771, 1.0
    %v1773 = vrcp.pop %v1772
    %v1774 = vmul.f32 1.0, %v1773
    %v1775 = vtanh.pop %v1761
    %v1776 = vxor.u32 %v1762, 2147483648
    %v1777 = vmul.f32 %v1776, 1.442695
    %v1778 = vpow.pop %v1777
    %v1779 = vadd.f32 %v1778, 1.0
    %v1780 = vrcp.pop %v1779
    %v1781 = vmul.f32 1.0, %v1780
    %v1783 = vrot.slane %v1597, 6
    %v1785 = vmul.f32 %v1774, %v1783
    %v1786 = vmul.f32 %v1768, %v1775
    %v1787 = vadd.f32 %v1785, %v1786
    %v1788 = vtanh.pop %v1787
    %v1789 = vmul.f32 %v1781, %v1788
    %1790 = vst [vmem:[#allocation4 + $0x8] sm:$0xc] %v1789
    %v1791 = vld [vmem:[#allocation3 + $0x20] sm:$0x30]
    %v1792 = vld [vmem:[#allocation3 + $0x28] sm:$0x30]
    %v1793 = vld [vmem:[#allocation3 + $0x30] sm:$0x30]
    %v1794 = vld [vmem:[#allocation3 + $0x38] sm:$0x30]
    %v1796 = vrot.slane %v1789, 2
    %1798 = vmatprep.subr.mxu0 %v666
    %1799 = vmatpush1.msra.mxu0 %v665
    %1800 = vmatprep.subr.mxu0 %v662
    %1801 = vmatpush1.msra.mxu0 %v661
    %1802 = vmatprep.subr.mxu0 %v658
    %1803 = vmatpush1.msra.mxu0 %v657
    %1804 = vmatprep.subr.mxu0 %v654
    %1805 = vmatpush1.msra.mxu0 %v653
    %1806 = vmatprep.subr.mxu0 %v650
    %1807 = vmatpush1.msra.mxu0 %v649
    %1808 = vmatprep.subr.mxu0 %v646
    %1809 = vmatpush1.msra.mxu0 %v645
    %1810 = vmatprep.subr.mxu0 %v642
    %1811 = vmatpush1.msra.mxu0 %v641
    %1812 = vmatprep.subr.mxu0 %v638
    %1813 = vmatpush1.msra.mxu0 %v637
    %1814 = vmatprep.subr.mxu0 %v634
    %1815 = vmatpush1.msra.mxu0 %v633
    %1816 = vmatprep.subr.mxu0 %v630
    %1817 = vmatpush1.msra.mxu0 %v629
    %1818 = vmatprep.subr.mxu0 %v626
    %1819 = vmatpush1.msra.mxu0 %v625
    %1820 = vmatprep.subr.mxu0 %v622
    %1821 = vmatpush1.msra.mxu0 %v621
    %1822 = vmatprep.subr.mxu0 %v618
    %1823 = vmatpush1.msra.mxu0 %v617
    %1824 = vmatprep.subr.mxu0 %v614
    %1825 = vmatpush1.msra.mxu0 %v613
    %1826 = vmatprep.subr.mxu0 %v610
    %1827 = vmatpush1.msra.mxu0 %v609
    %1828 = vmatprep.subr.mxu0 %v606
    %1829 = vmatpush1.msra.mxu0 %v605
    %1830 = vmatprep.subr.mxu0 0.0
    %1831 = vmatpush2.msra.mxu0 0.0
    %1832 = vmatprep.subr.mxu0 0.0
    %1833 = vmatpush2.msra.mxu0 0.0
    %1834 = vmatprep.subr.mxu0 0.0
    %1835 = vmatpush2.msra.mxu0 0.0
    %1836 = vmatprep.subr.mxu0 0.0
    %1837 = vmatpush2.msra.mxu0 0.0
    %1838 = vmatprep.subr.mxu0 0.0
    %1839 = vmatpush2.msra.mxu0 0.0
    %1840 = vmatprep.subr.mxu0 0.0
    %1841 = vmatpush2.msra.mxu0 0.0
    %1842 = vmatprep.subr.mxu0 0.0
    %1843 = vmatpush2.msra.mxu0 0.0
    %1844 = vmatprep.subr.mxu0 0.0
    %1845 = vmatpush2.msra.mxu0 0.0
    %1846 = vmatprep.subr.mxu0 0.0
    %1847 = vmatpush2.msra.mxu0 0.0
    %1848 = vmatprep.subr.mxu0 0.0
    %1849 = vmatpush2.msra.mxu0 0.0
    %1850 = vmatprep.subr.mxu0 0.0
    %1851 = vmatpush2.msra.mxu0 0.0
    %1852 = vmatprep.subr.mxu0 0.0
    %1853 = vmatpush2.msra.mxu0 0.0
    %1854 = vmatprep.subr.mxu0 0.0
    %1855 = vmatpush2.msra.mxu0 0.0
    %1856 = vmatprep.subr.mxu0 0.0
    %1857 = vmatpush2.msra.mxu0 0.0
    %1858 = vmatprep.subr.mxu0 0.0
    %1859 = vmatpush2.msra.mxu0 0.0
    %1860 = vmatprep.subr.mxu0 0.0
    %1861 = vmatpush2.msra.mxu0 0.0
    %1862 = vmatprep.mubr.f32.mxu0 0.0
    %1863 = vmatmul.mubr.f32.gmra.mxu0 %v1796
    %v1864 = vpop.f32.mrf.mxu0
    %v1865 = vadd.f32 0.0, %v1864
    %v1866 = vpop.f32.mrf.mxu0
    %v1867 = vadd.f32 0.0, %v1866
    %1868 = vdwg.mxu0
    %1869 = vmatprep.subr.mxu0 %v668
    %1870 = vmatpush1.msra.mxu0 %v667
    %1871 = vmatprep.subr.mxu0 %v664
    %1872 = vmatpush1.msra.mxu0 %v663
    %1873 = vmatprep.subr.mxu0 %v660
    %1874 = vmatpush1.msra.mxu0 %v659
    %1875 = vmatprep.subr.mxu0 %v656
    %1876 = vmatpush1.msra.mxu0 %v655
    %1877 = vmatprep.subr.mxu0 %v652
    %1878 = vmatpush1.msra.mxu0 %v651
    %1879 = vmatprep.subr.mxu0 %v648
    %1880 = vmatpush1.msra.mxu0 %v647
    %1881 = vmatprep.subr.mxu0 %v644
    %1882 = vmatpush1.msra.mxu0 %v643
    %1883 = vmatprep.subr.mxu0 %v640
    %1884 = vmatpush1.msra.mxu0 %v639
    %1885 = vmatprep.subr.mxu0 %v636
    %1886 = vmatpush1.msra.mxu0 %v635
    %1887 = vmatprep.subr.mxu0 %v632
    %1888 = vmatpush1.msra.mxu0 %v631
    %1889 = vmatprep.subr.mxu0 %v628
    %1890 = vmatpush1.msra.mxu0 %v627
    %1891 = vmatprep.subr.mxu0 %v624
    %1892 = vmatpush1.msra.mxu0 %v623
    %1893 = vmatprep.subr.mxu0 %v620
    %1894 = vmatpush1.msra.mxu0 %v619
    %1895 = vmatprep.subr.mxu0 %v616
    %1896 = vmatpush1.msra.mxu0 %v615
    %1897 = vmatprep.subr.mxu0 %v612
    %1898 = vmatpush1.msra.mxu0 %v611
    %1899 = vmatprep.subr.mxu0 %v608
    %1900 = vmatpush1.msra.mxu0 %v607
    %1901 = vmatprep.subr.mxu0 0.0
    %1902 = vmatpush2.msra.mxu0 0.0
    %1903 = vmatprep.subr.mxu0 0.0
    %1904 = vmatpush2.msra.mxu0 0.0
    %1905 = vmatprep.subr.mxu0 0.0
    %1906 = vmatpush2.msra.mxu0 0.0
    %1907 = vmatprep.subr.mxu0 0.0
    %1908 = vmatpush2.msra.mxu0 0.0
    %1909 = vmatprep.subr.mxu0 0.0
    %1910 = vmatpush2.msra.mxu0 0.0
    %1911 = vmatprep.subr.mxu0 0.0
    %1912 = vmatpush2.msra.mxu0 0.0
    %1913 = vmatprep.subr.mxu0 0.0
    %1914 = vmatpush2.msra.mxu0 0.0
    %1915 = vmatprep.subr.mxu0 0.0
    %1916 = vmatpush2.msra.mxu0 0.0
    %1917 = vmatprep.subr.mxu0 0.0
    %1918 = vmatpush2.msra.mxu0 0.0
    %1919 = vmatprep.subr.mxu0 0.0
    %1920 = vmatpush2.msra.mxu0 0.0
    %1921 = vmatprep.subr.mxu0 0.0
    %1922 = vmatpush2.msra.mxu0 0.0
    %1923 = vmatprep.subr.mxu0 0.0
    %1924 = vmatpush2.msra.mxu0 0.0
    %1925 = vmatprep.subr.mxu0 0.0
    %1926 = vmatpush2.msra.mxu0 0.0
    %1927 = vmatprep.subr.mxu0 0.0
    %1928 = vmatpush2.msra.mxu0 0.0
    %1929 = vmatprep.subr.mxu0 0.0
    %1930 = vmatpush2.msra.mxu0 0.0
    %1931 = vmatprep.subr.mxu0 0.0
    %1932 = vmatpush2.msra.mxu0 0.0
    %1933 = vmatprep.mubr.f32.mxu0 0.0
    %1934 = vmatmul.mubr.f32.gmra.mxu0 %v1796
    %v1935 = vpop.f32.mrf.mxu0
    %v1936 = vadd.f32 0.0, %v1935
    %v1937 = vpop.f32.mrf.mxu0
    %v1938 = vadd.f32 0.0, %v1937
    %1939 = vdwg.mxu0
    %v1944 = vrot.slane %v1865, 4
    %v1945 = vrot.slane %v1867, 4
    %v1946 = vrot.slane %v1936, 4
    %v1947 = vrot.slane %v1938, 4
    %v1952 = vadd.f32 %v1791, %v1944
    %v1953 = vadd.f32 %v1792, %v1945
    %v1954 = vadd.f32 %v1793, %v1946
    %v1955 = vadd.f32 %v1794, %v1947
    %v1956 = vxor.u32 %v1952, 2147483648
    %v1957 = vmul.f32 %v1956, 1.442695
    %v1958 = vpow.pop %v1957
    %v1959 = vadd.f32 %v1958, 1.0
    %v1960 = vrcp.pop %v1959
    %v1961 = vmul.f32 1.0, %v1960
    %v1962 = vxor.u32 %v1953, 2147483648
    %v1963 = vmul.f32 %v1962, 1.442695
    %v1964 = vpow.pop %v1963
    %v1965 = vadd.f32 %v1964, 1.0
    %v1966 = vrcp.pop %v1965
    %v1967 = vmul.f32 1.0, %v1966
    %v1968 = vtanh.pop %v1954
    %v1969 = vxor.u32 %v1955, 2147483648
    %v1970 = vmul.f32 %v1969, 1.442695
    %v1971 = vpow.pop %v1970
    %v1972 = vadd.f32 %v1971, 1.0
    %v1973 = vrcp.pop %v1972
    %v1974 = vmul.f32 1.0, %v1973
    %v1976 = vrot.slane %v1787, 6
    %v1978 = vmul.f32 %v1967, %v1976
    %v1979 = vmul.f32 %v1961, %v1968
    %v1980 = vadd.f32 %v1978, %v1979
    %v1981 = vtanh.pop %v1980
    %v1982 = vmul.f32 %v1974, %v1981
    %1983 = vst [vmem:[#allocation4 + $0x8] sm:$0x30] %v1982
    %v1984 = vld [vmem:[#allocation3 + $0x20] sm:$0xc0]
    %v1985 = vld [vmem:[#allocation3 + $0x28] sm:$0xc0]
    %v1986 = vld [vmem:[#allocation3 + $0x30] sm:$0xc0]
    %v1987 = vld [vmem:[#allocation3 + $0x38] sm:$0xc0]
    %v1989 = vrot.slane %v1982, 4
    %1991 = vmatprep.subr.mxu0 %v666
    %1992 = vmatpush1.msra.mxu0 %v665
    %1993 = vmatprep.subr.mxu0 %v662
    %1994 = vmatpush1.msra.mxu0 %v661
    %1995 = vmatprep.subr.mxu0 %v658
    %1996 = vmatpush1.msra.mxu0 %v657
    %1997 = vmatprep.subr.mxu0 %v654
    %1998 = vmatpush1.msra.mxu0 %v653
    %1999 = vmatprep.subr.mxu0 %v650
    %2000 = vmatpush1.msra.mxu0 %v649
    %2001 = vmatprep.subr.mxu0 %v646
    %2002 = vmatpush1.msra.mxu0 %v645
    %2003 = vmatprep.subr.mxu0 %v642
    %2004 = vmatpush1.msra.mxu0 %v641
    %2005 = vmatprep.subr.mxu0 %v638
    %2006 = vmatpush1.msra.mxu0 %v637
    %2007 = vmatprep.subr.mxu0 %v634
    %2008 = vmatpush1.msra.mxu0 %v633
    %2009 = vmatprep.subr.mxu0 %v630
    %2010 = vmatpush1.msra.mxu0 %v629
    %2011 = vmatprep.subr.mxu0 %v626
    %2012 = vmatpush1.msra.mxu0 %v625
    %2013 = vmatprep.subr.mxu0 %v622
    %2014 = vmatpush1.msra.mxu0 %v621
    %2015 = vmatprep.subr.mxu0 %v618
    %2016 = vmatpush1.msra.mxu0 %v617
    %2017 = vmatprep.subr.mxu0 %v614
    %2018 = vmatpush1.msra.mxu0 %v613
    %2019 = vmatprep.subr.mxu0 %v610
    %2020 = vmatpush1.msra.mxu0 %v609
    %2021 = vmatprep.subr.mxu0 %v606
    %2022 = vmatpush1.msra.mxu0 %v605
    %2023 = vmatprep.subr.mxu0 0.0
    %2024 = vmatpush2.msra.mxu0 0.0
    %2025 = vmatprep.subr.mxu0 0.0
    %2026 = vmatpush2.msra.mxu0 0.0
    %2027 = vmatprep.subr.mxu0 0.0
    %2028 = vmatpush2.msra.mxu0 0.0
    %2029 = vmatprep.subr.mxu0 0.0
    %2030 = vmatpush2.msra.mxu0 0.0
    %2031 = vmatprep.subr.mxu0 0.0
    %2032 = vmatpush2.msra.mxu0 0.0
    %2033 = vmatprep.subr.mxu0 0.0
    %2034 = vmatpush2.msra.mxu0 0.0
    %2035 = vmatprep.subr.mxu0 0.0
    %2036 = vmatpush2.msra.mxu0 0.0
    %2037 = vmatprep.subr.mxu0 0.0
    %2038 = vmatpush2.msra.mxu0 0.0
    %2039 = vmatprep.subr.mxu0 0.0
    %2040 = vmatpush2.msra.mxu0 0.0
    %2041 = vmatprep.subr.mxu0 0.0
    %2042 = vmatpush2.msra.mxu0 0.0
    %2043 = vmatprep.subr.mxu0 0.0
    %2044 = vmatpush2.msra.mxu0 0.0
    %2045 = vmatprep.subr.mxu0 0.0
    %2046 = vmatpush2.msra.mxu0 0.0
    %2047 = vmatprep.subr.mxu0 0.0
    %2048 = vmatpush2.msra.mxu0 0.0
    %2049 = vmatprep.subr.mxu0 0.0
    %2050 = vmatpush2.msra.mxu0 0.0
    %2051 = vmatprep.subr.mxu0 0.0
    %2052 = vmatpush2.msra.mxu0 0.0
    %2053 = vmatprep.subr.mxu0 0.0
    %2054 = vmatpush2.msra.mxu0 0.0
    %2055 = vmatprep.mubr.f32.mxu0 0.0
    %2056 = vmatmul.mubr.f32.gmra.mxu0 %v1989
    %v2057 = vpop.f32.mrf.mxu0
    %v2058 = vadd.f32 0.0, %v2057
    %v2059 = vpop.f32.mrf.mxu0
    %v2060 = vadd.f32 0.0, %v2059
    %2061 = vdwg.mxu0
    %2062 = vmatprep.subr.mxu0 %v668
    %2063 = vmatpush1.msra.mxu0 %v667
    %2064 = vmatprep.subr.mxu0 %v664
    %2065 = vmatpush1.msra.mxu0 %v663
    %2066 = vmatprep.subr.mxu0 %v660
    %2067 = vmatpush1.msra.mxu0 %v659
    %2068 = vmatprep.subr.mxu0 %v656
    %2069 = vmatpush1.msra.mxu0 %v655
    %2070 = vmatprep.subr.mxu0 %v652
    %2071 = vmatpush1.msra.mxu0 %v651
    %2072 = vmatprep.subr.mxu0 %v648
    %2073 = vmatpush1.msra.mxu0 %v647
    %2074 = vmatprep.subr.mxu0 %v644
    %2075 = vmatpush1.msra.mxu0 %v643
    %2076 = vmatprep.subr.mxu0 %v640
    %2077 = vmatpush1.msra.mxu0 %v639
    %2078 = vmatprep.subr.mxu0 %v636
    %2079 = vmatpush1.msra.mxu0 %v635
    %2080 = vmatprep.subr.mxu0 %v632
    %2081 = vmatpush1.msra.mxu0 %v631
    %2082 = vmatprep.subr.mxu0 %v628
    %2083 = vmatpush1.msra.mxu0 %v627
    %2084 = vmatprep.subr.mxu0 %v624
    %2085 = vmatpush1.msra.mxu0 %v623
    %2086 = vmatprep.subr.mxu0 %v620
    %2087 = vmatpush1.msra.mxu0 %v619
    %2088 = vmatprep.subr.mxu0 %v616
    %2089 = vmatpush1.msra.mxu0 %v615
    %2090 = vmatprep.subr.mxu0 %v612
    %2091 = vmatpush1.msra.mxu0 %v611
    %2092 = vmatprep.subr.mxu0 %v608
    %2093 = vmatpush1.msra.mxu0 %v607
    %2094 = vmatprep.subr.mxu0 0.0
    %2095 = vmatpush2.msra.mxu0 0.0
    %2096 = vmatprep.subr.mxu0 0.0
    %2097 = vmatpush2.msra.mxu0 0.0
    %2098 = vmatprep.subr.mxu0 0.0
    %2099 = vmatpush2.msra.mxu0 0.0
    %2100 = vmatprep.subr.mxu0 0.0
    %2101 = vmatpush2.msra.mxu0 0.0
    %2102 = vmatprep.subr.mxu0 0.0
    %2103 = vmatpush2.msra.mxu0 0.0
    %2104 = vmatprep.subr.mxu0 0.0
    %2105 = vmatpush2.msra.mxu0 0.0
    %2106 = vmatprep.subr.mxu0 0.0
    %2107 = vmatpush2.msra.mxu0 0.0
    %2108 = vmatprep.subr.mxu0 0.0
    %2109 = vmatpush2.msra.mxu0 0.0
    %2110 = vmatprep.subr.mxu0 0.0
    %2111 = vmatpush2.msra.mxu0 0.0
    %2112 = vmatprep.subr.mxu0 0.0
    %2113 = vmatpush2.msra.mxu0 0.0
    %2114 = vmatprep.subr.mxu0 0.0
    %2115 = vmatpush2.msra.mxu0 0.0
    %2116 = vmatprep.subr.mxu0 0.0
    %2117 = vmatpush2.msra.mxu0 0.0
    %2118 = vmatprep.subr.mxu0 0.0
    %2119 = vmatpush2.msra.mxu0 0.0
    %2120 = vmatprep.subr.mxu0 0.0
    %2121 = vmatpush2.msra.mxu0 0.0
    %2122 = vmatprep.subr.mxu0 0.0
    %2123 = vmatpush2.msra.mxu0 0.0
    %2124 = vmatprep.subr.mxu0 0.0
    %2125 = vmatpush2.msra.mxu0 0.0
    %2126 = vmatprep.mubr.f32.mxu0 0.0
    %2127 = vmatmul.mubr.f32.gmra.mxu0 %v1989
    %v2128 = vpop.f32.mrf.mxu0
    %v2129 = vadd.f32 0.0, %v2128
    %v2130 = vpop.f32.mrf.mxu0
    %v2131 = vadd.f32 0.0, %v2130
    %2132 = vdwg.mxu0
    %v2137 = vrot.slane %v2058, 2
    %v2138 = vrot.slane %v2060, 2
    %v2139 = vrot.slane %v2129, 2
    %v2140 = vrot.slane %v2131, 2
    %v2145 = vadd.f32 %v1984, %v2137
    %v2146 = vadd.f32 %v1985, %v2138
    %v2147 = vadd.f32 %v1986, %v2139
    %v2148 = vadd.f32 %v1987, %v2140
    %v2149 = vxor.u32 %v2145, 2147483648
    %v2150 = vmul.f32 %v2149, 1.442695
    %v2151 = vpow.pop %v2150
    %v2152 = vadd.f32 %v2151, 1.0
    %v2153 = vrcp.pop %v2152
    %v2154 = vmul.f32 1.0, %v2153
    %v2155 = vxor.u32 %v2146, 2147483648
    %v2156 = vmul.f32 %v2155, 1.442695
    %v2157 = vpow.pop %v2156
    %v2158 = vadd.f32 %v2157, 1.0
    %v2159 = vrcp.pop %v2158
    %v2160 = vmul.f32 1.0, %v2159
    %v2161 = vtanh.pop %v2147
    %v2162 = vxor.u32 %v2148, 2147483648
    %v2163 = vmul.f32 %v2162, 1.442695
    %v2164 = vpow.pop %v2163
    %v2165 = vadd.f32 %v2164, 1.0
    %v2166 = vrcp.pop %v2165
    %v2167 = vmul.f32 1.0, %v2166
    %v2169 = vrot.slane %v1980, 6
    %v2171 = vmul.f32 %v2160, %v2169
    %v2172 = vmul.f32 %v2154, %v2161
    %v2173 = vadd.f32 %v2171, %v2172
    %v2174 = vtanh.pop %v2173
    %v2175 = vmul.f32 %v2167, %v2174
    %2176 = vst [vmem:[#allocation4 + $0x8] sm:$0xc0] %v2175
    %v2177 = vld [vmem:[#allocation4] sm:$0x3]
    %v2178 = vld [vmem:[#allocation4 + $0xe] sm:$0x3]
    %v2179 = vsel %vm134, %v2177, %v2178
    %2180 = vst [vmem:[#allocation5] sm:$0x3] %v2179
    %v2181 = vld [vmem:[#allocation4 + $0x2] sm:$0x3]
    %v2182 = vld [vmem:[#allocation4 + $0xc] sm:$0x3]
    %v2183 = vsel %vm134, %v2181, %v2182
    %2184 = vst [vmem:[#allocation5 + $0x2] sm:$0x3] %v2183
    %v2185 = vld [vmem:[#allocation4 + $0x4] sm:$0x3]
    %v2186 = vld [vmem:[#allocation4 + $0xa] sm:$0x3]
    %v2187 = vsel %vm134, %v2185, %v2186
    %2188 = vst [vmem:[#allocation5 + $0x4] sm:$0x3] %v2187
    %v2189 = vld [vmem:[#allocation4 + $0x6] sm:$0x3]
    %v2190 = vld [vmem:[#allocation4 + $0x8] sm:$0x3]
    %v2191 = vsel %vm134, %v2189, %v2190
    %2192 = vst [vmem:[#allocation5 + $0x6] sm:$0x3] %v2191
    %v2193 = vld [vmem:[#allocation4 + $0x8] sm:$0x3]
    %v2194 = vld [vmem:[#allocation4 + $0x6] sm:$0x3]
    %v2195 = vsel %vm134, %v2193, %v2194
    %2196 = vst [vmem:[#allocation5 + $0x8] sm:$0x3] %v2195
    %v2197 = vld [vmem:[#allocation4 + $0xa] sm:$0x3]
    %v2198 = vld [vmem:[#allocation4 + $0x4] sm:$0x3]
    %v2199 = vsel %vm134, %v2197, %v2198
    %2200 = vst [vmem:[#allocation5 + $0xa] sm:$0x3] %v2199
    %v2201 = vld [vmem:[#allocation4 + $0xc] sm:$0x3]
    %v2202 = vld [vmem:[#allocation4 + $0x2] sm:$0x3]
    %v2203 = vsel %vm134, %v2201, %v2202
    %2204 = vst [vmem:[#allocation5 + $0xc] sm:$0x3] %v2203
    %v2205 = vld [vmem:[#allocation4 + $0xe] sm:$0x3]
    %v2206 = vld [vmem:[#allocation4] sm:$0x3]
    %v2207 = vsel %vm134, %v2205, %v2206
    %2208 = vst [vmem:[#allocation5 + $0xe] sm:$0x3] %v2207
    %v2209 = vld [vmem:[#allocation5] sm:$0xff]
    %v2210 = vld [vmem:[#allocation5 + $0x8] sm:$0xff]
    %v2211 = vld [vmem:[#allocation9] sm:$0xff]
    %v2212 = vld [vmem:[#allocation9 + $0x8] sm:$0xff]
    %v2213 = vld [vmem:[#allocation9 + $0x10] sm:$0xff]
    %v2214 = vld [vmem:[#allocation9 + $0x18] sm:$0xff]
    %v2215 = vld [vmem:[#allocation9 + $0x20] sm:$0xff]
    %v2216 = vld [vmem:[#allocation9 + $0x28] sm:$0xff]
    %v2217 = vld [vmem:[#allocation9 + $0x30] sm:$0xff]
    %v2218 = vld [vmem:[#allocation9 + $0x38] sm:$0xff]
    %v2219 = vld [vmem:[#allocation9 + $0x40] sm:$0xff]
    %v2220 = vld [vmem:[#allocation9 + $0x48] sm:$0xff]
    %v2221 = vld [vmem:[#allocation9 + $0x50] sm:$0xff]
    %v2222 = vld [vmem:[#allocation9 + $0x58] sm:$0xff]
    %v2223 = vld [vmem:[#allocation9 + $0x60] sm:$0xff]
    %v2224 = vld [vmem:[#allocation9 + $0x68] sm:$0xff]
    %v2225 = vld [vmem:[#allocation9 + $0x70] sm:$0xff]
    %v2226 = vld [vmem:[#allocation9 + $0x78] sm:$0xff]
    %v2227 = vld [vmem:[#allocation9 + $0x80] sm:$0xff]
    %v2228 = vld [vmem:[#allocation9 + $0x88] sm:$0xff]
    %v2229 = vld [vmem:[#allocation9 + $0x90] sm:$0xff]
    %v2230 = vld [vmem:[#allocation9 + $0x98] sm:$0xff]
    %v2231 = vld [vmem:[#allocation9 + $0xa0] sm:$0xff]
    %v2232 = vld [vmem:[#allocation9 + $0xa8] sm:$0xff]
    %v2233 = vld [vmem:[#allocation9 + $0xb0] sm:$0xff]
    %v2234 = vld [vmem:[#allocation9 + $0xb8] sm:$0xff]
    %v2235 = vld [vmem:[#allocation9 + $0xc0] sm:$0xff]
    %v2236 = vld [vmem:[#allocation9 + $0xc8] sm:$0xff]
    %v2237 = vld [vmem:[#allocation9 + $0xd0] sm:$0xff]
    %v2238 = vld [vmem:[#allocation9 + $0xd8] sm:$0xff]
    %v2239 = vld [vmem:[#allocation9 + $0xe0] sm:$0xff]
    %v2240 = vld [vmem:[#allocation9 + $0xe8] sm:$0xff]
    %v2241 = vld [vmem:[#allocation9 + $0xf0] sm:$0xff]
    %v2242 = vld [vmem:[#allocation9 + $0xf8] sm:$0xff]
    %v2243 = vld [vmem:[#allocation9 + $0x100] sm:$0xff]
    %v2244 = vld [vmem:[#allocation9 + $0x108] sm:$0xff]
    %v2245 = vld [vmem:[#allocation9 + $0x110] sm:$0xff]
    %v2246 = vld [vmem:[#allocation9 + $0x118] sm:$0xff]
    %v2247 = vld [vmem:[#allocation9 + $0x120] sm:$0xff]
    %v2248 = vld [vmem:[#allocation9 + $0x128] sm:$0xff]
    %v2249 = vld [vmem:[#allocation9 + $0x130] sm:$0xff]
    %v2250 = vld [vmem:[#allocation9 + $0x138] sm:$0xff]
    %v2251 = vld [vmem:[#allocation9 + $0x140] sm:$0xff]
    %v2252 = vld [vmem:[#allocation9 + $0x148] sm:$0xff]
    %v2253 = vld [vmem:[#allocation9 + $0x150] sm:$0xff]
    %v2254 = vld [vmem:[#allocation9 + $0x158] sm:$0xff]
    %v2255 = vld [vmem:[#allocation9 + $0x160] sm:$0xff]
    %v2256 = vld [vmem:[#allocation9 + $0x168] sm:$0xff]
    %v2257 = vld [vmem:[#allocation9 + $0x170] sm:$0xff]
    %v2258 = vld [vmem:[#allocation9 + $0x178] sm:$0xff]
    %v2259 = vld [vmem:[#allocation9 + $0x180] sm:$0xff]
    %v2260 = vld [vmem:[#allocation9 + $0x188] sm:$0xff]
    %v2261 = vld [vmem:[#allocation9 + $0x190] sm:$0xff]
    %v2262 = vld [vmem:[#allocation9 + $0x198] sm:$0xff]
    %v2263 = vld [vmem:[#allocation9 + $0x1a0] sm:$0xff]
    %v2264 = vld [vmem:[#allocation9 + $0x1a8] sm:$0xff]
    %v2265 = vld [vmem:[#allocation9 + $0x1b0] sm:$0xff]
    %v2266 = vld [vmem:[#allocation9 + $0x1b8] sm:$0xff]
    %v2267 = vld [vmem:[#allocation9 + $0x1c0] sm:$0xff]
    %v2268 = vld [vmem:[#allocation9 + $0x1c8] sm:$0xff]
    %v2269 = vld [vmem:[#allocation9 + $0x1d0] sm:$0xff]
    %v2270 = vld [vmem:[#allocation9 + $0x1d8] sm:$0xff]
    %v2271 = vld [vmem:[#allocation9 + $0x1e0] sm:$0xff]
    %v2272 = vld [vmem:[#allocation9 + $0x1e8] sm:$0xff]
    %v2273 = vld [vmem:[#allocation9 + $0x1f0] sm:$0xff]
    %v2274 = vld [vmem:[#allocation9 + $0x1f8] sm:$0xff]
    %2275 = vmatprep.subr.mxu0 %v2272
    %2276 = vmatpush1.msra.mxu0 %v2271
    %2277 = vmatprep.subr.mxu0 %v2268
    %2278 = vmatpush1.msra.mxu0 %v2267
    %2279 = vmatprep.subr.mxu0 %v2264
    %2280 = vmatpush1.msra.mxu0 %v2263
    %2281 = vmatprep.subr.mxu0 %v2260
    %2282 = vmatpush1.msra.mxu0 %v2259
    %2283 = vmatprep.subr.mxu0 %v2256
    %2284 = vmatpush1.msra.mxu0 %v2255
    %2285 = vmatprep.subr.mxu0 %v2252
    %2286 = vmatpush1.msra.mxu0 %v2251
    %2287 = vmatprep.subr.mxu0 %v2248
    %2288 = vmatpush1.msra.mxu0 %v2247
    %2289 = vmatprep.subr.mxu0 %v2244
    %2290 = vmatpush1.msra.mxu0 %v2243
    %2291 = vmatprep.subr.mxu0 %v2240
    %2292 = vmatpush1.msra.mxu0 %v2239
    %2293 = vmatprep.subr.mxu0 %v2236
    %2294 = vmatpush1.msra.mxu0 %v2235
    %2295 = vmatprep.subr.mxu0 %v2232
    %2296 = vmatpush1.msra.mxu0 %v2231
    %2297 = vmatprep.subr.mxu0 %v2228
    %2298 = vmatpush1.msra.mxu0 %v2227
    %2299 = vmatprep.subr.mxu0 %v2224
    %2300 = vmatpush1.msra.mxu0 %v2223
    %2301 = vmatprep.subr.mxu0 %v2220
    %2302 = vmatpush1.msra.mxu0 %v2219
    %2303 = vmatprep.subr.mxu0 %v2216
    %2304 = vmatpush1.msra.mxu0 %v2215
    %2305 = vmatprep.subr.mxu0 %v2212
    %2306 = vmatpush1.msra.mxu0 %v2211
    %2307 = vmatprep.subr.mxu0 0.0
    %2308 = vmatpush2.msra.mxu0 0.0
    %2309 = vmatprep.subr.mxu0 0.0
    %2310 = vmatpush2.msra.mxu0 0.0
    %2311 = vmatprep.subr.mxu0 0.0
    %2312 = vmatpush2.msra.mxu0 0.0
    %2313 = vmatprep.subr.mxu0 0.0
    %2314 = vmatpush2.msra.mxu0 0.0
    %2315 = vmatprep.subr.mxu0 0.0
    %2316 = vmatpush2.msra.mxu0 0.0
    %2317 = vmatprep.subr.mxu0 0.0
    %2318 = vmatpush2.msra.mxu0 0.0
    %2319 = vmatprep.subr.mxu0 0.0
    %2320 = vmatpush2.msra.mxu0 0.0
    %2321 = vmatprep.subr.mxu0 0.0
    %2322 = vmatpush2.msra.mxu0 0.0
    %2323 = vmatprep.subr.mxu0 0.0
    %2324 = vmatpush2.msra.mxu0 0.0
    %2325 = vmatprep.subr.mxu0 0.0
    %2326 = vmatpush2.msra.mxu0 0.0
    %2327 = vmatprep.subr.mxu0 0.0
    %2328 = vmatpush2.msra.mxu0 0.0
    %2329 = vmatprep.subr.mxu0 0.0
    %2330 = vmatpush2.msra.mxu0 0.0
    %2331 = vmatprep.subr.mxu0 0.0
    %2332 = vmatpush2.msra.mxu0 0.0
    %2333 = vmatprep.subr.mxu0 0.0
    %2334 = vmatpush2.msra.mxu0 0.0
    %2335 = vmatprep.subr.mxu0 0.0
    %2336 = vmatpush2.msra.mxu0 0.0
    %2337 = vmatprep.subr.mxu0 0.0
    %2338 = vmatpush2.msra.mxu0 0.0
    %2339 = vmatprep.mubr.f32.mxu0 0.0
    %2340 = vmatmul.mubr.f32.gmra.mxu0 %v2209
    %v2341 = vpop.f32.mrf.mxu0
    %v2342 = vadd.f32 0.0, %v2341
    %v2343 = vpop.f32.mrf.mxu0
    %v2344 = vadd.f32 0.0, %v2343
    %2345 = vmatprep.mubr.f32.mxu0 0.0
    %2346 = vmatmul.mubr.f32.gmra.mxu0 %v2210
    %v2347 = vpop.f32.mrf.mxu0
    %v2348 = vadd.f32 0.0, %v2347
    %v2349 = vpop.f32.mrf.mxu0
    %v2350 = vadd.f32 0.0, %v2349
    %2351 = vdwg.mxu0
    %2352 = vmatprep.subr.mxu0 %v2274
    %2353 = vmatpush1.msra.mxu0 %v2273
    %2354 = vmatprep.subr.mxu0 %v2270
    %2355 = vmatpush1.msra.mxu0 %v2269
    %2356 = vmatprep.subr.mxu0 %v2266
    %2357 = vmatpush1.msra.mxu0 %v2265
    %2358 = vmatprep.subr.mxu0 %v2262
    %2359 = vmatpush1.msra.mxu0 %v2261
    %2360 = vmatprep.subr.mxu0 %v2258
    %2361 = vmatpush1.msra.mxu0 %v2257
    %2362 = vmatprep.subr.mxu0 %v2254
    %2363 = vmatpush1.msra.mxu0 %v2253
    %2364 = vmatprep.subr.mxu0 %v2250
    %2365 = vmatpush1.msra.mxu0 %v2249
    %2366 = vmatprep.subr.mxu0 %v2246
    %2367 = vmatpush1.msra.mxu0 %v2245
    %2368 = vmatprep.subr.mxu0 %v2242
    %2369 = vmatpush1.msra.mxu0 %v2241
    %2370 = vmatprep.subr.mxu0 %v2238
    %2371 = vmatpush1.msra.mxu0 %v2237
    %2372 = vmatprep.subr.mxu0 %v2234
    %2373 = vmatpush1.msra.mxu0 %v2233
    %2374 = vmatprep.subr.mxu0 %v2230
    %2375 = vmatpush1.msra.mxu0 %v2229
    %2376 = vmatprep.subr.mxu0 %v2226
    %2377 = vmatpush1.msra.mxu0 %v2225
    %2378 = vmatprep.subr.mxu0 %v2222
    %2379 = vmatpush1.msra.mxu0 %v2221
    %2380 = vmatprep.subr.mxu0 %v2218
    %2381 = vmatpush1.msra.mxu0 %v2217
    %2382 = vmatprep.subr.mxu0 %v2214
    %2383 = vmatpush1.msra.mxu0 %v2213
    %2384 = vmatprep.subr.mxu0 0.0
    %2385 = vmatpush2.msra.mxu0 0.0
    %2386 = vmatprep.subr.mxu0 0.0
    %2387 = vmatpush2.msra.mxu0 0.0
    %2388 = vmatprep.subr.mxu0 0.0
    %2389 = vmatpush2.msra.mxu0 0.0
    %2390 = vmatprep.subr.mxu0 0.0
    %2391 = vmatpush2.msra.mxu0 0.0
    %2392 = vmatprep.subr.mxu0 0.0
    %2393 = vmatpush2.msra.mxu0 0.0
    %2394 = vmatprep.subr.mxu0 0.0
    %2395 = vmatpush2.msra.mxu0 0.0
    %2396 = vmatprep.subr.mxu0 0.0
    %2397 = vmatpush2.msra.mxu0 0.0
    %2398 = vmatprep.subr.mxu0 0.0
    %2399 = vmatpush2.msra.mxu0 0.0
    %2400 = vmatprep.subr.mxu0 0.0
    %2401 = vmatpush2.msra.mxu0 0.0
    %2402 = vmatprep.subr.mxu0 0.0
    %2403 = vmatpush2.msra.mxu0 0.0
    %2404 = vmatprep.subr.mxu0 0.0
    %2405 = vmatpush2.msra.mxu0 0.0
    %2406 = vmatprep.subr.mxu0 0.0
    %2407 = vmatpush2.msra.mxu0 0.0
    %2408 = vmatprep.subr.mxu0 0.0
    %2409 = vmatpush2.msra.mxu0 0.0
    %2410 = vmatprep.subr.mxu0 0.0
    %2411 = vmatpush2.msra.mxu0 0.0
    %2412 = vmatprep.subr.mxu0 0.0
    %2413 = vmatpush2.msra.mxu0 0.0
    %2414 = vmatprep.subr.mxu0 0.0
    %2415 = vmatpush2.msra.mxu0 0.0
    %2416 = vmatprep.mubr.f32.mxu0 0.0
    %2417 = vmatmul.mubr.f32.gmra.mxu0 %v2209
    %v2418 = vpop.f32.mrf.mxu0
    %v2419 = vadd.f32 0.0, %v2418
    %v2420 = vpop.f32.mrf.mxu0
    %v2421 = vadd.f32 0.0, %v2420
    %2422 = vmatprep.mubr.f32.mxu0 0.0
    %2423 = vmatmul.mubr.f32.gmra.mxu0 %v2210
    %v2424 = vpop.f32.mrf.mxu0
    %v2425 = vadd.f32 0.0, %v2424
    %v2426 = vpop.f32.mrf.mxu0
    %v2427 = vadd.f32 0.0, %v2426
    %2428 = vdwg.mxu0
    %2429 = vst [vmem:[#allocation2] sm:$0xff] %v2342
    %2430 = vst [vmem:[#allocation2 + $0x8] sm:$0xff] %v2344
    %2431 = vst [vmem:[#allocation2 + $0x10] sm:$0xff] %v2419
    %2432 = vst [vmem:[#allocation2 + $0x18] sm:$0xff] %v2421
    %2433 = vst [vmem:[#allocation2 + $0x20] sm:$0xff] %v2348
    %2434 = vst [vmem:[#allocation2 + $0x28] sm:$0xff] %v2350
    %2435 = vst [vmem:[#allocation2 + $0x30] sm:$0xff] %v2425
    %2436 = vst [vmem:[#allocation2 + $0x38] sm:$0xff] %v2427
    %v2437 = vld [vmem:[%s5] sm:$0xf]
    %v2438 = vld [vmem:[#allocation2] sm:$0x3]
    %v2439 = vld [vmem:[#allocation2 + $0x8] sm:$0x3]
    %v2440 = vld [vmem:[#allocation2 + $0x10] sm:$0x3]
    %v2441 = vld [vmem:[#allocation2 + $0x18] sm:$0x3]
    %v2442 = vld [vmem:[#allocation2 + $0x20] sm:$0xc0]
    %v2443 = vld [vmem:[#allocation2 + $0x28] sm:$0xc0]
    %v2444 = vld [vmem:[#allocation2 + $0x30] sm:$0xc0]
    %v2445 = vld [vmem:[#allocation2 + $0x38] sm:$0xc0]
    %v2450 = vrot.slane %v2442, 6
    %v2451 = vrot.slane %v2443, 6
    %v2452 = vrot.slane %v2444, 6
    %v2453 = vrot.slane %v2445, 6
    %v2458 = vsel %vm130, %v2438, %v2450
    %v2459 = vsel %vm131, %v2439, %v2451
    %v2460 = vsel %vm132, %v2440, %v2452
    %v2461 = vsel %vm133, %v2441, %v2453
    %v2463 = vlaneseq
    %v2464 = vshrl.u32 %v2463, 7
    %v2465 = vsub.s32 0, %v2464
    %v2466 = vrot.slane %v2437, %v2465
    %v2467 = vlaneseq
    %v2468 = vshrl.u32 %v2467, 7
    %v2469 = vsub.s32 1, %v2468
    %v2470 = vrot.slane %v2437, %v2469
    %v2471 = vlaneseq
    %v2472 = vshrl.u32 %v2471, 7
    %v2473 = vsub.s32 2, %v2472
    %v2474 = vrot.slane %v2437, %v2473
    %v2475 = vlaneseq
    %v2476 = vshrl.u32 %v2475, 7
    %v2477 = vsub.s32 3, %v2476
    %v2478 = vrot.slane %v2437, %v2477
    %v2483 = vadd.f32 %v2458, %v2466
    %v2484 = vadd.f32 %v2459, %v2470
    %v2485 = vadd.f32 %v2460, %v2474
    %v2486 = vadd.f32 %v2461, %v2478
    %2487 = vst [vmem:[#allocation3] sm:$0x3] %v2483
    %2488 = vst [vmem:[#allocation3 + $0x8] sm:$0x3] %v2484
    %2489 = vst [vmem:[#allocation3 + $0x10] sm:$0x3] %v2485
    %2490 = vst [vmem:[#allocation3 + $0x18] sm:$0x3] %v2486
    %v2491 = vld [vmem:[#allocation2] sm:$0xc]
    %v2492 = vld [vmem:[#allocation2 + $0x8] sm:$0xc]
    %v2493 = vld [vmem:[#allocation2 + $0x10] sm:$0xc]
    %v2494 = vld [vmem:[#allocation2 + $0x18] sm:$0xc]
    %v2495 = vld [vmem:[#allocation2 + $0x20] sm:$0x30]
    %v2496 = vld [vmem:[#allocation2 + $0x28] sm:$0x30]
    %v2497 = vld [vmem:[#allocation2 + $0x30] sm:$0x30]
    %v2498 = vld [vmem:[#allocation2 + $0x38] sm:$0x30]
    %v2503 = vrot.slane %v2495, 2
    %v2504 = vrot.slane %v2496, 2
    %v2505 = vrot.slane %v2497, 2
    %v2506 = vrot.slane %v2498, 2
    %v2511 = vsel %vm130, %v2491, %v2503
    %v2512 = vsel %vm131, %v2492, %v2504
    %v2513 = vsel %vm132, %v2493, %v2505
    %v2514 = vsel %vm133, %v2494, %v2506
    %v2515 = vadd.f32 %v2511, %v2466
    %v2516 = vadd.f32 %v2512, %v2470
    %v2517 = vadd.f32 %v2513, %v2474
    %v2518 = vadd.f32 %v2514, %v2478
    %2519 = vst [vmem:[#allocation3] sm:$0xc] %v2515
    %2520 = vst [vmem:[#allocation3 + $0x8] sm:$0xc] %v2516
    %2521 = vst [vmem:[#allocation3 + $0x10] sm:$0xc] %v2517
    %2522 = vst [vmem:[#allocation3 + $0x18] sm:$0xc] %v2518
    %v2523 = vld [vmem:[#allocation2] sm:$0x30]
    %v2524 = vld [vmem:[#allocation2 + $0x8] sm:$0x30]
    %v2525 = vld [vmem:[#allocation2 + $0x10] sm:$0x30]
    %v2526 = vld [vmem:[#allocation2 + $0x18] sm:$0x30]
    %v2527 = vld [vmem:[#allocation2 + $0x20] sm:$0xc]
    %v2528 = vld [vmem:[#allocation2 + $0x28] sm:$0xc]
    %v2529 = vld [vmem:[#allocation2 + $0x30] sm:$0xc]
    %v2530 = vld [vmem:[#allocation2 + $0x38] sm:$0xc]
    %v2535 = vrot.slane %v2527, 6
    %v2536 = vrot.slane %v2528, 6
    %v2537 = vrot.slane %v2529, 6
    %v2538 = vrot.slane %v2530, 6
    %v2543 = vsel %vm130, %v2523, %v2535
    %v2544 = vsel %vm131, %v2524, %v2536
    %v2545 = vsel %vm132, %v2525, %v2537
    %v2546 = vsel %vm133, %v2526, %v2538
    %v2547 = vadd.f32 %v2543, %v2466
    %v2548 = vadd.f32 %v2544, %v2470
    %v2549 = vadd.f32 %v2545, %v2474
    %v2550 = vadd.f32 %v2546, %v2478
    %2551 = vst [vmem:[#allocation3] sm:$0x30] %v2547
    %2552 = vst [vmem:[#allocation3 + $0x8] sm:$0x30] %v2548
    %2553 = vst [vmem:[#allocation3 + $0x10] sm:$0x30] %v2549
    %2554 = vst [vmem:[#allocation3 + $0x18] sm:$0x30] %v2550
    %v2555 = vld [vmem:[#allocation2] sm:$0xc0]
    %v2556 = vld [vmem:[#allocation2 + $0x8] sm:$0xc0]
    %v2557 = vld [vmem:[#allocation2 + $0x10] sm:$0xc0]
    %v2558 = vld [vmem:[#allocation2 + $0x18] sm:$0xc0]
    %v2559 = vld [vmem:[#allocation2 + $0x20] sm:$0x3]
    %v2560 = vld [vmem:[#allocation2 + $0x28] sm:$0x3]
    %v2561 = vld [vmem:[#allocation2 + $0x30] sm:$0x3]
    %v2562 = vld [vmem:[#allocation2 + $0x38] sm:$0x3]
    %v2567 = vrot.slane %v2559, 2
    %v2568 = vrot.slane %v2560, 2
    %v2569 = vrot.slane %v2561, 2
    %v2570 = vrot.slane %v2562, 2
    %v2575 = vsel %vm130, %v2555, %v2567
    %v2576 = vsel %vm131, %v2556, %v2568
    %v2577 = vsel %vm132, %v2557, %v2569
    %v2578 = vsel %vm133, %v2558, %v2570
    %v2579 = vadd.f32 %v2575, %v2466
    %v2580 = vadd.f32 %v2576, %v2470
    %v2581 = vadd.f32 %v2577, %v2474
    %v2582 = vadd.f32 %v2578, %v2478
    %2583 = vst [vmem:[#allocation3] sm:$0xc0] %v2579
    %2584 = vst [vmem:[#allocation3 + $0x8] sm:$0xc0] %v2580
    %2585 = vst [vmem:[#allocation3 + $0x10] sm:$0xc0] %v2581
    %2586 = vst [vmem:[#allocation3 + $0x18] sm:$0xc0] %v2582
    %v2587 = vld [vmem:[#allocation2 + $0x20] sm:$0x3]
    %v2588 = vld [vmem:[#allocation2 + $0x28] sm:$0x3]
    %v2589 = vld [vmem:[#allocation2 + $0x30] sm:$0x3]
    %v2590 = vld [vmem:[#allocation2 + $0x38] sm:$0x3]
    %v2591 = vld [vmem:[#allocation2] sm:$0xc0]
    %v2592 = vld [vmem:[#allocation2 + $0x8] sm:$0xc0]
    %v2593 = vld [vmem:[#allocation2 + $0x10] sm:$0xc0]
    %v2594 = vld [vmem:[#allocation2 + $0x18] sm:$0xc0]
    %v2599 = vrot.slane %v2591, 6
    %v2600 = vrot.slane %v2592, 6
    %v2601 = vrot.slane %v2593, 6
    %v2602 = vrot.slane %v2594, 6
    %v2607 = vsel %vm130, %v2587, %v2599
    %v2608 = vsel %vm131, %v2588, %v2600
    %v2609 = vsel %vm132, %v2589, %v2601
    %v2610 = vsel %vm133, %v2590, %v2602
    %v2611 = vadd.f32 %v2607, %v2466
    %v2612 = vadd.f32 %v2608, %v2470
    %v2613 = vadd.f32 %v2609, %v2474
    %v2614 = vadd.f32 %v2610, %v2478
    %2615 = vst [vmem:[#allocation3 + $0x20] sm:$0x3] %v2611
    %2616 = vst [vmem:[#allocation3 + $0x28] sm:$0x3] %v2612
    %2617 = vst [vmem:[#allocation3 + $0x30] sm:$0x3] %v2613
    %2618 = vst [vmem:[#allocation3 + $0x38] sm:$0x3] %v2614
    %v2619 = vld [vmem:[#allocation2 + $0x20] sm:$0xc]
    %v2620 = vld [vmem:[#allocation2 + $0x28] sm:$0xc]
    %v2621 = vld [vmem:[#allocation2 + $0x30] sm:$0xc]
    %v2622 = vld [vmem:[#allocation2 + $0x38] sm:$0xc]
    %v2623 = vld [vmem:[#allocation2] sm:$0x30]
    %v2624 = vld [vmem:[#allocation2 + $0x8] sm:$0x30]
    %v2625 = vld [vmem:[#allocation2 + $0x10] sm:$0x30]
    %v2626 = vld [vmem:[#allocation2 + $0x18] sm:$0x30]
    %v2631 = vrot.slane %v2623, 2
    %v2632 = vrot.slane %v2624, 2
    %v2633 = vrot.slane %v2625, 2
    %v2634 = vrot.slane %v2626, 2
    %v2639 = vsel %vm130, %v2619, %v2631
    %v2640 = vsel %vm131, %v2620, %v2632
    %v2641 = vsel %vm132, %v2621, %v2633
    %v2642 = vsel %vm133, %v2622, %v2634
    %v2643 = vadd.f32 %v2639, %v2466
    %v2644 = vadd.f32 %v2640, %v2470
    %v2645 = vadd.f32 %v2641, %v2474
    %v2646 = vadd.f32 %v2642, %v2478
    %2647 = vst [vmem:[#allocation3 + $0x20] sm:$0xc] %v2643
    %2648 = vst [vmem:[#allocation3 + $0x28] sm:$0xc] %v2644
    %2649 = vst [vmem:[#allocation3 + $0x30] sm:$0xc] %v2645
    %2650 = vst [vmem:[#allocation3 + $0x38] sm:$0xc] %v2646
    %v2651 = vld [vmem:[#allocation2 + $0x20] sm:$0x30]
    %v2652 = vld [vmem:[#allocation2 + $0x28] sm:$0x30]
    %v2653 = vld [vmem:[#allocation2 + $0x30] sm:$0x30]
    %v2654 = vld [vmem:[#allocation2 + $0x38] sm:$0x30]
    %v2655 = vld [vmem:[#allocation2] sm:$0xc]
    %v2656 = vld [vmem:[#allocation2 + $0x8] sm:$0xc]
    %v2657 = vld [vmem:[#allocation2 + $0x10] sm:$0xc]
    %v2658 = vld [vmem:[#allocation2 + $0x18] sm:$0xc]
    %v2663 = vrot.slane %v2655, 6
    %v2664 = vrot.slane %v2656, 6
    %v2665 = vrot.slane %v2657, 6
    %v2666 = vrot.slane %v2658, 6
    %v2671 = vsel %vm130, %v2651, %v2663
    %v2672 = vsel %vm131, %v2652, %v2664
    %v2673 = vsel %vm132, %v2653, %v2665
    %v2674 = vsel %vm133, %v2654, %v2666
    %v2675 = vadd.f32 %v2671, %v2466
    %v2676 = vadd.f32 %v2672, %v2470
    %v2677 = vadd.f32 %v2673, %v2474
    %v2678 = vadd.f32 %v2674, %v2478
    %2679 = vst [vmem:[#allocation3 + $0x20] sm:$0x30] %v2675
    %2680 = vst [vmem:[#allocation3 + $0x28] sm:$0x30] %v2676
    %2681 = vst [vmem:[#allocation3 + $0x30] sm:$0x30] %v2677
    %2682 = vst [vmem:[#allocation3 + $0x38] sm:$0x30] %v2678
    %v2683 = vld [vmem:[#allocation2 + $0x20] sm:$0xc0]
    %v2684 = vld [vmem:[#allocation2 + $0x28] sm:$0xc0]
    %v2685 = vld [vmem:[#allocation2 + $0x30] sm:$0xc0]
    %v2686 = vld [vmem:[#allocation2 + $0x38] sm:$0xc0]
    %v2687 = vld [vmem:[#allocation2] sm:$0x3]
    %v2688 = vld [vmem:[#allocation2 + $0x8] sm:$0x3]
    %v2689 = vld [vmem:[#allocation2 + $0x10] sm:$0x3]
    %v2690 = vld [vmem:[#allocation2 + $0x18] sm:$0x3]
    %v2695 = vrot.slane %v2687, 2
    %v2696 = vrot.slane %v2688, 2
    %v2697 = vrot.slane %v2689, 2
    %v2698 = vrot.slane %v2690, 2
    %v2703 = vsel %vm130, %v2683, %v2695
    %v2704 = vsel %vm131, %v2684, %v2696
    %v2705 = vsel %vm132, %v2685, %v2697
    %v2706 = vsel %vm133, %v2686, %v2698
    %v2707 = vadd.f32 %v2703, %v2466
    %v2708 = vadd.f32 %v2704, %v2470
    %v2709 = vadd.f32 %v2705, %v2474
    %v2710 = vadd.f32 %v2706, %v2478
    %2711 = vst [vmem:[#allocation3 + $0x20] sm:$0xc0] %v2707
    %2712 = vst [vmem:[#allocation3 + $0x28] sm:$0xc0] %v2708
    %2713 = vst [vmem:[#allocation3 + $0x30] sm:$0xc0] %v2709
    %2714 = vst [vmem:[#allocation3 + $0x38] sm:$0xc0] %v2710
    %v2715 = vld [vmem:[#allocation11] sm:$0xff]
    %v2716 = vld [vmem:[#allocation11 + $0x8] sm:$0xff]
    %v2717 = vld [vmem:[#allocation11 + $0x10] sm:$0xff]
    %v2718 = vld [vmem:[#allocation11 + $0x18] sm:$0xff]
    %v2719 = vld [vmem:[#allocation11 + $0x20] sm:$0xff]
    %v2720 = vld [vmem:[#allocation11 + $0x28] sm:$0xff]
    %v2721 = vld [vmem:[#allocation11 + $0x30] sm:$0xff]
    %v2722 = vld [vmem:[#allocation11 + $0x38] sm:$0xff]
    %v2723 = vld [vmem:[#allocation11 + $0x40] sm:$0xff]
    %v2724 = vld [vmem:[#allocation11 + $0x48] sm:$0xff]
    %v2725 = vld [vmem:[#allocation11 + $0x50] sm:$0xff]
    %v2726 = vld [vmem:[#allocation11 + $0x58] sm:$0xff]
    %v2727 = vld [vmem:[#allocation11 + $0x60] sm:$0xff]
    %v2728 = vld [vmem:[#allocation11 + $0x68] sm:$0xff]
    %v2729 = vld [vmem:[#allocation11 + $0x70] sm:$0xff]
    %v2730 = vld [vmem:[#allocation11 + $0x78] sm:$0xff]
    %v2731 = vld [vmem:[#allocation11 + $0x80] sm:$0xff]
    %v2732 = vld [vmem:[#allocation11 + $0x88] sm:$0xff]
    %v2733 = vld [vmem:[#allocation11 + $0x90] sm:$0xff]
    %v2734 = vld [vmem:[#allocation11 + $0x98] sm:$0xff]
    %v2735 = vld [vmem:[#allocation11 + $0xa0] sm:$0xff]
    %v2736 = vld [vmem:[#allocation11 + $0xa8] sm:$0xff]
    %v2737 = vld [vmem:[#allocation11 + $0xb0] sm:$0xff]
    %v2738 = vld [vmem:[#allocation11 + $0xb8] sm:$0xff]
    %v2739 = vld [vmem:[#allocation11 + $0xc0] sm:$0xff]
    %v2740 = vld [vmem:[#allocation11 + $0xc8] sm:$0xff]
    %v2741 = vld [vmem:[#allocation11 + $0xd0] sm:$0xff]
    %v2742 = vld [vmem:[#allocation11 + $0xd8] sm:$0xff]
    %v2743 = vld [vmem:[#allocation11 + $0xe0] sm:$0xff]
    %v2744 = vld [vmem:[#allocation11 + $0xe8] sm:$0xff]
    %v2745 = vld [vmem:[#allocation11 + $0xf0] sm:$0xff]
    %v2746 = vld [vmem:[#allocation11 + $0xf8] sm:$0xff]
    %v2747 = vld [vmem:[#allocation11 + $0x100] sm:$0xff]
    %v2748 = vld [vmem:[#allocation11 + $0x108] sm:$0xff]
    %v2749 = vld [vmem:[#allocation11 + $0x110] sm:$0xff]
    %v2750 = vld [vmem:[#allocation11 + $0x118] sm:$0xff]
    %v2751 = vld [vmem:[#allocation11 + $0x120] sm:$0xff]
    %v2752 = vld [vmem:[#allocation11 + $0x128] sm:$0xff]
    %v2753 = vld [vmem:[#allocation11 + $0x130] sm:$0xff]
    %v2754 = vld [vmem:[#allocation11 + $0x138] sm:$0xff]
    %v2755 = vld [vmem:[#allocation11 + $0x140] sm:$0xff]
    %v2756 = vld [vmem:[#allocation11 + $0x148] sm:$0xff]
    %v2757 = vld [vmem:[#allocation11 + $0x150] sm:$0xff]
    %v2758 = vld [vmem:[#allocation11 + $0x158] sm:$0xff]
    %v2759 = vld [vmem:[#allocation11 + $0x160] sm:$0xff]
    %v2760 = vld [vmem:[#allocation11 + $0x168] sm:$0xff]
    %v2761 = vld [vmem:[#allocation11 + $0x170] sm:$0xff]
    %v2762 = vld [vmem:[#allocation11 + $0x178] sm:$0xff]
    %v2763 = vld [vmem:[#allocation11 + $0x180] sm:$0xff]
    %v2764 = vld [vmem:[#allocation11 + $0x188] sm:$0xff]
    %v2765 = vld [vmem:[#allocation11 + $0x190] sm:$0xff]
    %v2766 = vld [vmem:[#allocation11 + $0x198] sm:$0xff]
    %v2767 = vld [vmem:[#allocation11 + $0x1a0] sm:$0xff]
    %v2768 = vld [vmem:[#allocation11 + $0x1a8] sm:$0xff]
    %v2769 = vld [vmem:[#allocation11 + $0x1b0] sm:$0xff]
    %v2770 = vld [vmem:[#allocation11 + $0x1b8] sm:$0xff]
    %v2771 = vld [vmem:[#allocation11 + $0x1c0] sm:$0xff]
    %v2772 = vld [vmem:[#allocation11 + $0x1c8] sm:$0xff]
    %v2773 = vld [vmem:[#allocation11 + $0x1d0] sm:$0xff]
    %v2774 = vld [vmem:[#allocation11 + $0x1d8] sm:$0xff]
    %v2775 = vld [vmem:[#allocation11 + $0x1e0] sm:$0xff]
    %v2776 = vld [vmem:[#allocation11 + $0x1e8] sm:$0xff]
    %v2777 = vld [vmem:[#allocation11 + $0x1f0] sm:$0xff]
    %v2778 = vld [vmem:[#allocation11 + $0x1f8] sm:$0xff]
    %v2779 = vld [vmem:[#allocation3] sm:$0x3]
    %v2780 = vld [vmem:[#allocation3 + $0x8] sm:$0x3]
    %v2781 = vld [vmem:[#allocation3 + $0x10] sm:$0x3]
    %v2782 = vld [vmem:[#allocation3 + $0x18] sm:$0x3]
    %2783 = vmatprep.subr.mxu0 %v2776
    %2784 = vmatpush1.msra.mxu0 %v2775
    %2785 = vmatprep.subr.mxu0 %v2772
    %2786 = vmatpush1.msra.mxu0 %v2771
    %2787 = vmatprep.subr.mxu0 %v2768
    %2788 = vmatpush1.msra.mxu0 %v2767
    %2789 = vmatprep.subr.mxu0 %v2764
    %2790 = vmatpush1.msra.mxu0 %v2763
    %2791 = vmatprep.subr.mxu0 %v2760
    %2792 = vmatpush1.msra.mxu0 %v2759
    %2793 = vmatprep.subr.mxu0 %v2756
    %2794 = vmatpush1.msra.mxu0 %v2755
    %2795 = vmatprep.subr.mxu0 %v2752
    %2796 = vmatpush1.msra.mxu0 %v2751
    %2797 = vmatprep.subr.mxu0 %v2748
    %2798 = vmatpush1.msra.mxu0 %v2747
    %2799 = vmatprep.subr.mxu0 %v2744
    %2800 = vmatpush1.msra.mxu0 %v2743
    %2801 = vmatprep.subr.mxu0 %v2740
    %2802 = vmatpush1.msra.mxu0 %v2739
    %2803 = vmatprep.subr.mxu0 %v2736
    %2804 = vmatpush1.msra.mxu0 %v2735
    %2805 = vmatprep.subr.mxu0 %v2732
    %2806 = vmatpush1.msra.mxu0 %v2731
    %2807 = vmatprep.subr.mxu0 %v2728
    %2808 = vmatpush1.msra.mxu0 %v2727
    %2809 = vmatprep.subr.mxu0 %v2724
    %2810 = vmatpush1.msra.mxu0 %v2723
    %2811 = vmatprep.subr.mxu0 %v2720
    %2812 = vmatpush1.msra.mxu0 %v2719
    %2813 = vmatprep.subr.mxu0 %v2716
    %2814 = vmatpush1.msra.mxu0 %v2715
    %2815 = vmatprep.subr.mxu0 0.0
    %2816 = vmatpush2.msra.mxu0 0.0
    %2817 = vmatprep.subr.mxu0 0.0
    %2818 = vmatpush2.msra.mxu0 0.0
    %2819 = vmatprep.subr.mxu0 0.0
    %2820 = vmatpush2.msra.mxu0 0.0
    %2821 = vmatprep.subr.mxu0 0.0
    %2822 = vmatpush2.msra.mxu0 0.0
    %2823 = vmatprep.subr.mxu0 0.0
    %2824 = vmatpush2.msra.mxu0 0.0
    %2825 = vmatprep.subr.mxu0 0.0
    %2826 = vmatpush2.msra.mxu0 0.0
    %2827 = vmatprep.subr.mxu0 0.0
    %2828 = vmatpush2.msra.mxu0 0.0
    %2829 = vmatprep.subr.mxu0 0.0
    %2830 = vmatpush2.msra.mxu0 0.0
    %2831 = vmatprep.subr.mxu0 0.0
    %2832 = vmatpush2.msra.mxu0 0.0
    %2833 = vmatprep.subr.mxu0 0.0
    %2834 = vmatpush2.msra.mxu0 0.0
    %2835 = vmatprep.subr.mxu0 0.0
    %2836 = vmatpush2.msra.mxu0 0.0
    %2837 = vmatprep.subr.mxu0 0.0
    %2838 = vmatpush2.msra.mxu0 0.0
    %2839 = vmatprep.subr.mxu0 0.0
    %2840 = vmatpush2.msra.mxu0 0.0
    %2841 = vmatprep.subr.mxu0 0.0
    %2842 = vmatpush2.msra.mxu0 0.0
    %2843 = vmatprep.subr.mxu0 0.0
    %2844 = vmatpush2.msra.mxu0 0.0
    %2845 = vmatprep.subr.mxu0 0.0
    %2846 = vmatpush2.msra.mxu0 0.0
    %2847 = vmatprep.mubr.f32.mxu0 0.0
    %2848 = vmatmul.mubr.f32.gmra.mxu0 0.0
    %v2849 = vpop.f32.mrf.mxu0
    %v2850 = vadd.f32 0.0, %v2849
    %v2851 = vpop.f32.mrf.mxu0
    %v2852 = vadd.f32 0.0, %v2851
    %2853 = vdwg.mxu0
    %2854 = vmatprep.subr.mxu0 %v2778
    %2855 = vmatpush1.msra.mxu0 %v2777
    %2856 = vmatprep.subr.mxu0 %v2774
    %2857 = vmatpush1.msra.mxu0 %v2773
    %2858 = vmatprep.subr.mxu0 %v2770
    %2859 = vmatpush1.msra.mxu0 %v2769
    %2860 = vmatprep.subr.mxu0 %v2766
    %2861 = vmatpush1.msra.mxu0 %v2765
    %2862 = vmatprep.subr.mxu0 %v2762
    %2863 = vmatpush1.msra.mxu0 %v2761
    %2864 = vmatprep.subr.mxu0 %v2758
    %2865 = vmatpush1.msra.mxu0 %v2757
    %2866 = vmatprep.subr.mxu0 %v2754
    %2867 = vmatpush1.msra.mxu0 %v2753
    %2868 = vmatprep.subr.mxu0 %v2750
    %2869 = vmatpush1.msra.mxu0 %v2749
    %2870 = vmatprep.subr.mxu0 %v2746
    %2871 = vmatpush1.msra.mxu0 %v2745
    %2872 = vmatprep.subr.mxu0 %v2742
    %2873 = vmatpush1.msra.mxu0 %v2741
    %2874 = vmatprep.subr.mxu0 %v2738
    %2875 = vmatpush1.msra.mxu0 %v2737
    %2876 = vmatprep.subr.mxu0 %v2734
    %2877 = vmatpush1.msra.mxu0 %v2733
    %2878 = vmatprep.subr.mxu0 %v2730
    %2879 = vmatpush1.msra.mxu0 %v2729
    %2880 = vmatprep.subr.mxu0 %v2726
    %2881 = vmatpush1.msra.mxu0 %v2725
    %2882 = vmatprep.subr.mxu0 %v2722
    %2883 = vmatpush1.msra.mxu0 %v2721
    %2884 = vmatprep.subr.mxu0 %v2718
    %2885 = vmatpush1.msra.mxu0 %v2717
    %2886 = vmatprep.subr.mxu0 0.0
    %2887 = vmatpush2.msra.mxu0 0.0
    %2888 = vmatprep.subr.mxu0 0.0
    %2889 = vmatpush2.msra.mxu0 0.0
    %2890 = vmatprep.subr.mxu0 0.0
    %2891 = vmatpush2.msra.mxu0 0.0
    %2892 = vmatprep.subr.mxu0 0.0
    %2893 = vmatpush2.msra.mxu0 0.0
    %2894 = vmatprep.subr.mxu0 0.0
    %2895 = vmatpush2.msra.mxu0 0.0
    %2896 = vmatprep.subr.mxu0 0.0
    %2897 = vmatpush2.msra.mxu0 0.0
    %2898 = vmatprep.subr.mxu0 0.0
    %2899 = vmatpush2.msra.mxu0 0.0
    %2900 = vmatprep.subr.mxu0 0.0
    %2901 = vmatpush2.msra.mxu0 0.0
    %2902 = vmatprep.subr.mxu0 0.0
    %2903 = vmatpush2.msra.mxu0 0.0
    %2904 = vmatprep.subr.mxu0 0.0
    %2905 = vmatpush2.msra.mxu0 0.0
    %2906 = vmatprep.subr.mxu0 0.0
    %2907 = vmatpush2.msra.mxu0 0.0
    %2908 = vmatprep.subr.mxu0 0.0
    %2909 = vmatpush2.msra.mxu0 0.0
    %2910 = vmatprep.subr.mxu0 0.0
    %2911 = vmatpush2.msra.mxu0 0.0
    %2912 = vmatprep.subr.mxu0 0.0
    %2913 = vmatpush2.msra.mxu0 0.0
    %2914 = vmatprep.subr.mxu0 0.0
    %2915 = vmatpush2.msra.mxu0 0.0
    %2916 = vmatprep.subr.mxu0 0.0
    %2917 = vmatpush2.msra.mxu0 0.0
    %2918 = vmatprep.mubr.f32.mxu0 0.0
    %2919 = vmatmul.mubr.f32.gmra.mxu0 0.0
    %v2920 = vpop.f32.mrf.mxu0
    %v2921 = vadd.f32 0.0, %v2920
    %v2922 = vpop.f32.mrf.mxu0
    %v2923 = vadd.f32 0.0, %v2922
    %2924 = vdwg.mxu0
    %v2925 = vadd.f32 %v2779, %v2850
    %v2926 = vadd.f32 %v2780, %v2852
    %v2927 = vadd.f32 %v2781, %v2921
    %v2928 = vadd.f32 %v2782, %v2923
    %v2929 = vxor.u32 %v2925, 2147483648
    %v2930 = vmul.f32 %v2929, 1.442695
    %v2931 = vpow.pop %v2930
    %v2932 = vadd.f32 %v2931, 1.0
    %v2933 = vrcp.pop %v2932
    %v2934 = vmul.f32 1.0, %v2933
    %v2935 = vxor.u32 %v2926, 2147483648
    %v2936 = vmul.f32 %v2935, 1.442695
    %v2937 = vpow.pop %v2936
    %v2938 = vadd.f32 %v2937, 1.0
    %v2939 = vrcp.pop %v2938
    %v2940 = vmul.f32 1.0, %v2939
    %v2941 = vtanh.pop %v2927
    %v2942 = vxor.u32 %v2928, 2147483648
    %v2943 = vmul.f32 %v2942, 1.442695
    %v2944 = vpow.pop %v2943
    %v2945 = vadd.f32 %v2944, 1.0
    %v2946 = vrcp.pop %v2945
    %v2947 = vmul.f32 1.0, %v2946
    %v2948 = vmul.f32 %v2940, 0.0
    %v2949 = vmul.f32 %v2934, %v2941
    %v2950 = vadd.f32 %v2948, %v2949
    %v2951 = vtanh.pop %v2950
    %v2952 = vmul.f32 %v2947, %v2951
    %2953 = vst [vmem:[#allocation4] sm:$0x3] %v2952
    %v2954 = vld [vmem:[#allocation3] sm:$0xc]
    %v2955 = vld [vmem:[#allocation3 + $0x8] sm:$0xc]
    %v2956 = vld [vmem:[#allocation3 + $0x10] sm:$0xc]
    %v2957 = vld [vmem:[#allocation3 + $0x18] sm:$0xc]
    %2958 = vmatprep.subr.mxu0 %v2776
    %2959 = vmatpush1.msra.mxu0 %v2775
    %2960 = vmatprep.subr.mxu0 %v2772
    %2961 = vmatpush1.msra.mxu0 %v2771
    %2962 = vmatprep.subr.mxu0 %v2768
    %2963 = vmatpush1.msra.mxu0 %v2767
    %2964 = vmatprep.subr.mxu0 %v2764
    %2965 = vmatpush1.msra.mxu0 %v2763
    %2966 = vmatprep.subr.mxu0 %v2760
    %2967 = vmatpush1.msra.mxu0 %v2759
    %2968 = vmatprep.subr.mxu0 %v2756
    %2969 = vmatpush1.msra.mxu0 %v2755
    %2970 = vmatprep.subr.mxu0 %v2752
    %2971 = vmatpush1.msra.mxu0 %v2751
    %2972 = vmatprep.subr.mxu0 %v2748
    %2973 = vmatpush1.msra.mxu0 %v2747
    %2974 = vmatprep.subr.mxu0 %v2744
    %2975 = vmatpush1.msra.mxu0 %v2743
    %2976 = vmatprep.subr.mxu0 %v2740
    %2977 = vmatpush1.msra.mxu0 %v2739
    %2978 = vmatprep.subr.mxu0 %v2736
    %2979 = vmatpush1.msra.mxu0 %v2735
    %2980 = vmatprep.subr.mxu0 %v2732
    %2981 = vmatpush1.msra.mxu0 %v2731
    %2982 = vmatprep.subr.mxu0 %v2728
    %2983 = vmatpush1.msra.mxu0 %v2727
    %2984 = vmatprep.subr.mxu0 %v2724
    %2985 = vmatpush1.msra.mxu0 %v2723
    %2986 = vmatprep.subr.mxu0 %v2720
    %2987 = vmatpush1.msra.mxu0 %v2719
    %2988 = vmatprep.subr.mxu0 %v2716
    %2989 = vmatpush1.msra.mxu0 %v2715
    %2990 = vmatprep.subr.mxu0 0.0
    %2991 = vmatpush2.msra.mxu0 0.0
    %2992 = vmatprep.subr.mxu0 0.0
    %2993 = vmatpush2.msra.mxu0 0.0
    %2994 = vmatprep.subr.mxu0 0.0
    %2995 = vmatpush2.msra.mxu0 0.0
    %2996 = vmatprep.subr.mxu0 0.0
    %2997 = vmatpush2.msra.mxu0 0.0
    %2998 = vmatprep.subr.mxu0 0.0
    %2999 = vmatpush2.msra.mxu0 0.0
    %3000 = vmatprep.subr.mxu0 0.0
    %3001 = vmatpush2.msra.mxu0 0.0
    %3002 = vmatprep.subr.mxu0 0.0
    %3003 = vmatpush2.msra.mxu0 0.0
    %3004 = vmatprep.subr.mxu0 0.0
    %3005 = vmatpush2.msra.mxu0 0.0
    %3006 = vmatprep.subr.mxu0 0.0
    %3007 = vmatpush2.msra.mxu0 0.0
    %3008 = vmatprep.subr.mxu0 0.0
    %3009 = vmatpush2.msra.mxu0 0.0
    %3010 = vmatprep.subr.mxu0 0.0
    %3011 = vmatpush2.msra.mxu0 0.0
    %3012 = vmatprep.subr.mxu0 0.0
    %3013 = vmatpush2.msra.mxu0 0.0
    %3014 = vmatprep.subr.mxu0 0.0
    %3015 = vmatpush2.msra.mxu0 0.0
    %3016 = vmatprep.subr.mxu0 0.0
    %3017 = vmatpush2.msra.mxu0 0.0
    %3018 = vmatprep.subr.mxu0 0.0
    %3019 = vmatpush2.msra.mxu0 0.0
    %3020 = vmatprep.subr.mxu0 0.0
    %3021 = vmatpush2.msra.mxu0 0.0
    %3022 = vmatprep.mubr.f32.mxu0 0.0
    %3023 = vmatmul.mubr.f32.gmra.mxu0 %v2952
    %v3024 = vpop.f32.mrf.mxu0
    %v3025 = vadd.f32 0.0, %v3024
    %v3026 = vpop.f32.mrf.mxu0
    %v3027 = vadd.f32 0.0, %v3026
    %3028 = vdwg.mxu0
    %3029 = vmatprep.subr.mxu0 %v2778
    %3030 = vmatpush1.msra.mxu0 %v2777
    %3031 = vmatprep.subr.mxu0 %v2774
    %3032 = vmatpush1.msra.mxu0 %v2773
    %3033 = vmatprep.subr.mxu0 %v2770
    %3034 = vmatpush1.msra.mxu0 %v2769
    %3035 = vmatprep.subr.mxu0 %v2766
    %3036 = vmatpush1.msra.mxu0 %v2765
    %3037 = vmatprep.subr.mxu0 %v2762
    %3038 = vmatpush1.msra.mxu0 %v2761
    %3039 = vmatprep.subr.mxu0 %v2758
    %3040 = vmatpush1.msra.mxu0 %v2757
    %3041 = vmatprep.subr.mxu0 %v2754
    %3042 = vmatpush1.msra.mxu0 %v2753
    %3043 = vmatprep.subr.mxu0 %v2750
    %3044 = vmatpush1.msra.mxu0 %v2749
    %3045 = vmatprep.subr.mxu0 %v2746
    %3046 = vmatpush1.msra.mxu0 %v2745
    %3047 = vmatprep.subr.mxu0 %v2742
    %3048 = vmatpush1.msra.mxu0 %v2741
    %3049 = vmatprep.subr.mxu0 %v2738
    %3050 = vmatpush1.msra.mxu0 %v2737
    %3051 = vmatprep.subr.mxu0 %v2734
    %3052 = vmatpush1.msra.mxu0 %v2733
    %3053 = vmatprep.subr.mxu0 %v2730
    %3054 = vmatpush1.msra.mxu0 %v2729
    %3055 = vmatprep.subr.mxu0 %v2726
    %3056 = vmatpush1.msra.mxu0 %v2725
    %3057 = vmatprep.subr.mxu0 %v2722
    %3058 = vmatpush1.msra.mxu0 %v2721
    %3059 = vmatprep.subr.mxu0 %v2718
    %3060 = vmatpush1.msra.mxu0 %v2717
    %3061 = vmatprep.subr.mxu0 0.0
    %3062 = vmatpush2.msra.mxu0 0.0
    %3063 = vmatprep.subr.mxu0 0.0
    %3064 = vmatpush2.msra.mxu0 0.0
    %3065 = vmatprep.subr.mxu0 0.0
    %3066 = vmatpush2.msra.mxu0 0.0
    %3067 = vmatprep.subr.mxu0 0.0
    %3068 = vmatpush2.msra.mxu0 0.0
    %3069 = vmatprep.subr.mxu0 0.0
    %3070 = vmatpush2.msra.mxu0 0.0
    %3071 = vmatprep.subr.mxu0 0.0
    %3072 = vmatpush2.msra.mxu0 0.0
    %3073 = vmatprep.subr.mxu0 0.0
    %3074 = vmatpush2.msra.mxu0 0.0
    %3075 = vmatprep.subr.mxu0 0.0
    %3076 = vmatpush2.msra.mxu0 0.0
    %3077 = vmatprep.subr.mxu0 0.0
    %3078 = vmatpush2.msra.mxu0 0.0
    %3079 = vmatprep.subr.mxu0 0.0
    %3080 = vmatpush2.msra.mxu0 0.0
    %3081 = vmatprep.subr.mxu0 0.0
    %3082 = vmatpush2.msra.mxu0 0.0
    %3083 = vmatprep.subr.mxu0 0.0
    %3084 = vmatpush2.msra.mxu0 0.0
    %3085 = vmatprep.subr.mxu0 0.0
    %3086 = vmatpush2.msra.mxu0 0.0
    %3087 = vmatprep.subr.mxu0 0.0
    %3088 = vmatpush2.msra.mxu0 0.0
    %3089 = vmatprep.subr.mxu0 0.0
    %3090 = vmatpush2.msra.mxu0 0.0
    %3091 = vmatprep.subr.mxu0 0.0
    %3092 = vmatpush2.msra.mxu0 0.0
    %3093 = vmatprep.mubr.f32.mxu0 0.0
    %3094 = vmatmul.mubr.f32.gmra.mxu0 %v2952
    %v3095 = vpop.f32.mrf.mxu0
    %v3096 = vadd.f32 0.0, %v3095
    %v3097 = vpop.f32.mrf.mxu0
    %v3098 = vadd.f32 0.0, %v3097
    %3099 = vdwg.mxu0
    %v3104 = vrot.slane %v3025, 6
    %v3105 = vrot.slane %v3027, 6
    %v3106 = vrot.slane %v3096, 6
    %v3107 = vrot.slane %v3098, 6
    %v3112 = vadd.f32 %v2954, %v3104
    %v3113 = vadd.f32 %v2955, %v3105
    %v3114 = vadd.f32 %v2956, %v3106
    %v3115 = vadd.f32 %v2957, %v3107
    %v3116 = vxor.u32 %v3112, 2147483648
    %v3117 = vmul.f32 %v3116, 1.442695
    %v3118 = vpow.pop %v3117
    %v3119 = vadd.f32 %v3118, 1.0
    %v3120 = vrcp.pop %v3119
    %v3121 = vmul.f32 1.0, %v3120
    %v3122 = vxor.u32 %v3113, 2147483648
    %v3123 = vmul.f32 %v3122, 1.442695
    %v3124 = vpow.pop %v3123
    %v3125 = vadd.f32 %v3124, 1.0
    %v3126 = vrcp.pop %v3125
    %v3127 = vmul.f32 1.0, %v3126
    %v3128 = vtanh.pop %v3114
    %v3129 = vxor.u32 %v3115, 2147483648
    %v3130 = vmul.f32 %v3129, 1.442695
    %v3131 = vpow.pop %v3130
    %v3132 = vadd.f32 %v3131, 1.0
    %v3133 = vrcp.pop %v3132
    %v3134 = vmul.f32 1.0, %v3133
    %v3136 = vrot.slane %v2950, 6
    %v3138 = vmul.f32 %v3127, %v3136
    %v3139 = vmul.f32 %v3121, %v3128
    %v3140 = vadd.f32 %v3138, %v3139
    %v3141 = vtanh.pop %v3140
    %v3142 = vmul.f32 %v3134, %v3141
    %3143 = vst [vmem:[#allocation4] sm:$0xc] %v3142
    %v3144 = vld [vmem:[#allocation3] sm:$0x30]
    %v3145 = vld [vmem:[#allocation3 + $0x8] sm:$0x30]
    %v3146 = vld [vmem:[#allocation3 + $0x10] sm:$0x30]
    %v3147 = vld [vmem:[#allocation3 + $0x18] sm:$0x30]
    %v3149 = vrot.slane %v3142, 2
    %3151 = vmatprep.subr.mxu0 %v2776
    %3152 = vmatpush1.msra.mxu0 %v2775
    %3153 = vmatprep.subr.mxu0 %v2772
    %3154 = vmatpush1.msra.mxu0 %v2771
    %3155 = vmatprep.subr.mxu0 %v2768
    %3156 = vmatpush1.msra.mxu0 %v2767
    %3157 = vmatprep.subr.mxu0 %v2764
    %3158 = vmatpush1.msra.mxu0 %v2763
    %3159 = vmatprep.subr.mxu0 %v2760
    %3160 = vmatpush1.msra.mxu0 %v2759
    %3161 = vmatprep.subr.mxu0 %v2756
    %3162 = vmatpush1.msra.mxu0 %v2755
    %3163 = vmatprep.subr.mxu0 %v2752
    %3164 = vmatpush1.msra.mxu0 %v2751
    %3165 = vmatprep.subr.mxu0 %v2748
    %3166 = vmatpush1.msra.mxu0 %v2747
    %3167 = vmatprep.subr.mxu0 %v2744
    %3168 = vmatpush1.msra.mxu0 %v2743
    %3169 = vmatprep.subr.mxu0 %v2740
    %3170 = vmatpush1.msra.mxu0 %v2739
    %3171 = vmatprep.subr.mxu0 %v2736
    %3172 = vmatpush1.msra.mxu0 %v2735
    %3173 = vmatprep.subr.mxu0 %v2732
    %3174 = vmatpush1.msra.mxu0 %v2731
    %3175 = vmatprep.subr.mxu0 %v2728
    %3176 = vmatpush1.msra.mxu0 %v2727
    %3177 = vmatprep.subr.mxu0 %v2724
    %3178 = vmatpush1.msra.mxu0 %v2723
    %3179 = vmatprep.subr.mxu0 %v2720
    %3180 = vmatpush1.msra.mxu0 %v2719
    %3181 = vmatprep.subr.mxu0 %v2716
    %3182 = vmatpush1.msra.mxu0 %v2715
    %3183 = vmatprep.subr.mxu0 0.0
    %3184 = vmatpush2.msra.mxu0 0.0
    %3185 = vmatprep.subr.mxu0 0.0
    %3186 = vmatpush2.msra.mxu0 0.0
    %3187 = vmatprep.subr.mxu0 0.0
    %3188 = vmatpush2.msra.mxu0 0.0
    %3189 = vmatprep.subr.mxu0 0.0
    %3190 = vmatpush2.msra.mxu0 0.0
    %3191 = vmatprep.subr.mxu0 0.0
    %3192 = vmatpush2.msra.mxu0 0.0
    %3193 = vmatprep.subr.mxu0 0.0
    %3194 = vmatpush2.msra.mxu0 0.0
    %3195 = vmatprep.subr.mxu0 0.0
    %3196 = vmatpush2.msra.mxu0 0.0
    %3197 = vmatprep.subr.mxu0 0.0
    %3198 = vmatpush2.msra.mxu0 0.0
    %3199 = vmatprep.subr.mxu0 0.0
    %3200 = vmatpush2.msra.mxu0 0.0
    %3201 = vmatprep.subr.mxu0 0.0
    %3202 = vmatpush2.msra.mxu0 0.0
    %3203 = vmatprep.subr.mxu0 0.0
    %3204 = vmatpush2.msra.mxu0 0.0
    %3205 = vmatprep.subr.mxu0 0.0
    %3206 = vmatpush2.msra.mxu0 0.0
    %3207 = vmatprep.subr.mxu0 0.0
    %3208 = vmatpush2.msra.mxu0 0.0
    %3209 = vmatprep.subr.mxu0 0.0
    %3210 = vmatpush2.msra.mxu0 0.0
    %3211 = vmatprep.subr.mxu0 0.0
    %3212 = vmatpush2.msra.mxu0 0.0
    %3213 = vmatprep.subr.mxu0 0.0
    %3214 = vmatpush2.msra.mxu0 0.0
    %3215 = vmatprep.mubr.f32.mxu0 0.0
    %3216 = vmatmul.mubr.f32.gmra.mxu0 %v3149
    %v3217 = vpop.f32.mrf.mxu0
    %v3218 = vadd.f32 0.0, %v3217
    %v3219 = vpop.f32.mrf.mxu0
    %v3220 = vadd.f32 0.0, %v3219
    %3221 = vdwg.mxu0
    %3222 = vmatprep.subr.mxu0 %v2778
    %3223 = vmatpush1.msra.mxu0 %v2777
    %3224 = vmatprep.subr.mxu0 %v2774
    %3225 = vmatpush1.msra.mxu0 %v2773
    %3226 = vmatprep.subr.mxu0 %v2770
    %3227 = vmatpush1.msra.mxu0 %v2769
    %3228 = vmatprep.subr.mxu0 %v2766
    %3229 = vmatpush1.msra.mxu0 %v2765
    %3230 = vmatprep.subr.mxu0 %v2762
    %3231 = vmatpush1.msra.mxu0 %v2761
    %3232 = vmatprep.subr.mxu0 %v2758
    %3233 = vmatpush1.msra.mxu0 %v2757
    %3234 = vmatprep.subr.mxu0 %v2754
    %3235 = vmatpush1.msra.mxu0 %v2753
    %3236 = vmatprep.subr.mxu0 %v2750
    %3237 = vmatpush1.msra.mxu0 %v2749
    %3238 = vmatprep.subr.mxu0 %v2746
    %3239 = vmatpush1.msra.mxu0 %v2745
    %3240 = vmatprep.subr.mxu0 %v2742
    %3241 = vmatpush1.msra.mxu0 %v2741
    %3242 = vmatprep.subr.mxu0 %v2738
    %3243 = vmatpush1.msra.mxu0 %v2737
    %3244 = vmatprep.subr.mxu0 %v2734
    %3245 = vmatpush1.msra.mxu0 %v2733
    %3246 = vmatprep.subr.mxu0 %v2730
    %3247 = vmatpush1.msra.mxu0 %v2729
    %3248 = vmatprep.subr.mxu0 %v2726
    %3249 = vmatpush1.msra.mxu0 %v2725
    %3250 = vmatprep.subr.mxu0 %v2722
    %3251 = vmatpush1.msra.mxu0 %v2721
    %3252 = vmatprep.subr.mxu0 %v2718
    %3253 = vmatpush1.msra.mxu0 %v2717
    %3254 = vmatprep.subr.mxu0 0.0
    %3255 = vmatpush2.msra.mxu0 0.0
    %3256 = vmatprep.subr.mxu0 0.0
    %3257 = vmatpush2.msra.mxu0 0.0
    %3258 = vmatprep.subr.mxu0 0.0
    %3259 = vmatpush2.msra.mxu0 0.0
    %3260 = vmatprep.subr.mxu0 0.0
    %3261 = vmatpush2.msra.mxu0 0.0
    %3262 = vmatprep.subr.mxu0 0.0
    %3263 = vmatpush2.msra.mxu0 0.0
    %3264 = vmatprep.subr.mxu0 0.0
    %3265 = vmatpush2.msra.mxu0 0.0
    %3266 = vmatprep.subr.mxu0 0.0
    %3267 = vmatpush2.msra.mxu0 0.0
    %3268 = vmatprep.subr.mxu0 0.0
    %3269 = vmatpush2.msra.mxu0 0.0
    %3270 = vmatprep.subr.mxu0 0.0
    %3271 = vmatpush2.msra.mxu0 0.0
    %3272 = vmatprep.subr.mxu0 0.0
    %3273 = vmatpush2.msra.mxu0 0.0
    %3274 = vmatprep.subr.mxu0 0.0
    %3275 = vmatpush2.msra.mxu0 0.0
    %3276 = vmatprep.subr.mxu0 0.0
    %3277 = vmatpush2.msra.mxu0 0.0
    %3278 = vmatprep.subr.mxu0 0.0
    %3279 = vmatpush2.msra.mxu0 0.0
    %3280 = vmatprep.subr.mxu0 0.0
    %3281 = vmatpush2.msra.mxu0 0.0
    %3282 = vmatprep.subr.mxu0 0.0
    %3283 = vmatpush2.msra.mxu0 0.0
    %3284 = vmatprep.subr.mxu0 0.0
    %3285 = vmatpush2.msra.mxu0 0.0
    %3286 = vmatprep.mubr.f32.mxu0 0.0
    %3287 = vmatmul.mubr.f32.gmra.mxu0 %v3149
    %v3288 = vpop.f32.mrf.mxu0
    %v3289 = vadd.f32 0.0, %v3288
    %v3290 = vpop.f32.mrf.mxu0
    %v3291 = vadd.f32 0.0, %v3290
    %3292 = vdwg.mxu0
    %v3297 = vrot.slane %v3218, 4
    %v3298 = vrot.slane %v3220, 4
    %v3299 = vrot.slane %v3289, 4
    %v3300 = vrot.slane %v3291, 4
    %v3305 = vadd.f32 %v3144, %v3297
    %v3306 = vadd.f32 %v3145, %v3298
    %v3307 = vadd.f32 %v3146, %v3299
    %v3308 = vadd.f32 %v3147, %v3300
    %v3309 = vxor.u32 %v3305, 2147483648
    %v3310 = vmul.f32 %v3309, 1.442695
    %v3311 = vpow.pop %v3310
    %v3312 = vadd.f32 %v3311, 1.0
    %v3313 = vrcp.pop %v3312
    %v3314 = vmul.f32 1.0, %v3313
    %v3315 = vxor.u32 %v3306, 2147483648
    %v3316 = vmul.f32 %v3315, 1.442695
    %v3317 = vpow.pop %v3316
    %v3318 = vadd.f32 %v3317, 1.0
    %v3319 = vrcp.pop %v3318
    %v3320 = vmul.f32 1.0, %v3319
    %v3321 = vtanh.pop %v3307
    %v3322 = vxor.u32 %v3308, 2147483648
    %v3323 = vmul.f32 %v3322, 1.442695
    %v3324 = vpow.pop %v3323
    %v3325 = vadd.f32 %v3324, 1.0
    %v3326 = vrcp.pop %v3325
    %v3327 = vmul.f32 1.0, %v3326
    %v3329 = vrot.slane %v3140, 6
    %v3331 = vmul.f32 %v3320, %v3329
    %v3332 = vmul.f32 %v3314, %v3321
    %v3333 = vadd.f32 %v3331, %v3332
    %v3334 = vtanh.pop %v3333
    %v3335 = vmul.f32 %v3327, %v3334
    %3336 = vst [vmem:[#allocation4] sm:$0x30] %v3335
    %v3337 = vld [vmem:[#allocation3] sm:$0xc0]
    %v3338 = vld [vmem:[#allocation3 + $0x8] sm:$0xc0]
    %v3339 = vld [vmem:[#allocation3 + $0x10] sm:$0xc0]
    %v3340 = vld [vmem:[#allocation3 + $0x18] sm:$0xc0]
    %v3342 = vrot.slane %v3335, 4
    %3344 = vmatprep.subr.mxu0 %v2776
    %3345 = vmatpush1.msra.mxu0 %v2775
    %3346 = vmatprep.subr.mxu0 %v2772
    %3347 = vmatpush1.msra.mxu0 %v2771
    %3348 = vmatprep.subr.mxu0 %v2768
    %3349 = vmatpush1.msra.mxu0 %v2767
    %3350 = vmatprep.subr.mxu0 %v2764
    %3351 = vmatpush1.msra.mxu0 %v2763
    %3352 = vmatprep.subr.mxu0 %v2760
    %3353 = vmatpush1.msra.mxu0 %v2759
    %3354 = vmatprep.subr.mxu0 %v2756
    %3355 = vmatpush1.msra.mxu0 %v2755
    %3356 = vmatprep.subr.mxu0 %v2752
    %3357 = vmatpush1.msra.mxu0 %v2751
    %3358 = vmatprep.subr.mxu0 %v2748
    %3359 = vmatpush1.msra.mxu0 %v2747
    %3360 = vmatprep.subr.mxu0 %v2744
    %3361 = vmatpush1.msra.mxu0 %v2743
    %3362 = vmatprep.subr.mxu0 %v2740
    %3363 = vmatpush1.msra.mxu0 %v2739
    %3364 = vmatprep.subr.mxu0 %v2736
    %3365 = vmatpush1.msra.mxu0 %v2735
    %3366 = vmatprep.subr.mxu0 %v2732
    %3367 = vmatpush1.msra.mxu0 %v2731
    %3368 = vmatprep.subr.mxu0 %v2728
    %3369 = vmatpush1.msra.mxu0 %v2727
    %3370 = vmatprep.subr.mxu0 %v2724
    %3371 = vmatpush1.msra.mxu0 %v2723
    %3372 = vmatprep.subr.mxu0 %v2720
    %3373 = vmatpush1.msra.mxu0 %v2719
    %3374 = vmatprep.subr.mxu0 %v2716
    %3375 = vmatpush1.msra.mxu0 %v2715
    %3376 = vmatprep.subr.mxu0 0.0
    %3377 = vmatpush2.msra.mxu0 0.0
    %3378 = vmatprep.subr.mxu0 0.0
    %3379 = vmatpush2.msra.mxu0 0.0
    %3380 = vmatprep.subr.mxu0 0.0
    %3381 = vmatpush2.msra.mxu0 0.0
    %3382 = vmatprep.subr.mxu0 0.0
    %3383 = vmatpush2.msra.mxu0 0.0
    %3384 = vmatprep.subr.mxu0 0.0
    %3385 = vmatpush2.msra.mxu0 0.0
    %3386 = vmatprep.subr.mxu0 0.0
    %3387 = vmatpush2.msra.mxu0 0.0
    %3388 = vmatprep.subr.mxu0 0.0
    %3389 = vmatpush2.msra.mxu0 0.0
    %3390 = vmatprep.subr.mxu0 0.0
    %3391 = vmatpush2.msra.mxu0 0.0
    %3392 = vmatprep.subr.mxu0 0.0
    %3393 = vmatpush2.msra.mxu0 0.0
    %3394 = vmatprep.subr.mxu0 0.0
    %3395 = vmatpush2.msra.mxu0 0.0
    %3396 = vmatprep.subr.mxu0 0.0
    %3397 = vmatpush2.msra.mxu0 0.0
    %3398 = vmatprep.subr.mxu0 0.0
    %3399 = vmatpush2.msra.mxu0 0.0
    %3400 = vmatprep.subr.mxu0 0.0
    %3401 = vmatpush2.msra.mxu0 0.0
    %3402 = vmatprep.subr.mxu0 0.0
    %3403 = vmatpush2.msra.mxu0 0.0
    %3404 = vmatprep.subr.mxu0 0.0
    %3405 = vmatpush2.msra.mxu0 0.0
    %3406 = vmatprep.subr.mxu0 0.0
    %3407 = vmatpush2.msra.mxu0 0.0
    %3408 = vmatprep.mubr.f32.mxu0 0.0
    %3409 = vmatmul.mubr.f32.gmra.mxu0 %v3342
    %v3410 = vpop.f32.mrf.mxu0
    %v3411 = vadd.f32 0.0, %v3410
    %v3412 = vpop.f32.mrf.mxu0
    %v3413 = vadd.f32 0.0, %v3412
    %3414 = vdwg.mxu0
    %3415 = vmatprep.subr.mxu0 %v2778
    %3416 = vmatpush1.msra.mxu0 %v2777
    %3417 = vmatprep.subr.mxu0 %v2774
    %3418 = vmatpush1.msra.mxu0 %v2773
    %3419 = vmatprep.subr.mxu0 %v2770
    %3420 = vmatpush1.msra.mxu0 %v2769
    %3421 = vmatprep.subr.mxu0 %v2766
    %3422 = vmatpush1.msra.mxu0 %v2765
    %3423 = vmatprep.subr.mxu0 %v2762
    %3424 = vmatpush1.msra.mxu0 %v2761
    %3425 = vmatprep.subr.mxu0 %v2758
    %3426 = vmatpush1.msra.mxu0 %v2757
    %3427 = vmatprep.subr.mxu0 %v2754
    %3428 = vmatpush1.msra.mxu0 %v2753
    %3429 = vmatprep.subr.mxu0 %v2750
    %3430 = vmatpush1.msra.mxu0 %v2749
    %3431 = vmatprep.subr.mxu0 %v2746
    %3432 = vmatpush1.msra.mxu0 %v2745
    %3433 = vmatprep.subr.mxu0 %v2742
    %3434 = vmatpush1.msra.mxu0 %v2741
    %3435 = vmatprep.subr.mxu0 %v2738
    %3436 = vmatpush1.msra.mxu0 %v2737
    %3437 = vmatprep.subr.mxu0 %v2734
    %3438 = vmatpush1.msra.mxu0 %v2733
    %3439 = vmatprep.subr.mxu0 %v2730
    %3440 = vmatpush1.msra.mxu0 %v2729
    %3441 = vmatprep.subr.mxu0 %v2726
    %3442 = vmatpush1.msra.mxu0 %v2725
    %3443 = vmatprep.subr.mxu0 %v2722
    %3444 = vmatpush1.msra.mxu0 %v2721
    %3445 = vmatprep.subr.mxu0 %v2718
    %3446 = vmatpush1.msra.mxu0 %v2717
    %3447 = vmatprep.subr.mxu0 0.0
    %3448 = vmatpush2.msra.mxu0 0.0
    %3449 = vmatprep.subr.mxu0 0.0
    %3450 = vmatpush2.msra.mxu0 0.0
    %3451 = vmatprep.subr.mxu0 0.0
    %3452 = vmatpush2.msra.mxu0 0.0
    %3453 = vmatprep.subr.mxu0 0.0
    %3454 = vmatpush2.msra.mxu0 0.0
    %3455 = vmatprep.subr.mxu0 0.0
    %3456 = vmatpush2.msra.mxu0 0.0
    %3457 = vmatprep.subr.mxu0 0.0
    %3458 = vmatpush2.msra.mxu0 0.0
    %3459 = vmatprep.subr.mxu0 0.0
    %3460 = vmatpush2.msra.mxu0 0.0
    %3461 = vmatprep.subr.mxu0 0.0
    %3462 = vmatpush2.msra.mxu0 0.0
    %3463 = vmatprep.subr.mxu0 0.0
    %3464 = vmatpush2.msra.mxu0 0.0
    %3465 = vmatprep.subr.mxu0 0.0
    %3466 = vmatpush2.msra.mxu0 0.0
    %3467 = vmatprep.subr.mxu0 0.0
    %3468 = vmatpush2.msra.mxu0 0.0
    %3469 = vmatprep.subr.mxu0 0.0
    %3470 = vmatpush2.msra.mxu0 0.0
    %3471 = vmatprep.subr.mxu0 0.0
    %3472 = vmatpush2.msra.mxu0 0.0
    %3473 = vmatprep.subr.mxu0 0.0
    %3474 = vmatpush2.msra.mxu0 0.0
    %3475 = vmatprep.subr.mxu0 0.0
    %3476 = vmatpush2.msra.mxu0 0.0
    %3477 = vmatprep.subr.mxu0 0.0
    %3478 = vmatpush2.msra.mxu0 0.0
    %3479 = vmatprep.mubr.f32.mxu0 0.0
    %3480 = vmatmul.mubr.f32.gmra.mxu0 %v3342
    %v3481 = vpop.f32.mrf.mxu0
    %v3482 = vadd.f32 0.0, %v3481
    %v3483 = vpop.f32.mrf.mxu0
    %v3484 = vadd.f32 0.0, %v3483
    %3485 = vdwg.mxu0
    %v3490 = vrot.slane %v3411, 2
    %v3491 = vrot.slane %v3413, 2
    %v3492 = vrot.slane %v3482, 2
    %v3493 = vrot.slane %v3484, 2
    %v3498 = vadd.f32 %v3337, %v3490
    %v3499 = vadd.f32 %v3338, %v3491
    %v3500 = vadd.f32 %v3339, %v3492
    %v3501 = vadd.f32 %v3340, %v3493
    %v3502 = vxor.u32 %v3498, 2147483648
    %v3503 = vmul.f32 %v3502, 1.442695
    %v3504 = vpow.pop %v3503
    %v3505 = vadd.f32 %v3504, 1.0
    %v3506 = vrcp.pop %v3505
    %v3507 = vmul.f32 1.0, %v3506
    %v3508 = vxor.u32 %v3499, 2147483648
    %v3509 = vmul.f32 %v3508, 1.442695
    %v3510 = vpow.pop %v3509
    %v3511 = vadd.f32 %v3510, 1.0
    %v3512 = vrcp.pop %v3511
    %v3513 = vmul.f32 1.0, %v3512
    %v3514 = vtanh.pop %v3500
    %v3515 = vxor.u32 %v3501, 2147483648
    %v3516 = vmul.f32 %v3515, 1.442695
    %v3517 = vpow.pop %v3516
    %v3518 = vadd.f32 %v3517, 1.0
    %v3519 = vrcp.pop %v3518
    %v3520 = vmul.f32 1.0, %v3519
    %v3522 = vrot.slane %v3333, 6
    %v3524 = vmul.f32 %v3513, %v3522
    %v3525 = vmul.f32 %v3507, %v3514
    %v3526 = vadd.f32 %v3524, %v3525
    %v3527 = vtanh.pop %v3526
    %v3528 = vmul.f32 %v3520, %v3527
    %3529 = vst [vmem:[#allocation4] sm:$0xc0] %v3528
    %v3530 = vld [vmem:[#allocation3 + $0x20] sm:$0x3]
    %v3531 = vld [vmem:[#allocation3 + $0x28] sm:$0x3]
    %v3532 = vld [vmem:[#allocation3 + $0x30] sm:$0x3]
    %v3533 = vld [vmem:[#allocation3 + $0x38] sm:$0x3]
    %v3535 = vrot.slane %v3528, 6
    %3537 = vmatprep.subr.mxu0 %v2776
    %3538 = vmatpush1.msra.mxu0 %v2775
    %3539 = vmatprep.subr.mxu0 %v2772
    %3540 = vmatpush1.msra.mxu0 %v2771
    %3541 = vmatprep.subr.mxu0 %v2768
    %3542 = vmatpush1.msra.mxu0 %v2767
    %3543 = vmatprep.subr.mxu0 %v2764
    %3544 = vmatpush1.msra.mxu0 %v2763
    %3545 = vmatprep.subr.mxu0 %v2760
    %3546 = vmatpush1.msra.mxu0 %v2759
    %3547 = vmatprep.subr.mxu0 %v2756
    %3548 = vmatpush1.msra.mxu0 %v2755
    %3549 = vmatprep.subr.mxu0 %v2752
    %3550 = vmatpush1.msra.mxu0 %v2751
    %3551 = vmatprep.subr.mxu0 %v2748
    %3552 = vmatpush1.msra.mxu0 %v2747
    %3553 = vmatprep.subr.mxu0 %v2744
    %3554 = vmatpush1.msra.mxu0 %v2743
    %3555 = vmatprep.subr.mxu0 %v2740
    %3556 = vmatpush1.msra.mxu0 %v2739
    %3557 = vmatprep.subr.mxu0 %v2736
    %3558 = vmatpush1.msra.mxu0 %v2735
    %3559 = vmatprep.subr.mxu0 %v2732
    %3560 = vmatpush1.msra.mxu0 %v2731
    %3561 = vmatprep.subr.mxu0 %v2728
    %3562 = vmatpush1.msra.mxu0 %v2727
    %3563 = vmatprep.subr.mxu0 %v2724
    %3564 = vmatpush1.msra.mxu0 %v2723
    %3565 = vmatprep.subr.mxu0 %v2720
    %3566 = vmatpush1.msra.mxu0 %v2719
    %3567 = vmatprep.subr.mxu0 %v2716
    %3568 = vmatpush1.msra.mxu0 %v2715
    %3569 = vmatprep.subr.mxu0 0.0
    %3570 = vmatpush2.msra.mxu0 0.0
    %3571 = vmatprep.subr.mxu0 0.0
    %3572 = vmatpush2.msra.mxu0 0.0
    %3573 = vmatprep.subr.mxu0 0.0
    %3574 = vmatpush2.msra.mxu0 0.0
    %3575 = vmatprep.subr.mxu0 0.0
    %3576 = vmatpush2.msra.mxu0 0.0
    %3577 = vmatprep.subr.mxu0 0.0
    %3578 = vmatpush2.msra.mxu0 0.0
    %3579 = vmatprep.subr.mxu0 0.0
    %3580 = vmatpush2.msra.mxu0 0.0
    %3581 = vmatprep.subr.mxu0 0.0
    %3582 = vmatpush2.msra.mxu0 0.0
    %3583 = vmatprep.subr.mxu0 0.0
    %3584 = vmatpush2.msra.mxu0 0.0
    %3585 = vmatprep.subr.mxu0 0.0
    %3586 = vmatpush2.msra.mxu0 0.0
    %3587 = vmatprep.subr.mxu0 0.0
    %3588 = vmatpush2.msra.mxu0 0.0
    %3589 = vmatprep.subr.mxu0 0.0
    %3590 = vmatpush2.msra.mxu0 0.0
    %3591 = vmatprep.subr.mxu0 0.0
    %3592 = vmatpush2.msra.mxu0 0.0
    %3593 = vmatprep.subr.mxu0 0.0
    %3594 = vmatpush2.msra.mxu0 0.0
    %3595 = vmatprep.subr.mxu0 0.0
    %3596 = vmatpush2.msra.mxu0 0.0
    %3597 = vmatprep.subr.mxu0 0.0
    %3598 = vmatpush2.msra.mxu0 0.0
    %3599 = vmatprep.subr.mxu0 0.0
    %3600 = vmatpush2.msra.mxu0 0.0
    %3601 = vmatprep.mubr.f32.mxu0 0.0
    %3602 = vmatmul.mubr.f32.gmra.mxu0 %v3535
    %v3603 = vpop.f32.mrf.mxu0
    %v3604 = vadd.f32 0.0, %v3603
    %v3605 = vpop.f32.mrf.mxu0
    %v3606 = vadd.f32 0.0, %v3605
    %3607 = vdwg.mxu0
    %3608 = vmatprep.subr.mxu0 %v2778
    %3609 = vmatpush1.msra.mxu0 %v2777
    %3610 = vmatprep.subr.mxu0 %v2774
    %3611 = vmatpush1.msra.mxu0 %v2773
    %3612 = vmatprep.subr.mxu0 %v2770
    %3613 = vmatpush1.msra.mxu0 %v2769
    %3614 = vmatprep.subr.mxu0 %v2766
    %3615 = vmatpush1.msra.mxu0 %v2765
    %3616 = vmatprep.subr.mxu0 %v2762
    %3617 = vmatpush1.msra.mxu0 %v2761
    %3618 = vmatprep.subr.mxu0 %v2758
    %3619 = vmatpush1.msra.mxu0 %v2757
    %3620 = vmatprep.subr.mxu0 %v2754
    %3621 = vmatpush1.msra.mxu0 %v2753
    %3622 = vmatprep.subr.mxu0 %v2750
    %3623 = vmatpush1.msra.mxu0 %v2749
    %3624 = vmatprep.subr.mxu0 %v2746
    %3625 = vmatpush1.msra.mxu0 %v2745
    %3626 = vmatprep.subr.mxu0 %v2742
    %3627 = vmatpush1.msra.mxu0 %v2741
    %3628 = vmatprep.subr.mxu0 %v2738
    %3629 = vmatpush1.msra.mxu0 %v2737
    %3630 = vmatprep.subr.mxu0 %v2734
    %3631 = vmatpush1.msra.mxu0 %v2733
    %3632 = vmatprep.subr.mxu0 %v2730
    %3633 = vmatpush1.msra.mxu0 %v2729
    %3634 = vmatprep.subr.mxu0 %v2726
    %3635 = vmatpush1.msra.mxu0 %v2725
    %3636 = vmatprep.subr.mxu0 %v2722
    %3637 = vmatpush1.msra.mxu0 %v2721
    %3638 = vmatprep.subr.mxu0 %v2718
    %3639 = vmatpush1.msra.mxu0 %v2717
    %3640 = vmatprep.subr.mxu0 0.0
    %3641 = vmatpush2.msra.mxu0 0.0
    %3642 = vmatprep.subr.mxu0 0.0
    %3643 = vmatpush2.msra.mxu0 0.0
    %3644 = vmatprep.subr.mxu0 0.0
    %3645 = vmatpush2.msra.mxu0 0.0
    %3646 = vmatprep.subr.mxu0 0.0
    %3647 = vmatpush2.msra.mxu0 0.0
    %3648 = vmatprep.subr.mxu0 0.0
    %3649 = vmatpush2.msra.mxu0 0.0
    %3650 = vmatprep.subr.mxu0 0.0
    %3651 = vmatpush2.msra.mxu0 0.0
    %3652 = vmatprep.subr.mxu0 0.0
    %3653 = vmatpush2.msra.mxu0 0.0
    %3654 = vmatprep.subr.mxu0 0.0
    %3655 = vmatpush2.msra.mxu0 0.0
    %3656 = vmatprep.subr.mxu0 0.0
    %3657 = vmatpush2.msra.mxu0 0.0
    %3658 = vmatprep.subr.mxu0 0.0
    %3659 = vmatpush2.msra.mxu0 0.0
    %3660 = vmatprep.subr.mxu0 0.0
    %3661 = vmatpush2.msra.mxu0 0.0
    %3662 = vmatprep.subr.mxu0 0.0
    %3663 = vmatpush2.msra.mxu0 0.0
    %3664 = vmatprep.subr.mxu0 0.0
    %3665 = vmatpush2.msra.mxu0 0.0
    %3666 = vmatprep.subr.mxu0 0.0
    %3667 = vmatpush2.msra.mxu0 0.0
    %3668 = vmatprep.subr.mxu0 0.0
    %3669 = vmatpush2.msra.mxu0 0.0
    %3670 = vmatprep.subr.mxu0 0.0
    %3671 = vmatpush2.msra.mxu0 0.0
    %3672 = vmatprep.mubr.f32.mxu0 0.0
    %3673 = vmatmul.mubr.f32.gmra.mxu0 %v3535
    %v3674 = vpop.f32.mrf.mxu0
    %v3675 = vadd.f32 0.0, %v3674
    %v3676 = vpop.f32.mrf.mxu0
    %v3677 = vadd.f32 0.0, %v3676
    %3678 = vdwg.mxu0
    %v3679 = vadd.f32 %v3530, %v3604
    %v3680 = vadd.f32 %v3531, %v3606
    %v3681 = vadd.f32 %v3532, %v3675
    %v3682 = vadd.f32 %v3533, %v3677
    %v3683 = vxor.u32 %v3679, 2147483648
    %v3684 = vmul.f32 %v3683, 1.442695
    %v3685 = vpow.pop %v3684
    %v3686 = vadd.f32 %v3685, 1.0
    %v3687 = vrcp.pop %v3686
    %v3688 = vmul.f32 1.0, %v3687
    %v3689 = vxor.u32 %v3680, 2147483648
    %v3690 = vmul.f32 %v3689, 1.442695
    %v3691 = vpow.pop %v3690
    %v3692 = vadd.f32 %v3691, 1.0
    %v3693 = vrcp.pop %v3692
    %v3694 = vmul.f32 1.0, %v3693
    %v3695 = vtanh.pop %v3681
    %v3696 = vxor.u32 %v3682, 2147483648
    %v3697 = vmul.f32 %v3696, 1.442695
    %v3698 = vpow.pop %v3697
    %v3699 = vadd.f32 %v3698, 1.0
    %v3700 = vrcp.pop %v3699
    %v3701 = vmul.f32 1.0, %v3700
    %v3703 = vrot.slane %v3526, 6
    %v3705 = vmul.f32 %v3694, %v3703
    %v3706 = vmul.f32 %v3688, %v3695
    %v3707 = vadd.f32 %v3705, %v3706
    %v3708 = vtanh.pop %v3707
    %v3709 = vmul.f32 %v3701, %v3708
    %3710 = vst [vmem:[#allocation4 + $0x8] sm:$0x3] %v3709
    %v3711 = vld [vmem:[#allocation3 + $0x20] sm:$0xc]
    %v3712 = vld [vmem:[#allocation3 + $0x28] sm:$0xc]
    %v3713 = vld [vmem:[#allocation3 + $0x30] sm:$0xc]
    %v3714 = vld [vmem:[#allocation3 + $0x38] sm:$0xc]
    %3715 = vmatprep.subr.mxu0 %v2776
    %3716 = vmatpush1.msra.mxu0 %v2775
    %3717 = vmatprep.subr.mxu0 %v2772
    %3718 = vmatpush1.msra.mxu0 %v2771
    %3719 = vmatprep.subr.mxu0 %v2768
    %3720 = vmatpush1.msra.mxu0 %v2767
    %3721 = vmatprep.subr.mxu0 %v2764
    %3722 = vmatpush1.msra.mxu0 %v2763
    %3723 = vmatprep.subr.mxu0 %v2760
    %3724 = vmatpush1.msra.mxu0 %v2759
    %3725 = vmatprep.subr.mxu0 %v2756
    %3726 = vmatpush1.msra.mxu0 %v2755
    %3727 = vmatprep.subr.mxu0 %v2752
    %3728 = vmatpush1.msra.mxu0 %v2751
    %3729 = vmatprep.subr.mxu0 %v2748
    %3730 = vmatpush1.msra.mxu0 %v2747
    %3731 = vmatprep.subr.mxu0 %v2744
    %3732 = vmatpush1.msra.mxu0 %v2743
    %3733 = vmatprep.subr.mxu0 %v2740
    %3734 = vmatpush1.msra.mxu0 %v2739
    %3735 = vmatprep.subr.mxu0 %v2736
    %3736 = vmatpush1.msra.mxu0 %v2735
    %3737 = vmatprep.subr.mxu0 %v2732
    %3738 = vmatpush1.msra.mxu0 %v2731
    %3739 = vmatprep.subr.mxu0 %v2728
    %3740 = vmatpush1.msra.mxu0 %v2727
    %3741 = vmatprep.subr.mxu0 %v2724
    %3742 = vmatpush1.msra.mxu0 %v2723
    %3743 = vmatprep.subr.mxu0 %v2720
    %3744 = vmatpush1.msra.mxu0 %v2719
    %3745 = vmatprep.subr.mxu0 %v2716
    %3746 = vmatpush1.msra.mxu0 %v2715
    %3747 = vmatprep.subr.mxu0 0.0
    %3748 = vmatpush2.msra.mxu0 0.0
    %3749 = vmatprep.subr.mxu0 0.0
    %3750 = vmatpush2.msra.mxu0 0.0
    %3751 = vmatprep.subr.mxu0 0.0
    %3752 = vmatpush2.msra.mxu0 0.0
    %3753 = vmatprep.subr.mxu0 0.0
    %3754 = vmatpush2.msra.mxu0 0.0
    %3755 = vmatprep.subr.mxu0 0.0
    %3756 = vmatpush2.msra.mxu0 0.0
    %3757 = vmatprep.subr.mxu0 0.0
    %3758 = vmatpush2.msra.mxu0 0.0
    %3759 = vmatprep.subr.mxu0 0.0
    %3760 = vmatpush2.msra.mxu0 0.0
    %3761 = vmatprep.subr.mxu0 0.0
    %3762 = vmatpush2.msra.mxu0 0.0
    %3763 = vmatprep.subr.mxu0 0.0
    %3764 = vmatpush2.msra.mxu0 0.0
    %3765 = vmatprep.subr.mxu0 0.0
    %3766 = vmatpush2.msra.mxu0 0.0
    %3767 = vmatprep.subr.mxu0 0.0
    %3768 = vmatpush2.msra.mxu0 0.0
    %3769 = vmatprep.subr.mxu0 0.0
    %3770 = vmatpush2.msra.mxu0 0.0
    %3771 = vmatprep.subr.mxu0 0.0
    %3772 = vmatpush2.msra.mxu0 0.0
    %3773 = vmatprep.subr.mxu0 0.0
    %3774 = vmatpush2.msra.mxu0 0.0
    %3775 = vmatprep.subr.mxu0 0.0
    %3776 = vmatpush2.msra.mxu0 0.0
    %3777 = vmatprep.subr.mxu0 0.0
    %3778 = vmatpush2.msra.mxu0 0.0
    %3779 = vmatprep.mubr.f32.mxu0 0.0
    %3780 = vmatmul.mubr.f32.gmra.mxu0 %v3709
    %v3781 = vpop.f32.mrf.mxu0
    %v3782 = vadd.f32 0.0, %v3781
    %v3783 = vpop.f32.mrf.mxu0
    %v3784 = vadd.f32 0.0, %v3783
    %3785 = vdwg.mxu0
    %3786 = vmatprep.subr.mxu0 %v2778
    %3787 = vmatpush1.msra.mxu0 %v2777
    %3788 = vmatprep.subr.mxu0 %v2774
    %3789 = vmatpush1.msra.mxu0 %v2773
    %3790 = vmatprep.subr.mxu0 %v2770
    %3791 = vmatpush1.msra.mxu0 %v2769
    %3792 = vmatprep.subr.mxu0 %v2766
    %3793 = vmatpush1.msra.mxu0 %v2765
    %3794 = vmatprep.subr.mxu0 %v2762
    %3795 = vmatpush1.msra.mxu0 %v2761
    %3796 = vmatprep.subr.mxu0 %v2758
    %3797 = vmatpush1.msra.mxu0 %v2757
    %3798 = vmatprep.subr.mxu0 %v2754
    %3799 = vmatpush1.msra.mxu0 %v2753
    %3800 = vmatprep.subr.mxu0 %v2750
    %3801 = vmatpush1.msra.mxu0 %v2749
    %3802 = vmatprep.subr.mxu0 %v2746
    %3803 = vmatpush1.msra.mxu0 %v2745
    %3804 = vmatprep.subr.mxu0 %v2742
    %3805 = vmatpush1.msra.mxu0 %v2741
    %3806 = vmatprep.subr.mxu0 %v2738
    %3807 = vmatpush1.msra.mxu0 %v2737
    %3808 = vmatprep.subr.mxu0 %v2734
    %3809 = vmatpush1.msra.mxu0 %v2733
    %3810 = vmatprep.subr.mxu0 %v2730
    %3811 = vmatpush1.msra.mxu0 %v2729
    %3812 = vmatprep.subr.mxu0 %v2726
    %3813 = vmatpush1.msra.mxu0 %v2725
    %3814 = vmatprep.subr.mxu0 %v2722
    %3815 = vmatpush1.msra.mxu0 %v2721
    %3816 = vmatprep.subr.mxu0 %v2718
    %3817 = vmatpush1.msra.mxu0 %v2717
    %3818 = vmatprep.subr.mxu0 0.0
    %3819 = vmatpush2.msra.mxu0 0.0
    %3820 = vmatprep.subr.mxu0 0.0
    %3821 = vmatpush2.msra.mxu0 0.0
    %3822 = vmatprep.subr.mxu0 0.0
    %3823 = vmatpush2.msra.mxu0 0.0
    %3824 = vmatprep.subr.mxu0 0.0
    %3825 = vmatpush2.msra.mxu0 0.0
    %3826 = vmatprep.subr.mxu0 0.0
    %3827 = vmatpush2.msra.mxu0 0.0
    %3828 = vmatprep.subr.mxu0 0.0
    %3829 = vmatpush2.msra.mxu0 0.0
    %3830 = vmatprep.subr.mxu0 0.0
    %3831 = vmatpush2.msra.mxu0 0.0
    %3832 = vmatprep.subr.mxu0 0.0
    %3833 = vmatpush2.msra.mxu0 0.0
    %3834 = vmatprep.subr.mxu0 0.0
    %3835 = vmatpush2.msra.mxu0 0.0
    %3836 = vmatprep.subr.mxu0 0.0
    %3837 = vmatpush2.msra.mxu0 0.0
    %3838 = vmatprep.subr.mxu0 0.0
    %3839 = vmatpush2.msra.mxu0 0.0
    %3840 = vmatprep.subr.mxu0 0.0
    %3841 = vmatpush2.msra.mxu0 0.0
    %3842 = vmatprep.subr.mxu0 0.0
    %3843 = vmatpush2.msra.mxu0 0.0
    %3844 = vmatprep.subr.mxu0 0.0
    %3845 = vmatpush2.msra.mxu0 0.0
    %3846 = vmatprep.subr.mxu0 0.0
    %3847 = vmatpush2.msra.mxu0 0.0
    %3848 = vmatprep.subr.mxu0 0.0
    %3849 = vmatpush2.msra.mxu0 0.0
    %3850 = vmatprep.mubr.f32.mxu0 0.0
    %3851 = vmatmul.mubr.f32.gmra.mxu0 %v3709
    %v3852 = vpop.f32.mrf.mxu0
    %v3853 = vadd.f32 0.0, %v3852
    %v3854 = vpop.f32.mrf.mxu0
    %v3855 = vadd.f32 0.0, %v3854
    %3856 = vdwg.mxu0
    %v3861 = vrot.slane %v3782, 6
    %v3862 = vrot.slane %v3784, 6
    %v3863 = vrot.slane %v3853, 6
    %v3864 = vrot.slane %v3855, 6
    %v3869 = vadd.f32 %v3711, %v3861
    %v3870 = vadd.f32 %v3712, %v3862
    %v3871 = vadd.f32 %v3713, %v3863
    %v3872 = vadd.f32 %v3714, %v3864
    %v3873 = vxor.u32 %v3869, 2147483648
    %v3874 = vmul.f32 %v3873, 1.442695
    %v3875 = vpow.pop %v3874
    %v3876 = vadd.f32 %v3875, 1.0
    %v3877 = vrcp.pop %v3876
    %v3878 = vmul.f32 1.0, %v3877
    %v3879 = vxor.u32 %v3870, 2147483648
    %v3880 = vmul.f32 %v3879, 1.442695
    %v3881 = vpow.pop %v3880
    %v3882 = vadd.f32 %v3881, 1.0
    %v3883 = vrcp.pop %v3882
    %v3884 = vmul.f32 1.0, %v3883
    %v3885 = vtanh.pop %v3871
    %v3886 = vxor.u32 %v3872, 2147483648
    %v3887 = vmul.f32 %v3886, 1.442695
    %v3888 = vpow.pop %v3887
    %v3889 = vadd.f32 %v3888, 1.0
    %v3890 = vrcp.pop %v3889
    %v3891 = vmul.f32 1.0, %v3890
    %v3893 = vrot.slane %v3707, 6
    %v3895 = vmul.f32 %v3884, %v3893
    %v3896 = vmul.f32 %v3878, %v3885
    %v3897 = vadd.f32 %v3895, %v3896
    %v3898 = vtanh.pop %v3897
    %v3899 = vmul.f32 %v3891, %v3898
    %3900 = vst [vmem:[#allocation4 + $0x8] sm:$0xc] %v3899
    %v3901 = vld [vmem:[#allocation3 + $0x20] sm:$0x30]
    %v3902 = vld [vmem:[#allocation3 + $0x28] sm:$0x30]
    %v3903 = vld [vmem:[#allocation3 + $0x30] sm:$0x30]
    %v3904 = vld [vmem:[#allocation3 + $0x38] sm:$0x30]
    %v3906 = vrot.slane %v3899, 2
    %3908 = vmatprep.subr.mxu0 %v2776
    %3909 = vmatpush1.msra.mxu0 %v2775
    %3910 = vmatprep.subr.mxu0 %v2772
    %3911 = vmatpush1.msra.mxu0 %v2771
    %3912 = vmatprep.subr.mxu0 %v2768
    %3913 = vmatpush1.msra.mxu0 %v2767
    %3914 = vmatprep.subr.mxu0 %v2764
    %3915 = vmatpush1.msra.mxu0 %v2763
    %3916 = vmatprep.subr.mxu0 %v2760
    %3917 = vmatpush1.msra.mxu0 %v2759
    %3918 = vmatprep.subr.mxu0 %v2756
    %3919 = vmatpush1.msra.mxu0 %v2755
    %3920 = vmatprep.subr.mxu0 %v2752
    %3921 = vmatpush1.msra.mxu0 %v2751
    %3922 = vmatprep.subr.mxu0 %v2748
    %3923 = vmatpush1.msra.mxu0 %v2747
    %3924 = vmatprep.subr.mxu0 %v2744
    %3925 = vmatpush1.msra.mxu0 %v2743
    %3926 = vmatprep.subr.mxu0 %v2740
    %3927 = vmatpush1.msra.mxu0 %v2739
    %3928 = vmatprep.subr.mxu0 %v2736
    %3929 = vmatpush1.msra.mxu0 %v2735
    %3930 = vmatprep.subr.mxu0 %v2732
    %3931 = vmatpush1.msra.mxu0 %v2731
    %3932 = vmatprep.subr.mxu0 %v2728
    %3933 = vmatpush1.msra.mxu0 %v2727
    %3934 = vmatprep.subr.mxu0 %v2724
    %3935 = vmatpush1.msra.mxu0 %v2723
    %3936 = vmatprep.subr.mxu0 %v2720
    %3937 = vmatpush1.msra.mxu0 %v2719
    %3938 = vmatprep.subr.mxu0 %v2716
    %3939 = vmatpush1.msra.mxu0 %v2715
    %3940 = vmatprep.subr.mxu0 0.0
    %3941 = vmatpush2.msra.mxu0 0.0
    %3942 = vmatprep.subr.mxu0 0.0
    %3943 = vmatpush2.msra.mxu0 0.0
    %3944 = vmatprep.subr.mxu0 0.0
    %3945 = vmatpush2.msra.mxu0 0.0
    %3946 = vmatprep.subr.mxu0 0.0
    %3947 = vmatpush2.msra.mxu0 0.0
    %3948 = vmatprep.subr.mxu0 0.0
    %3949 = vmatpush2.msra.mxu0 0.0
    %3950 = vmatprep.subr.mxu0 0.0
    %3951 = vmatpush2.msra.mxu0 0.0
    %3952 = vmatprep.subr.mxu0 0.0
    %3953 = vmatpush2.msra.mxu0 0.0
    %3954 = vmatprep.subr.mxu0 0.0
    %3955 = vmatpush2.msra.mxu0 0.0
    %3956 = vmatprep.subr.mxu0 0.0
    %3957 = vmatpush2.msra.mxu0 0.0
    %3958 = vmatprep.subr.mxu0 0.0
    %3959 = vmatpush2.msra.mxu0 0.0
    %3960 = vmatprep.subr.mxu0 0.0
    %3961 = vmatpush2.msra.mxu0 0.0
    %3962 = vmatprep.subr.mxu0 0.0
    %3963 = vmatpush2.msra.mxu0 0.0
    %3964 = vmatprep.subr.mxu0 0.0
    %3965 = vmatpush2.msra.mxu0 0.0
    %3966 = vmatprep.subr.mxu0 0.0
    %3967 = vmatpush2.msra.mxu0 0.0
    %3968 = vmatprep.subr.mxu0 0.0
    %3969 = vmatpush2.msra.mxu0 0.0
    %3970 = vmatprep.subr.mxu0 0.0
    %3971 = vmatpush2.msra.mxu0 0.0
    %3972 = vmatprep.mubr.f32.mxu0 0.0
    %3973 = vmatmul.mubr.f32.gmra.mxu0 %v3906
    %v3974 = vpop.f32.mrf.mxu0
    %v3975 = vadd.f32 0.0, %v3974
    %v3976 = vpop.f32.mrf.mxu0
    %v3977 = vadd.f32 0.0, %v3976
    %3978 = vdwg.mxu0
    %3979 = vmatprep.subr.mxu0 %v2778
    %3980 = vmatpush1.msra.mxu0 %v2777
    %3981 = vmatprep.subr.mxu0 %v2774
    %3982 = vmatpush1.msra.mxu0 %v2773
    %3983 = vmatprep.subr.mxu0 %v2770
    %3984 = vmatpush1.msra.mxu0 %v2769
    %3985 = vmatprep.subr.mxu0 %v2766
    %3986 = vmatpush1.msra.mxu0 %v2765
    %3987 = vmatprep.subr.mxu0 %v2762
    %3988 = vmatpush1.msra.mxu0 %v2761
    %3989 = vmatprep.subr.mxu0 %v2758
    %3990 = vmatpush1.msra.mxu0 %v2757
    %3991 = vmatprep.subr.mxu0 %v2754
    %3992 = vmatpush1.msra.mxu0 %v2753
    %3993 = vmatprep.subr.mxu0 %v2750
    %3994 = vmatpush1.msra.mxu0 %v2749
    %3995 = vmatprep.subr.mxu0 %v2746
    %3996 = vmatpush1.msra.mxu0 %v2745
    %3997 = vmatprep.subr.mxu0 %v2742
    %3998 = vmatpush1.msra.mxu0 %v2741
    %3999 = vmatprep.subr.mxu0 %v2738
    %4000 = vmatpush1.msra.mxu0 %v2737
    %4001 = vmatprep.subr.mxu0 %v2734
    %4002 = vmatpush1.msra.mxu0 %v2733
    %4003 = vmatprep.subr.mxu0 %v2730
    %4004 = vmatpush1.msra.mxu0 %v2729
    %4005 = vmatprep.subr.mxu0 %v2726
    %4006 = vmatpush1.msra.mxu0 %v2725
    %4007 = vmatprep.subr.mxu0 %v2722
    %4008 = vmatpush1.msra.mxu0 %v2721
    %4009 = vmatprep.subr.mxu0 %v2718
    %4010 = vmatpush1.msra.mxu0 %v2717
    %4011 = vmatprep.subr.mxu0 0.0
    %4012 = vmatpush2.msra.mxu0 0.0
    %4013 = vmatprep.subr.mxu0 0.0
    %4014 = vmatpush2.msra.mxu0 0.0
    %4015 = vmatprep.subr.mxu0 0.0
    %4016 = vmatpush2.msra.mxu0 0.0
    %4017 = vmatprep.subr.mxu0 0.0
    %4018 = vmatpush2.msra.mxu0 0.0
    %4019 = vmatprep.subr.mxu0 0.0
    %4020 = vmatpush2.msra.mxu0 0.0
    %4021 = vmatprep.subr.mxu0 0.0
    %4022 = vmatpush2.msra.mxu0 0.0
    %4023 = vmatprep.subr.mxu0 0.0
    %4024 = vmatpush2.msra.mxu0 0.0
    %4025 = vmatprep.subr.mxu0 0.0
    %4026 = vmatpush2.msra.mxu0 0.0
    %4027 = vmatprep.subr.mxu0 0.0
    %4028 = vmatpush2.msra.mxu0 0.0
    %4029 = vmatprep.subr.mxu0 0.0
    %4030 = vmatpush2.msra.mxu0 0.0
    %4031 = vmatprep.subr.mxu0 0.0
    %4032 = vmatpush2.msra.mxu0 0.0
    %4033 = vmatprep.subr.mxu0 0.0
    %4034 = vmatpush2.msra.mxu0 0.0
    %4035 = vmatprep.subr.mxu0 0.0
    %4036 = vmatpush2.msra.mxu0 0.0
    %4037 = vmatprep.subr.mxu0 0.0
    %4038 = vmatpush2.msra.mxu0 0.0
    %4039 = vmatprep.subr.mxu0 0.0
    %4040 = vmatpush2.msra.mxu0 0.0
    %4041 = vmatprep.subr.mxu0 0.0
    %4042 = vmatpush2.msra.mxu0 0.0
    %4043 = vmatprep.mubr.f32.mxu0 0.0
    %4044 = vmatmul.mubr.f32.gmra.mxu0 %v3906
    %v4045 = vpop.f32.mrf.mxu0
    %v4046 = vadd.f32 0.0, %v4045
    %v4047 = vpop.f32.mrf.mxu0
    %v4048 = vadd.f32 0.0, %v4047
    %4049 = vdwg.mxu0
    %v4054 = vrot.slane %v3975, 4
    %v4055 = vrot.slane %v3977, 4
    %v4056 = vrot.slane %v4046, 4
    %v4057 = vrot.slane %v4048, 4
    %v4062 = vadd.f32 %v3901, %v4054
    %v4063 = vadd.f32 %v3902, %v4055
    %v4064 = vadd.f32 %v3903, %v4056
    %v4065 = vadd.f32 %v3904, %v4057
    %v4066 = vxor.u32 %v4062, 2147483648
    %v4067 = vmul.f32 %v4066, 1.442695
    %v4068 = vpow.pop %v4067
    %v4069 = vadd.f32 %v4068, 1.0
    %v4070 = vrcp.pop %v4069
    %v4071 = vmul.f32 1.0, %v4070
    %v4072 = vxor.u32 %v4063, 2147483648
    %v4073 = vmul.f32 %v4072, 1.442695
    %v4074 = vpow.pop %v4073
    %v4075 = vadd.f32 %v4074, 1.0
    %v4076 = vrcp.pop %v4075
    %v4077 = vmul.f32 1.0, %v4076
    %v4078 = vtanh.pop %v4064
    %v4079 = vxor.u32 %v4065, 2147483648
    %v4080 = vmul.f32 %v4079, 1.442695
    %v4081 = vpow.pop %v4080
    %v4082 = vadd.f32 %v4081, 1.0
    %v4083 = vrcp.pop %v4082
    %v4084 = vmul.f32 1.0, %v4083
    %v4086 = vrot.slane %v3897, 6
    %v4088 = vmul.f32 %v4077, %v4086
    %v4089 = vmul.f32 %v4071, %v4078
    %v4090 = vadd.f32 %v4088, %v4089
    %v4091 = vtanh.pop %v4090
    %v4092 = vmul.f32 %v4084, %v4091
    %4093 = vst [vmem:[#allocation4 + $0x8] sm:$0x30] %v4092
    %v4094 = vld [vmem:[#allocation3 + $0x20] sm:$0xc0]
    %v4095 = vld [vmem:[#allocation3 + $0x28] sm:$0xc0]
    %v4096 = vld [vmem:[#allocation3 + $0x30] sm:$0xc0]
    %v4097 = vld [vmem:[#allocation3 + $0x38] sm:$0xc0]
    %v4099 = vrot.slane %v4092, 4
    %4101 = vmatprep.subr.mxu0 %v2776
    %4102 = vmatpush1.msra.mxu0 %v2775
    %4103 = vmatprep.subr.mxu0 %v2772
    %4104 = vmatpush1.msra.mxu0 %v2771
    %4105 = vmatprep.subr.mxu0 %v2768
    %4106 = vmatpush1.msra.mxu0 %v2767
    %4107 = vmatprep.subr.mxu0 %v2764
    %4108 = vmatpush1.msra.mxu0 %v2763
    %4109 = vmatprep.subr.mxu0 %v2760
    %4110 = vmatpush1.msra.mxu0 %v2759
    %4111 = vmatprep.subr.mxu0 %v2756
    %4112 = vmatpush1.msra.mxu0 %v2755
    %4113 = vmatprep.subr.mxu0 %v2752
    %4114 = vmatpush1.msra.mxu0 %v2751
    %4115 = vmatprep.subr.mxu0 %v2748
    %4116 = vmatpush1.msra.mxu0 %v2747
    %4117 = vmatprep.subr.mxu0 %v2744
    %4118 = vmatpush1.msra.mxu0 %v2743
    %4119 = vmatprep.subr.mxu0 %v2740
    %4120 = vmatpush1.msra.mxu0 %v2739
    %4121 = vmatprep.subr.mxu0 %v2736
    %4122 = vmatpush1.msra.mxu0 %v2735
    %4123 = vmatprep.subr.mxu0 %v2732
    %4124 = vmatpush1.msra.mxu0 %v2731
    %4125 = vmatprep.subr.mxu0 %v2728
    %4126 = vmatpush1.msra.mxu0 %v2727
    %4127 = vmatprep.subr.mxu0 %v2724
    %4128 = vmatpush1.msra.mxu0 %v2723
    %4129 = vmatprep.subr.mxu0 %v2720
    %4130 = vmatpush1.msra.mxu0 %v2719
    %4131 = vmatprep.subr.mxu0 %v2716
    %4132 = vmatpush1.msra.mxu0 %v2715
    %4133 = vmatprep.subr.mxu0 0.0
    %4134 = vmatpush2.msra.mxu0 0.0
    %4135 = vmatprep.subr.mxu0 0.0
    %4136 = vmatpush2.msra.mxu0 0.0
    %4137 = vmatprep.subr.mxu0 0.0
    %4138 = vmatpush2.msra.mxu0 0.0
    %4139 = vmatprep.subr.mxu0 0.0
    %4140 = vmatpush2.msra.mxu0 0.0
    %4141 = vmatprep.subr.mxu0 0.0
    %4142 = vmatpush2.msra.mxu0 0.0
    %4143 = vmatprep.subr.mxu0 0.0
    %4144 = vmatpush2.msra.mxu0 0.0
    %4145 = vmatprep.subr.mxu0 0.0
    %4146 = vmatpush2.msra.mxu0 0.0
    %4147 = vmatprep.subr.mxu0 0.0
    %4148 = vmatpush2.msra.mxu0 0.0
    %4149 = vmatprep.subr.mxu0 0.0
    %4150 = vmatpush2.msra.mxu0 0.0
    %4151 = vmatprep.subr.mxu0 0.0
    %4152 = vmatpush2.msra.mxu0 0.0
    %4153 = vmatprep.subr.mxu0 0.0
    %4154 = vmatpush2.msra.mxu0 0.0
    %4155 = vmatprep.subr.mxu0 0.0
    %4156 = vmatpush2.msra.mxu0 0.0
    %4157 = vmatprep.subr.mxu0 0.0
    %4158 = vmatpush2.msra.mxu0 0.0
    %4159 = vmatprep.subr.mxu0 0.0
    %4160 = vmatpush2.msra.mxu0 0.0
    %4161 = vmatprep.subr.mxu0 0.0
    %4162 = vmatpush2.msra.mxu0 0.0
    %4163 = vmatprep.subr.mxu0 0.0
    %4164 = vmatpush2.msra.mxu0 0.0
    %4165 = vmatprep.mubr.f32.mxu0 0.0
    %4166 = vmatmul.mubr.f32.gmra.mxu0 %v4099
    %v4167 = vpop.f32.mrf.mxu0
    %v4168 = vadd.f32 0.0, %v4167
    %v4169 = vpop.f32.mrf.mxu0
    %v4170 = vadd.f32 0.0, %v4169
    %4171 = vdwg.mxu0
    %4172 = vmatprep.subr.mxu0 %v2778
    %4173 = vmatpush1.msra.mxu0 %v2777
    %4174 = vmatprep.subr.mxu0 %v2774
    %4175 = vmatpush1.msra.mxu0 %v2773
    %4176 = vmatprep.subr.mxu0 %v2770
    %4177 = vmatpush1.msra.mxu0 %v2769
    %4178 = vmatprep.subr.mxu0 %v2766
    %4179 = vmatpush1.msra.mxu0 %v2765
    %4180 = vmatprep.subr.mxu0 %v2762
    %4181 = vmatpush1.msra.mxu0 %v2761
    %4182 = vmatprep.subr.mxu0 %v2758
    %4183 = vmatpush1.msra.mxu0 %v2757
    %4184 = vmatprep.subr.mxu0 %v2754
    %4185 = vmatpush1.msra.mxu0 %v2753
    %4186 = vmatprep.subr.mxu0 %v2750
    %4187 = vmatpush1.msra.mxu0 %v2749
    %4188 = vmatprep.subr.mxu0 %v2746
    %4189 = vmatpush1.msra.mxu0 %v2745
    %4190 = vmatprep.subr.mxu0 %v2742
    %4191 = vmatpush1.msra.mxu0 %v2741
    %4192 = vmatprep.subr.mxu0 %v2738
    %4193 = vmatpush1.msra.mxu0 %v2737
    %4194 = vmatprep.subr.mxu0 %v2734
    %4195 = vmatpush1.msra.mxu0 %v2733
    %4196 = vmatprep.subr.mxu0 %v2730
    %4197 = vmatpush1.msra.mxu0 %v2729
    %4198 = vmatprep.subr.mxu0 %v2726
    %4199 = vmatpush1.msra.mxu0 %v2725
    %4200 = vmatprep.subr.mxu0 %v2722
    %4201 = vmatpush1.msra.mxu0 %v2721
    %4202 = vmatprep.subr.mxu0 %v2718
    %4203 = vmatpush1.msra.mxu0 %v2717
    %4204 = vmatprep.subr.mxu0 0.0
    %4205 = vmatpush2.msra.mxu0 0.0
    %4206 = vmatprep.subr.mxu0 0.0
    %4207 = vmatpush2.msra.mxu0 0.0
    %4208 = vmatprep.subr.mxu0 0.0
    %4209 = vmatpush2.msra.mxu0 0.0
    %4210 = vmatprep.subr.mxu0 0.0
    %4211 = vmatpush2.msra.mxu0 0.0
    %4212 = vmatprep.subr.mxu0 0.0
    %4213 = vmatpush2.msra.mxu0 0.0
    %4214 = vmatprep.subr.mxu0 0.0
    %4215 = vmatpush2.msra.mxu0 0.0
    %4216 = vmatprep.subr.mxu0 0.0
    %4217 = vmatpush2.msra.mxu0 0.0
    %4218 = vmatprep.subr.mxu0 0.0
    %4219 = vmatpush2.msra.mxu0 0.0
    %4220 = vmatprep.subr.mxu0 0.0
    %4221 = vmatpush2.msra.mxu0 0.0
    %4222 = vmatprep.subr.mxu0 0.0
    %4223 = vmatpush2.msra.mxu0 0.0
    %4224 = vmatprep.subr.mxu0 0.0
    %4225 = vmatpush2.msra.mxu0 0.0
    %4226 = vmatprep.subr.mxu0 0.0
    %4227 = vmatpush2.msra.mxu0 0.0
    %4228 = vmatprep.subr.mxu0 0.0
    %4229 = vmatpush2.msra.mxu0 0.0
    %4230 = vmatprep.subr.mxu0 0.0
    %4231 = vmatpush2.msra.mxu0 0.0
    %4232 = vmatprep.subr.mxu0 0.0
    %4233 = vmatpush2.msra.mxu0 0.0
    %4234 = vmatprep.subr.mxu0 0.0
    %4235 = vmatpush2.msra.mxu0 0.0
    %4236 = vmatprep.mubr.f32.mxu0 0.0
    %4237 = vmatmul.mubr.f32.gmra.mxu0 %v4099
    %v4238 = vpop.f32.mrf.mxu0
    %v4239 = vadd.f32 0.0, %v4238
    %v4240 = vpop.f32.mrf.mxu0
    %v4241 = vadd.f32 0.0, %v4240
    %4242 = vdwg.mxu0
    %v4247 = vrot.slane %v4168, 2
    %v4248 = vrot.slane %v4170, 2
    %v4249 = vrot.slane %v4239, 2
    %v4250 = vrot.slane %v4241, 2
    %v4255 = vadd.f32 %v4094, %v4247
    %v4256 = vadd.f32 %v4095, %v4248
    %v4257 = vadd.f32 %v4096, %v4249
    %v4258 = vadd.f32 %v4097, %v4250
    %v4259 = vxor.u32 %v4255, 2147483648
    %v4260 = vmul.f32 %v4259, 1.442695
    %v4261 = vpow.pop %v4260
    %v4262 = vadd.f32 %v4261, 1.0
    %v4263 = vrcp.pop %v4262
    %v4264 = vmul.f32 1.0, %v4263
    %v4265 = vxor.u32 %v4256, 2147483648
    %v4266 = vmul.f32 %v4265, 1.442695
    %v4267 = vpow.pop %v4266
    %v4268 = vadd.f32 %v4267, 1.0
    %v4269 = vrcp.pop %v4268
    %v4270 = vmul.f32 1.0, %v4269
    %v4271 = vtanh.pop %v4257
    %v4272 = vxor.u32 %v4258, 2147483648
    %v4273 = vmul.f32 %v4272, 1.442695
    %v4274 = vpow.pop %v4273
    %v4275 = vadd.f32 %v4274, 1.0
    %v4276 = vrcp.pop %v4275
    %v4277 = vmul.f32 1.0, %v4276
    %v4279 = vrot.slane %v4090, 6
    %v4281 = vmul.f32 %v4270, %v4279
    %v4282 = vmul.f32 %v4264, %v4271
    %v4283 = vadd.f32 %v4281, %v4282
    %v4284 = vtanh.pop %v4283
    %v4285 = vmul.f32 %v4277, %v4284
    %4286 = vst [vmem:[#allocation4 + $0x8] sm:$0xc0] %v4285
    %v4287 = vld [vmem:[#allocation4] sm:$0x3]
    %v4288 = vld [vmem:[#allocation4 + $0xe] sm:$0x3]
    %v4289 = vsel %vm134, %v4287, %v4288
    %4290 = vst [vmem:[#allocation5] sm:$0x3] %v4289
    %v4291 = vld [vmem:[#allocation4 + $0x2] sm:$0x3]
    %v4292 = vld [vmem:[#allocation4 + $0xc] sm:$0x3]
    %v4293 = vsel %vm134, %v4291, %v4292
    %4294 = vst [vmem:[#allocation5 + $0x2] sm:$0x3] %v4293
    %v4295 = vld [vmem:[#allocation4 + $0x4] sm:$0x3]
    %v4296 = vld [vmem:[#allocation4 + $0xa] sm:$0x3]
    %v4297 = vsel %vm134, %v4295, %v4296
    %4298 = vst [vmem:[#allocation5 + $0x4] sm:$0x3] %v4297
    %v4299 = vld [vmem:[#allocation4 + $0x6] sm:$0x3]
    %v4300 = vld [vmem:[#allocation4 + $0x8] sm:$0x3]
    %v4301 = vsel %vm134, %v4299, %v4300
    %4302 = vst [vmem:[#allocation5 + $0x6] sm:$0x3] %v4301
    %v4303 = vld [vmem:[#allocation4 + $0x8] sm:$0x3]
    %v4304 = vld [vmem:[#allocation4 + $0x6] sm:$0x3]
    %v4305 = vsel %vm134, %v4303, %v4304
    %4306 = vst [vmem:[#allocation5 + $0x8] sm:$0x3] %v4305
    %v4307 = vld [vmem:[#allocation4 + $0xa] sm:$0x3]
    %v4308 = vld [vmem:[#allocation4 + $0x4] sm:$0x3]
    %v4309 = vsel %vm134, %v4307, %v4308
    %4310 = vst [vmem:[#allocation5 + $0xa] sm:$0x3] %v4309
    %v4311 = vld [vmem:[#allocation4 + $0xc] sm:$0x3]
    %v4312 = vld [vmem:[#allocation4 + $0x2] sm:$0x3]
    %v4313 = vsel %vm134, %v4311, %v4312
    %4314 = vst [vmem:[#allocation5 + $0xc] sm:$0x3] %v4313
    %v4315 = vld [vmem:[#allocation4 + $0xe] sm:$0x3]
    %v4316 = vld [vmem:[#allocation4] sm:$0x3]
    %v4317 = vsel %vm134, %v4315, %v4316
    %4318 = vst [vmem:[#allocation5 + $0xe] sm:$0x3] %v4317
    %v4319 = vld [vmem:[#allocation5] sm:$0xff]
    %v4320 = vld [vmem:[#allocation5 + $0x8] sm:$0xff]
    %v4321 = vld [vmem:[%s7] sm:$0x1]
    %v4323 = vlaneseq
    %v4324 = vshrl.u32 %v4323, 7
    %v4325 = vsub.s32 0, %v4324
    %v4326 = vrot.slane %v4321, %v4325
    %v4328 = vmul.f32 %v4319, %v4326
    %v4329 = vmul.f32 %v4320, %v4326
    %4330 = vadd.xlane.f32.xlu0 %v4328
    %v4331 = vpop.xlane.xlu0 %4330
    %4332 = vadd.xlane.f32.xlu0 %v4329
    %v4333 = vpop.xlane.xlu0 %4332
    %v4334 = vld [vmem:[%s8] sm:$0xff]
    %v4335 = vld [vmem:[%s8 + $0x8] sm:$0xff]
    %v4336 = vld [vmem:[%s8 + $0x10] sm:$0xff]
    %v4337 = vld [vmem:[%s8 + $0x18] sm:$0xff]
    %v4338 = vld [vmem:[%s8 + $0x20] sm:$0xff]
    %v4339 = vld [vmem:[%s8 + $0x28] sm:$0xff]
    %v4340 = vld [vmem:[%s8 + $0x30] sm:$0xff]
    %v4341 = vld [vmem:[%s8 + $0x38] sm:$0xff]
    %v4342 = vld [vmem:[%s8 + $0x40] sm:$0xff]
    %v4343 = vld [vmem:[%s8 + $0x48] sm:$0xff]
    %v4344 = vld [vmem:[%s8 + $0x50] sm:$0xff]
    %v4345 = vld [vmem:[%s8 + $0x58] sm:$0xff]
    %v4346 = vld [vmem:[%s8 + $0x60] sm:$0xff]
    %v4347 = vld [vmem:[%s8 + $0x68] sm:$0xff]
    %v4348 = vld [vmem:[%s8 + $0x70] sm:$0xff]
    %v4349 = vld [vmem:[%s8 + $0x78] sm:$0xff]
    %4350 = vmatprep.subr.mxu0 0.0
    %4351 = vmatpush1.msra.mxu0 %v4349
    %4352 = vmatprep.subr.mxu0 0.0
    %4353 = vmatpush1.msra.mxu0 %v4348
    %4354 = vmatprep.subr.mxu0 0.0
    %4355 = vmatpush1.msra.mxu0 %v4347
    %4356 = vmatprep.subr.mxu0 0.0
    %4357 = vmatpush1.msra.mxu0 %v4346
    %4358 = vmatprep.subr.mxu0 0.0
    %4359 = vmatpush1.msra.mxu0 %v4345
    %4360 = vmatprep.subr.mxu0 0.0
    %4361 = vmatpush1.msra.mxu0 %v4344
    %4362 = vmatprep.subr.mxu0 0.0
    %4363 = vmatpush1.msra.mxu0 %v4343
    %4364 = vmatprep.subr.mxu0 0.0
    %4365 = vmatpush1.msra.mxu0 %v4342
    %4366 = vmatprep.subr.mxu0 0.0
    %4367 = vmatpush1.msra.mxu0 %v4341
    %4368 = vmatprep.subr.mxu0 0.0
    %4369 = vmatpush1.msra.mxu0 %v4340
    %4370 = vmatprep.subr.mxu0 0.0
    %4371 = vmatpush1.msra.mxu0 %v4339
    %4372 = vmatprep.subr.mxu0 0.0
    %4373 = vmatpush1.msra.mxu0 %v4338
    %4374 = vmatprep.subr.mxu0 0.0
    %4375 = vmatpush1.msra.mxu0 %v4337
    %4376 = vmatprep.subr.mxu0 0.0
    %4377 = vmatpush1.msra.mxu0 %v4336
    %4378 = vmatprep.subr.mxu0 0.0
    %4379 = vmatpush1.msra.mxu0 %v4335
    %4380 = vmatprep.subr.mxu0 0.0
    %4381 = vmatpush1.msra.mxu0 %v4334
    %4382 = vmatprep.subr.mxu0 0.0
    %4383 = vmatpush2.msra.mxu0 0.0
    %4384 = vmatprep.subr.mxu0 0.0
    %4385 = vmatpush2.msra.mxu0 0.0
    %4386 = vmatprep.subr.mxu0 0.0
    %4387 = vmatpush2.msra.mxu0 0.0
    %4388 = vmatprep.subr.mxu0 0.0
    %4389 = vmatpush2.msra.mxu0 0.0
    %4390 = vmatprep.subr.mxu0 0.0
    %4391 = vmatpush2.msra.mxu0 0.0
    %4392 = vmatprep.subr.mxu0 0.0
    %4393 = vmatpush2.msra.mxu0 0.0
    %4394 = vmatprep.subr.mxu0 0.0
    %4395 = vmatpush2.msra.mxu0 0.0
    %4396 = vmatprep.subr.mxu0 0.0
    %4397 = vmatpush2.msra.mxu0 0.0
    %4398 = vmatprep.subr.mxu0 0.0
    %4399 = vmatpush2.msra.mxu0 0.0
    %4400 = vmatprep.subr.mxu0 0.0
    %4401 = vmatpush2.msra.mxu0 0.0
    %4402 = vmatprep.subr.mxu0 0.0
    %4403 = vmatpush2.msra.mxu0 0.0
    %4404 = vmatprep.subr.mxu0 0.0
    %4405 = vmatpush2.msra.mxu0 0.0
    %4406 = vmatprep.subr.mxu0 0.0
    %4407 = vmatpush2.msra.mxu0 0.0
    %4408 = vmatprep.subr.mxu0 0.0
    %4409 = vmatpush2.msra.mxu0 0.0
    %4410 = vmatprep.subr.mxu0 0.0
    %4411 = vmatpush2.msra.mxu0 0.0
    %4412 = vmatprep.subr.mxu0 0.0
    %4413 = vmatpush2.msra.mxu0 0.0
    %4414 = vmatprep.mubr.f32.mxu0 0.0
    %4415 = vmatmul.mubr.f32.gmra.mxu0 %v4319
    %v4416 = vpop.f32.mrf.mxu0
    %v4417 = vadd.f32 0.0, %v4416
    %v4418 = vpop.f32.mrf.mxu0
    %4419 = vmatprep.mubr.f32.mxu0 0.0
    %4420 = vmatmul.mubr.f32.gmra.mxu0 %v4320
    %v4421 = vpop.f32.mrf.mxu0
    %v4422 = vadd.f32 0.0, %v4421
    %v4423 = vpop.f32.mrf.mxu0
    %4424 = vdwg.mxu0
    %v4426 = vrot.slane %v4331, 2
    %v4428 = vmax.f32 %v4331, %v4426
    %v4429 = vrot.slane %v4331, 4
    %v4431 = vmax.f32 %v4428, %v4429
    %v4432 = vrot.slane %v4331, 6
    %v4434 = vmax.f32 %v4431, %v4432
    %v4435 = vmax.f32 %v4434, %v4333
    %v4437 = vrot.slane %v4333, 2
    %v4439 = vmax.f32 %v4435, %v4437
    %v4440 = vrot.slane %v4333, 4
    %v4442 = vmax.f32 %v4439, %v4440
    %v4443 = vrot.slane %v4333, 6
    %v4445 = vmax.f32 %v4442, %v4443
    %v4446 = vsub.f32 %v4331, %v4445
    %v4447 = vmul.f32 %v4446, 1.442695
    %v4448 = vpow.pop %v4447
    %v4449 = vadd.f32 %v4448, 0.0
    %4451 = vset.pattern.permute.xlu0 0
    %4452 = vperm.xlu0 %4451, %v4448
    %v4453 = vpop.permute.xlu0 %4452
    %v4455 = vmul.f32 %v4453, %v4417
    %v4456 = vadd.f32 %v4455, 0.0
    %v4458 = vrot.slane %v4445, 6
    %v4460 = vsub.f32 %v4331, %v4458
    %v4461 = vmul.f32 %v4460, 1.442695
    %v4462 = vpow.pop %v4461
    %v4464 = vrot.slane %v4462, 2
    %v4466 = vadd.f32 %v4449, %v4464
    %4467 = vset.pattern.permute.xlu0 0
    %4468 = vperm.xlu0 %4467, %v4462
    %v4469 = vpop.permute.xlu0 %4468
    %v4471 = vmul.f32 %v4469, %v4417
    %v4473 = vrot.slane %v4471, 2
    %v4475 = vadd.f32 %v4456, %v4473
    %v4476 = vrot.slane %v4445, 4
    %v4478 = vsub.f32 %v4331, %v4476
    %v4479 = vmul.f32 %v4478, 1.442695
    %v4480 = vpow.pop %v4479
    %v4482 = vrot.slane %v4480, 4
    %v4484 = vadd.f32 %v4466, %v4482
    %4485 = vset.pattern.permute.xlu0 0
    %4486 = vperm.xlu0 %4485, %v4480
    %v4487 = vpop.permute.xlu0 %4486
    %v4489 = vmul.f32 %v4487, %v4417
    %v4491 = vrot.slane %v4489, 4
    %v4493 = vadd.f32 %v4475, %v4491
    %v4494 = vrot.slane %v4445, 2
    %v4496 = vsub.f32 %v4331, %v4494
    %v4497 = vmul.f32 %v4496, 1.442695
    %v4498 = vpow.pop %v4497
    %v4500 = vrot.slane %v4498, 6
    %v4502 = vadd.f32 %v4484, %v4500
    %4503 = vset.pattern.permute.xlu0 0
    %4504 = vperm.xlu0 %4503, %v4498
    %v4505 = vpop.permute.xlu0 %4504
    %v4507 = vmul.f32 %v4505, %v4417
    %v4509 = vrot.slane %v4507, 6
    %v4511 = vadd.f32 %v4493, %v4509
    %v4512 = vsub.f32 %v4333, %v4445
    %v4513 = vmul.f32 %v4512, 1.442695
    %v4514 = vpow.pop %v4513
    %v4515 = vadd.f32 %v4502, %v4514
    %4517 = vset.pattern.permute.xlu0 0
    %4518 = vperm.xlu0 %4517, %v4514
    %v4519 = vpop.permute.xlu0 %4518
    %v4521 = vmul.f32 %v4519, %v4422
    %v4522 = vadd.f32 %v4511, %v4521
    %v4523 = vsub.f32 %v4333, %v4458
    %v4524 = vmul.f32 %v4523, 1.442695
    %v4525 = vpow.pop %v4524
    %v4527 = vrot.slane %v4525, 2
    %v4529 = vadd.f32 %v4515, %v4527
    %4530 = vset.pattern.permute.xlu0 0
    %4531 = vperm.xlu0 %4530, %v4525
    %v4532 = vpop.permute.xlu0 %4531
    %v4534 = vmul.f32 %v4532, %v4422
    %v4536 = vrot.slane %v4534, 2
    %v4538 = vadd.f32 %v4522, %v4536
    %v4539 = vsub.f32 %v4333, %v4476
    %v4540 = vmul.f32 %v4539, 1.442695
    %v4541 = vpow.pop %v4540
    %v4543 = vrot.slane %v4541, 4
    %v4545 = vadd.f32 %v4529, %v4543
    %4546 = vset.pattern.permute.xlu0 0
    %4547 = vperm.xlu0 %4546, %v4541
    %v4548 = vpop.permute.xlu0 %4547
    %v4550 = vmul.f32 %v4548, %v4422
    %v4552 = vrot.slane %v4550, 4
    %v4554 = vadd.f32 %v4538, %v4552
    %v4555 = vsub.f32 %v4333, %v4494
    %v4556 = vmul.f32 %v4555, 1.442695
    %v4557 = vpow.pop %v4556
    %v4559 = vrot.slane %v4557, 6
    %v4561 = vadd.f32 %v4545, %v4559
    %4562 = vset.pattern.permute.xlu0 0
    %4563 = vperm.xlu0 %4562, %v4557
    %v4564 = vpop.permute.xlu0 %4563
    %v4566 = vmul.f32 %v4564, %v4422
    %v4568 = vrot.slane %v4566, 6
    %v4570 = vadd.f32 %v4554, %v4568
    %4572 = vset.pattern.permute.xlu0 0
    %4573 = vperm.xlu0 %4572, %v4561
    %v4574 = vpop.permute.xlu0 %4573
    %v4576 = vrcp.pop %v4574
    %v4577 = vmul.f32 %v4570, %v4576
    %v4578 = vld [vmem:[%s9] sm:$0x1]
    %v4580 = vlaneseq
    %v4581 = vshrl.u32 %v4580, 7
    %v4582 = vsub.s32 0, %v4581
    %v4583 = vrot.slane %v4578, %v4582
    %v4585 = vadd.f32 %v4577, %v4583
    %vm4586 = vcmask 74752
    %v4587 = vsel %vm4586, %v4585, -inf
    %4588 = vmax.xlane.f32.xlu0 %v4587
    %v4589 = vpop.xlane.xlu0 %4588
    %v4590 = vsub.f32 %v4585, %v4589
    %v4591 = vmul.f32 %v4590, 1.442695
    %v4592 = vpow.pop %v4591
    %v4593 = vsel %vm4586, %v4592, 0.0
    %4594 = vadd.xlane.f32.xlu0 %v4593
    %v4595 = vpop.xlane.xlu0 %4594
    %v4596 = vrcp.pop %v4595
    %v4597 = vmul.f32 %v4592, %v4596
    %4598 = vst.msk [vmem:[#allocation12] sm:$0x3] %vm4586, %v4597
    // Predicated region
    $region54: #{bilstm_predictor.1} parent=1 // pred_check
      _
    $region55: #{bilstm_predictor.1} parent=1 // pred_check_branch
      %4600 = sbr.rel (0) target = $region57
    $region56: #{bilstm_predictor.1} parent=1 // pred_region
      %s4602 = ssub.s32 32, 32
      %4603 = vsyncadd [#allocation8], %s4602
      %s4605 = sshll.u32 [#allocation12], 4
      %s4606 = int_to_ptr.vmem [resolvable:$true] %s4605
      %4608 = dma.vmem_to_hbm [thread:$0]  %s4606, 32, %s10, [#allocation8]
    $region57: #{bilstm_predictor.1} parent=1 // pred_fallthru
      _
    // Predicated region
    $region58: #{bilstm_predictor.1} parent=1 // pred_check
      _
    $region59: #{bilstm_predictor.1} parent=1 // pred_check_branch
      %4610 = sbr.rel (0) target = $region61
    $region60: #{bilstm_predictor.1} parent=1 // pred_region
      %4611 = dma.done [#allocation8], 32
    $region61: #{bilstm_predictor.1} parent=1 // pred_fallthru
      _
    %4612 = vsyncpa [#allocation7], 1
    %4613 = vsyncpa [#allocation10], 1
    %4614 = vsyncpa [#allocation8], 1

</llo_original>
